<compile_context>
chip_gen: v6e
topology: v6e:2x2x1
jax: 0.10.0
libtpu: 0.0.40
codegen_flags: <defaults>
</compile_context>

<pallas_src>
import functools
import math

import numpy as np
import jax
import jax.numpy as jnp
from jax import lax
from jax.experimental import pallas as pl
from jax.experimental.pallas import tpu as pltpu


_VMEM_BUDGET_BYTES = 36 << 20   # target working set (v7x physical VMEM = 64 MiB)
_VMEM_SLACK_BYTES = 6 << 20     # weights, compiler scratch, misc
_MIN_TILE_BYTES = 512 << 10     # keep per-step DMA big enough to amortize ~0.35us step cost
_MAX_TILE_BYTES = 8 << 20
_MIN_GRID_STEPS = 4             # >= 2 steps per TensorCore on dual-core (v7x) parts


def _round_up(a, b):
    return ((a + b - 1) // b) * b


def _round_down(a, b):
    return (a // b) * b


def _pick_tile_bytes(itemsize):
    """Tile bytes so 2 in-buffers + 2 out-buffers + ~3 full-tile f32 temps fit."""
    temps_factor = 3.0 * 4.0 / float(itemsize)          # x, xc, y in f32
    usable = _VMEM_BUDGET_BYTES - _VMEM_SLACK_BYTES
    t = int(usable / (4.0 + temps_factor))
    return int(max(_MIN_TILE_BYTES, min(_MAX_TILE_BYTES, _round_down(t, 64 << 10))))


def _vmem_limit_bytes(tile_bytes, itemsize):
    """Scoped-VMEM request derived from the actual per-step footprint."""
    f32_temp_bytes = 3 * (tile_bytes * 4) // max(1, itemsize)
    limit = 4 * tile_bytes + f32_temp_bytes + _VMEM_SLACK_BYTES
    return int(min(max(limit, 16 << 20), 46 << 20))


def _row_tile(n_rows, row_bytes, target_bytes, min_steps=_MIN_GRID_STEPS):
    """Row tile (multiple of 8 or full extent) for a mem-bound row-wise kernel."""
    if n_rows <= 8:
        return max(1, n_rows)
    tm = _round_down(max(target_bytes // max(1, row_bytes), 8), 8)
    # >= min_steps grid steps (2 per TensorCore on dual-core chips), but never
    # shrink a tile below ~_MIN_TILE_BYTES / 8 rows just to get more steps.
    min_rows = max(8, _round_down(_MIN_TILE_BYTES // max(1, row_bytes), 8))
    cap = max(min_rows, _round_up(pl.cdiv(n_rows, min_steps), 8))
    tm = min(tm, cap)
    # never let the block exceed the array along this dim
    tm = min(tm, max(8, _round_down(n_rows, 8)))
    return tm


# --------------------------- channels_last kernel ----------------------------

def _ln_rows_kernel(x_ref, w_ref, b_ref, o_ref, *, eps, group):
    # x_ref: (tm, Ceff) lane-dense tile.  When group > 1, each physical row
    # holds `group` original rows of length C = Ceff // group concatenated.
    x = x_ref[...].astype(jnp.float32)
    if group == 1:
        mean = jnp.mean(x, axis=-1, keepdims=True)
        xc = x - mean
        var = jnp.mean(xc * xc, axis=-1, keepdims=True)   # biased (matches torch)
        y = xc * lax.rsqrt(var + eps)
    else:
        tm, ceff = x.shape
        c = ceff // group
        xg = x.reshape(tm, group, c)
        mean = jnp.mean(xg, axis=-1, keepdims=True)
        xc = xg - mean
        var = jnp.mean(xc * xc, axis=-1, keepdims=True)    # biased (matches torch)
        y = (xc * lax.rsqrt(var + eps)).reshape(tm, ceff)
    y = y * w_ref[...].astype(jnp.float32) + b_ref[...].astype(jnp.float32)
    o_ref[...] = y.astype(o_ref.dtype)


def _layernorm_rows(x2, weight, bias, eps):
    """x2: (M, C); weight/bias: (C,). Row-wise LayerNorm over the last dim."""
    M, C = x2.shape
    itemsize = x2.dtype.itemsize

    # Lane-dense folding: fold k consecutive rows into one physical row of
    # k*C elements (a multiple of 128) so loads/stores are unmasked full-lane.
    group = 1
    if C % 128 != 0:
        k = 128 // math.gcd(C, 128)
        if k <= 32 and M % k == 0 and (M // k) >= 1:
            group = k
    Ceff = group * C
    Meff = M // group

    x_in = x2.reshape(Meff, Ceff) if group > 1 else x2            # free reshape
    w_row = (jnp.tile(weight, group) if group > 1 else weight).reshape(1, Ceff)
    b_row = (jnp.tile(bias, group) if group > 1 else bias).reshape(1, Ceff)

    row_bytes = Ceff * itemsize
    target = _pick_tile_bytes(itemsize)
    tm = _row_tile(Meff, row_bytes, target)
    grid = (pl.cdiv(Meff, tm),)
    tile_bytes = tm * row_bytes

    out = pl.pallas_call(
        functools.partial(_ln_rows_kernel, eps=eps, group=group),
        out_shape=jax.ShapeDtypeStruct((Meff, Ceff), x2.dtype),
        grid_spec=pltpu.PrefetchScalarGridSpec(
            num_scalar_prefetch=0,
            grid=grid,
            in_specs=[
                pl.BlockSpec((tm, Ceff), lambda i: (i, 0)),
                pl.BlockSpec((1, Ceff), lambda i: (0, 0)),
                pl.BlockSpec((1, Ceff), lambda i: (0, 0)),
            ],
            out_specs=pl.BlockSpec((tm, Ceff), lambda i: (i, 0)),
        ),
        compiler_params=pltpu.CompilerParams(
            dimension_semantics=("parallel",),
            vmem_limit_bytes=_vmem_limit_bytes(tile_bytes, itemsize)),
    )(x_in, w_row, b_row)

    return out.reshape(M, C) if group > 1 else out


# --------------------------- channels_first kernel ---------------------------

def _ln_chan_kernel(x_ref, w_ref, b_ref, o_ref, *, eps):
    # x_ref: (B_t, C, t_hw); normalize over the channel (sublane) axis.
    x = x_ref[...].astype(jnp.float32)
    mean = jnp.mean(x, axis=1, keepdims=True)
    xc = x - mean
    var = jnp.mean(xc * xc, axis=1, keepdims=True)         # biased (matches torch)
    y = xc * lax.rsqrt(var + eps)
    y = y * w_ref[...].astype(jnp.float32) + b_ref[...].astype(jnp.float32)
    o_ref[...] = y.astype(o_ref.dtype)


def _layernorm_channels_first(x, weight, bias, eps):
    """x: (B, C, H, W); normalize over axis 1. No HBM transposes."""
    B, C, H, W = x.shape
    HW = H * W
    x3 = x.reshape(B, C, HW)
    itemsize = x.dtype.itemsize
    target = _pick_tile_bytes(itemsize)

    # Lane-dense spatial tile: multiple of 128, or the full extent.
    if HW <= 128:
        t_hw = HW
    else:
        t_hw = _round_down(max(target // max(1, C * itemsize), 128), 128)
        if t_hw >= HW:
            t_hw = HW
    n_hw = pl.cdiv(HW, t_hw)

    # Fuse several batch elements per block when a single-batch block is tiny,
    # so the fixed per-grid-step cost is amortized (7x7 / 14x14 / 16x16 stages).
    block_bytes = C * t_hw * itemsize
    if n_hw == 1 and block_bytes < _MIN_TILE_BYTES and B > 1:
        B_t = min(B, pl.cdiv(_MIN_TILE_BYTES, block_bytes))
        if B >= _MIN_GRID_STEPS:                 # keep >= 2 steps/TensorCore if B allows
            B_t = min(B_t, pl.cdiv(B, _MIN_GRID_STEPS))
        B_t = max(1, B_t)
    else:
        B_t = 1
    n_b = pl.cdiv(B, B_t)

    # If the grid is still too small for per-core double-buffering on dual-core
    # chips and the spatial dim permits, split it (lane-dense, >= min bytes).
    if n_b * n_hw < _MIN_GRID_STEPS and B_t == 1 and HW > 128:
        want = pl.cdiv(_MIN_GRID_STEPS, n_b)
        cand = max(128, _round_up(pl.cdiv(HW, want), 128))
        if cand < HW and C * cand * itemsize >= _MIN_TILE_BYTES:
            t_hw = cand
            n_hw = pl.cdiv(HW, t_hw)

    grid = (n_b, n_hw)
    w3 = weight.reshape(1, C, 1)
    b3 = bias.reshape(1, C, 1)
    tile_bytes = B_t * C * t_hw * itemsize

    out = pl.pallas_call(
        functools.partial(_ln_chan_kernel, eps=eps),
        out_shape=jax.ShapeDtypeStruct((B, C, HW), x.dtype),
        grid_spec=pltpu.PrefetchScalarGridSpec(
            num_scalar_prefetch=0,
            grid=grid,
            in_specs=[
                pl.BlockSpec((B_t, C, t_hw), lambda b, j: (b, 0, j)),
                pl.BlockSpec((1, C, 1), lambda b, j: (0, 0, 0)),
                pl.BlockSpec((1, C, 1), lambda b, j: (0, 0, 0)),
            ],
            out_specs=pl.BlockSpec((B_t, C, t_hw), lambda b, j: (b, 0, j)),
        ),
        compiler_params=pltpu.CompilerParams(
            dimension_semantics=("parallel", "parallel"),
            vmem_limit_bytes=_vmem_limit_bytes(tile_bytes, itemsize)),
    )(x3, w3, b3)
    return out.reshape(B, C, H, W)


# --------------------------------- wrapper -----------------------------------

def layer_norm(x, weight, bias, eps=1e-5, data_format="channels_last"):
    """Pallas LayerNorm matching the PyTorch module's forward semantics."""
    if data_format == "channels_last":
        # x: (..., C), normalize over the last dim.
        C = x.shape[-1]
        orig_shape = x.shape
        M = int(np.prod(orig_shape[:-1]))
        out = _layernorm_rows(x.reshape(M, C), weight, bias, eps)
        return out.reshape(orig_shape)
    elif data_format == "channels_first":
        # x: (B, C, H, W), normalize over the channel dim (axis 1).
        return _layernorm_channels_first(x, weight, bias, eps)
    else:
        raise NotImplementedError


# ---------------------------- reference (pure JAX) ----------------------------

def _ref_channels_last(x, weight, bias, eps):
    mean = jnp.mean(x, axis=-1, keepdims=True)
    var = jnp.mean((x - mean) ** 2, axis=-1, keepdims=True)
    return (x - mean) / jnp.sqrt(var + eps) * weight + bias


def _ref_channels_first(x, weight, bias, eps):
    u = jnp.mean(x, axis=1, keepdims=True)
    s = jnp.mean((x - u) ** 2, axis=1, keepdims=True)
    xn = (x - u) / jnp.sqrt(s + eps)
    return weight[None, :, None, None] * xn + bias[None, :, None, None]


if __name__ == "__main__":
    key = jax.random.PRNGKey(0)
    k1, k2, k3, k4 = jax.random.split(key, 4)

    B, C, H, W = 2, 32, 16, 16
    eps = 1e-5

    # Parameters: module init is weight=ones, bias=zeros; perturb
    # deterministically so broadcasting is actually exercised.
    weight = jnp.ones((C,), jnp.float32) + 0.1 * jax.random.normal(k3, (C,), jnp.float32)
    bias = jnp.zeros((C,), jnp.float32) + 0.1 * jax.random.normal(k4, (C,), jnp.float32)

    # ---- channels_last: x is (B, H, W, C) ----  (exercises the lane-dense fold, k=4)
    x_last = jax.random.normal(k1, (B, H, W, C), jnp.float32)
    y_last = jax.block_until_ready(
        layer_norm(x_last, weight, bias, eps, data_format="channels_last"))
    y_last_ref = _ref_channels_last(x_last, weight, bias, eps)
    np.testing.assert_allclose(np.asarray(y_last), np.asarray(y_last_ref),
                               rtol=1e-5, atol=1e-5)

    # ---- channels_first: x is (B, C, H, W) ----  (exercises batch-fused blocks)
    x_first = jax.random.normal(k2, (B, C, H, W), jnp.float32)
    y_first = jax.block_until_ready(
        layer_norm(x_first, weight, bias, eps, data_format="channels_first"))
    y_first_ref = _ref_channels_first(x_first, weight, bias, eps)
    np.testing.assert_allclose(np.asarray(y_first), np.asarray(y_first_ref),
                               rtol=1e-5, atol=1e-5)

    print("KERNEL_OK")
</pallas_src>

<mosaic_0001>
module attributes {stable_mosaic.version = 11 : i64} {
  func.func @_ln_rows_kernel(%arg0: i32, %arg1: memref<128x128xf32, #tpu.memory_space<vmem>>, %arg2: memref<1x128xf32, #tpu.memory_space<vmem>>, %arg3: memref<1x128xf32, #tpu.memory_space<vmem>>, %arg4: memref<128x128xf32, #tpu.memory_space<vmem>>) attributes {dimension_semantics = [#tpu.dimension_semantics<parallel>], iteration_bounds = array<i64: 1>, scalar_prefetch = 0 : i64, scratch_operands = 0 : i64, tpu.core_type = #tpu.core_type<tc>, window_params = [{transform_indices = @transform_0, window_bounds = array<i64: 128, 128>}, {pipeline_mode = #tpu.pipeline_mode<synchronous>, transform_indices = @transform_1, window_bounds = array<i64: 1, 128>}, {pipeline_mode = #tpu.pipeline_mode<synchronous>, transform_indices = @transform_2, window_bounds = array<i64: 1, 128>}, {transform_indices = @transform_3, window_bounds = array<i64: 128, 128>}]} {
    %c0 = arith.constant 0 : index
    %c0_0 = arith.constant 0 : index
    %0 = vector.load %arg1[%c0, %c0_0] : memref<128x128xf32, #tpu.memory_space<vmem>>, vector<128x128xf32>
    %1 = vector.shape_cast %0 : vector<128x128xf32> to vector<128x4x32xf32>
    %cst = arith.constant dense<0.000000e+00> : vector<128x4xf32>
    %2 = vector.multi_reduction <add>, %1, %cst [2] : vector<128x4x32xf32> to vector<128x4xf32>
    %3 = vector.shape_cast %2 : vector<128x4xf32> to vector<128x4x1xf32>
    %cst_1 = arith.constant 3.200000e+01 : f32
    %4 = vector.broadcast %cst_1 : f32 to vector<128x4x1xf32>
    %5 = arith.divf %3, %4 : vector<128x4x1xf32>
    %6 = vector.broadcast %5 : vector<128x4x1xf32> to vector<128x4x32xf32>
    %7 = arith.subf %1, %6 : vector<128x4x32xf32>
    %8 = arith.mulf %7, %7 : vector<128x4x32xf32>
    %cst_2 = arith.constant dense<0.000000e+00> : vector<128x4xf32>
    %9 = vector.multi_reduction <add>, %8, %cst_2 [2] : vector<128x4x32xf32> to vector<128x4xf32>
    %10 = vector.shape_cast %9 : vector<128x4xf32> to vector<128x4x1xf32>
    %cst_3 = arith.constant 3.200000e+01 : f32
    %11 = vector.broadcast %cst_3 : f32 to vector<128x4x1xf32>
    %12 = arith.divf %10, %11 : vector<128x4x1xf32>
    %cst_4 = arith.constant 9.99999974E-6 : f32
    %13 = vector.broadcast %cst_4 : f32 to vector<128x4x1xf32>
    %14 = arith.addf %12, %13 : vector<128x4x1xf32>
    %15 = math.rsqrt %14 : vector<128x4x1xf32>
    %16 = vector.broadcast %15 : vector<128x4x1xf32> to vector<128x4x32xf32>
    %17 = arith.mulf %7, %16 : vector<128x4x32xf32>
    %18 = vector.shape_cast %17 : vector<128x4x32xf32> to vector<128x128xf32>
    %c0_5 = arith.constant 0 : index
    %c0_6 = arith.constant 0 : index
    %19 = vector.load %arg2[%c0_5, %c0_6] : memref<1x128xf32, #tpu.memory_space<vmem>>, vector<1x128xf32>
    %20 = vector.broadcast %19 : vector<1x128xf32> to vector<128x128xf32>
    %21 = arith.mulf %18, %20 : vector<128x128xf32>
    %c0_7 = arith.constant 0 : index
    %c0_8 = arith.constant 0 : index
    %22 = vector.load %arg3[%c0_7, %c0_8] : memref<1x128xf32, #tpu.memory_space<vmem>>, vector<1x128xf32>
    %23 = vector.broadcast %22 : vector<1x128xf32> to vector<128x128xf32>
    %24 = arith.addf %21, %23 : vector<128x128xf32>
    %c0_9 = arith.constant 0 : index
    %c0_10 = arith.constant 0 : index
    %25 = vector.load %arg4[%c0_9, %c0_10] : memref<128x128xf32, #tpu.memory_space<vmem>>, vector<128x128xf32>
    tpu.vector_store %arg4[%c0_9, %c0_10], %24 {strides = array<i32>} : memref<128x128xf32, #tpu.memory_space<vmem>>, vector<128x128xf32>,
    return
  }
  func.func @transform_0(%arg0: i32) -> (i32, i32) {
    %c0_i32 = arith.constant 0 : i32
    %c0_i32_0 = arith.constant 0 : i32
    return %arg0, %c0_i32 : i32, i32
  }
  func.func @transform_1(%arg0: i32) -> (i32, i32) {
    %c0_i32 = arith.constant 0 : i32
    %c0_i32_0 = arith.constant 0 : i32
    %c0_i32_1 = arith.constant 0 : i32
    return %c0_i32, %c0_i32_0 : i32, i32
  }
  func.func @transform_2(%arg0: i32) -> (i32, i32) {
    %c0_i32 = arith.constant 0 : i32
    %c0_i32_0 = arith.constant 0 : i32
    %c0_i32_1 = arith.constant 0 : i32
    return %c0_i32, %c0_i32_0 : i32, i32
  }
  func.func @transform_3(%arg0: i32) -> (i32, i32) {
    %c0_i32 = arith.constant 0 : i32
    %c0_i32_0 = arith.constant 0 : i32
    return %arg0, %c0_i32 : i32, i32
  }
}

</mosaic_0001>

<llo_original>
// kernel: tpu_custom_call.1
$region0: #{tpu_custom_call.1}
  #allocation0 [shape = 'u32[]', space=smem, size = 0x4, offset = 0x4, fixed_abs, tag = 'smem constant byte address 0x4 - core index']
  #allocation1 [shape = 'u32[144,128]{1,0:T(1,128)}', space=vmem, size = 0x12000, scoped, tag = 'internal scratch']
  %s0 = inlined_call_operand.hbm [shape: f32[128,128], index: 0, kind: input, shape index: {}]
  %s1 = inlined_call_operand.vmem [shape: f32[1,128], index: 1, kind: input, shape index: {}]
  %s2 = inlined_call_operand.vmem [shape: f32[1,128], index: 2, kind: input, shape index: {}]
  %s3 = inlined_call_operand.hbm [shape: f32[128,128], index: 3, kind: output, shape index: {}]
  %s4 = sld [smem:[#allocation0]]
  $region26: #{tpu_custom_call.1} parent=0
    _
  %s6 = ssub.s32 1, %s4
  %s7 = scalar_select 0, %s6, %s4
  $region1: #{tpu_custom_call.1} parent=0
    #allocation2 [shape = 'u8[65536]{0}', space=vmem, size = 0x10000, scoped, tag = 'input window, operand 0, single buffered']
    #allocation3 [shape = 's32[1]{0}', space=sflag, size = 0x4, scoped, tag = 'scoped memory for tpu_custom_call.1']
    #allocation4 [shape = 's32[1]{0}', space=sflag, size = 0x4, scoped, tag = 'scoped memory for tpu_custom_call.1']
    #allocation5 [shape = 'u8[65536]{0}', space=vmem, size = 0x10000, scoped, tag = 'output window, operand 0, single buffered']
    %8 = vsyncpa [#allocation3], 0
    %9 = vsyncpa [#allocation4], 0
    // Predicated region
    $region2: #{tpu_custom_call.1} parent=1 // pred_check
      _
    $region3: #{tpu_custom_call.1} parent=1 // pred_check_branch
      %11 = sbr.rel (0) target = $region5
    $region4: #{tpu_custom_call.1} parent=1 // pred_region
      %s13 = ssub.s32 2048, 2048
      %14 = vsyncadd [#allocation3], %s13
      %s15 = sshll.u32 [#allocation2], 4
      %s16 = int_to_ptr.vmem [resolvable:$true] %s15
      %21 = dma.hbm_to_vmem [thread:$0]  %s0, 2048, %s16, [#allocation3], 128, 128, 8
    $region5: #{tpu_custom_call.1} parent=1 // pred_fallthru
      _
    // Predicated region
    $region6: #{tpu_custom_call.1} parent=1 // pred_check
      _
    $region7: #{tpu_custom_call.1} parent=1 // pred_check_branch
      %23 = sbr.rel (0) target = $region9
    $region8: #{tpu_custom_call.1} parent=1 // pred_region
      _
    $region9: #{tpu_custom_call.1} parent=1 // pred_fallthru
      _
    // Predicated region
    $region10: #{tpu_custom_call.1} parent=1 // pred_check
      _
    $region11: #{tpu_custom_call.1} parent=1 // pred_check_branch
      %25 = sbr.rel (0) target = $region13
    $region12: #{tpu_custom_call.1} parent=1 // pred_region
      _
    $region13: #{tpu_custom_call.1} parent=1 // pred_fallthru
      _
    // Predicated region
    $region14: #{tpu_custom_call.1} parent=1 // pred_check
      _
    $region15: #{tpu_custom_call.1} parent=1 // pred_check_branch
      %27 = sbr.rel (0) target = $region17
    $region16: #{tpu_custom_call.1} parent=1 // pred_region
      %28 = dma.done [#allocation3], 2048
    $region17: #{tpu_custom_call.1} parent=1 // pred_fallthru
      _
    %v29 = vld [vmem:[#allocation2] sm:$0xff]
    %v30 = vld [vmem:[#allocation2 + $0x8] sm:$0xff]
    %v31 = vld [vmem:[#allocation2 + $0x10] sm:$0xff]
    %v32 = vld [vmem:[#allocation2 + $0x18] sm:$0xff]
    %v33 = vld [vmem:[#allocation2 + $0x20] sm:$0xff]
    %v34 = vld [vmem:[#allocation2 + $0x28] sm:$0xff]
    %v35 = vld [vmem:[#allocation2 + $0x30] sm:$0xff]
    %v36 = vld [vmem:[#allocation2 + $0x38] sm:$0xff]
    %v37 = vld [vmem:[#allocation2 + $0x40] sm:$0xff]
    %v38 = vld [vmem:[#allocation2 + $0x48] sm:$0xff]
    %v39 = vld [vmem:[#allocation2 + $0x50] sm:$0xff]
    %v40 = vld [vmem:[#allocation2 + $0x58] sm:$0xff]
    %v41 = vld [vmem:[#allocation2 + $0x60] sm:$0xff]
    %v42 = vld [vmem:[#allocation2 + $0x68] sm:$0xff]
    %v43 = vld [vmem:[#allocation2 + $0x70] sm:$0xff]
    %v44 = vld [vmem:[#allocation2 + $0x78] sm:$0xff]
    %61 = vrot.lane.b32.xlu0 %v29, 96
    %v62 = vpop.permute.xlu0 %61
    %63 = vrot.lane.b32.xlu0 %v30, 96
    %v64 = vpop.permute.xlu0 %63
    %65 = vrot.lane.b32.xlu0 %v31, 96
    %v66 = vpop.permute.xlu0 %65
    %67 = vrot.lane.b32.xlu0 %v32, 96
    %v68 = vpop.permute.xlu0 %67
    %69 = vrot.lane.b32.xlu0 %v33, 96
    %v70 = vpop.permute.xlu0 %69
    %71 = vrot.lane.b32.xlu0 %v34, 96
    %v72 = vpop.permute.xlu0 %71
    %73 = vrot.lane.b32.xlu0 %v35, 96
    %v74 = vpop.permute.xlu0 %73
    %75 = vrot.lane.b32.xlu0 %v36, 96
    %v76 = vpop.permute.xlu0 %75
    %77 = vrot.lane.b32.xlu0 %v37, 96
    %v78 = vpop.permute.xlu0 %77
    %79 = vrot.lane.b32.xlu0 %v38, 96
    %v80 = vpop.permute.xlu0 %79
    %81 = vrot.lane.b32.xlu0 %v39, 96
    %v82 = vpop.permute.xlu0 %81
    %83 = vrot.lane.b32.xlu0 %v40, 96
    %v84 = vpop.permute.xlu0 %83
    %85 = vrot.lane.b32.xlu0 %v41, 96
    %v86 = vpop.permute.xlu0 %85
    %87 = vrot.lane.b32.xlu0 %v42, 96
    %v88 = vpop.permute.xlu0 %87
    %89 = vrot.lane.b32.xlu0 %v43, 96
    %v90 = vpop.permute.xlu0 %89
    %91 = vrot.lane.b32.xlu0 %v44, 96
    %v92 = vpop.permute.xlu0 %91
    %109 = vrot.lane.b32.xlu0 %v29, 64
    %v110 = vpop.permute.xlu0 %109
    %111 = vrot.lane.b32.xlu0 %v30, 64
    %v112 = vpop.permute.xlu0 %111
    %113 = vrot.lane.b32.xlu0 %v31, 64
    %v114 = vpop.permute.xlu0 %113
    %115 = vrot.lane.b32.xlu0 %v32, 64
    %v116 = vpop.permute.xlu0 %115
    %117 = vrot.lane.b32.xlu0 %v33, 64
    %v118 = vpop.permute.xlu0 %117
    %119 = vrot.lane.b32.xlu0 %v34, 64
    %v120 = vpop.permute.xlu0 %119
    %121 = vrot.lane.b32.xlu0 %v35, 64
    %v122 = vpop.permute.xlu0 %121
    %123 = vrot.lane.b32.xlu0 %v36, 64
    %v124 = vpop.permute.xlu0 %123
    %125 = vrot.lane.b32.xlu0 %v37, 64
    %v126 = vpop.permute.xlu0 %125
    %127 = vrot.lane.b32.xlu0 %v38, 64
    %v128 = vpop.permute.xlu0 %127
    %129 = vrot.lane.b32.xlu0 %v39, 64
    %v130 = vpop.permute.xlu0 %129
    %131 = vrot.lane.b32.xlu0 %v40, 64
    %v132 = vpop.permute.xlu0 %131
    %133 = vrot.lane.b32.xlu0 %v41, 64
    %v134 = vpop.permute.xlu0 %133
    %135 = vrot.lane.b32.xlu0 %v42, 64
    %v136 = vpop.permute.xlu0 %135
    %137 = vrot.lane.b32.xlu0 %v43, 64
    %v138 = vpop.permute.xlu0 %137
    %139 = vrot.lane.b32.xlu0 %v44, 64
    %v140 = vpop.permute.xlu0 %139
    %157 = vrot.lane.b32.xlu0 %v29, 32
    %v158 = vpop.permute.xlu0 %157
    %159 = vrot.lane.b32.xlu0 %v30, 32
    %v160 = vpop.permute.xlu0 %159
    %161 = vrot.lane.b32.xlu0 %v31, 32
    %v162 = vpop.permute.xlu0 %161
    %163 = vrot.lane.b32.xlu0 %v32, 32
    %v164 = vpop.permute.xlu0 %163
    %165 = vrot.lane.b32.xlu0 %v33, 32
    %v166 = vpop.permute.xlu0 %165
    %167 = vrot.lane.b32.xlu0 %v34, 32
    %v168 = vpop.permute.xlu0 %167
    %169 = vrot.lane.b32.xlu0 %v35, 32
    %v170 = vpop.permute.xlu0 %169
    %171 = vrot.lane.b32.xlu0 %v36, 32
    %v172 = vpop.permute.xlu0 %171
    %173 = vrot.lane.b32.xlu0 %v37, 32
    %v174 = vpop.permute.xlu0 %173
    %175 = vrot.lane.b32.xlu0 %v38, 32
    %v176 = vpop.permute.xlu0 %175
    %177 = vrot.lane.b32.xlu0 %v39, 32
    %v178 = vpop.permute.xlu0 %177
    %179 = vrot.lane.b32.xlu0 %v40, 32
    %v180 = vpop.permute.xlu0 %179
    %181 = vrot.lane.b32.xlu0 %v41, 32
    %v182 = vpop.permute.xlu0 %181
    %183 = vrot.lane.b32.xlu0 %v42, 32
    %v184 = vpop.permute.xlu0 %183
    %185 = vrot.lane.b32.xlu0 %v43, 32
    %v186 = vpop.permute.xlu0 %185
    %187 = vrot.lane.b32.xlu0 %v44, 32
    %v188 = vpop.permute.xlu0 %187
    %v205 = vcombine.low %v29, %v110
    %v206 = vcombine.high %v29, %v110
    %v208 = vunpack.c.l.s4 1983009808
    %v209 = vunpack.c.0.s8 %v208
    %v210 = vlaneseq
    %v211 = vshrl.u32 %v210, 7
    %v212 = vsub.s32 %v209, %v211
    %v213 = vrot.slane %v205, %v212
    %v215 = vunpack.c.l.s4 1983009808
    %v216 = vunpack.c.0.s8 %v215
    %v217 = vlaneseq
    %v218 = vshrl.u32 %v217, 7
    %v219 = vsub.s32 %v216, %v218
    %v220 = vrot.slane %v206, %v219
    %v221 = vcombine.low %v62, %v158
    %v222 = vcombine.high %v62, %v158
    %v224 = vunpack.c.l.s4 1983009808
    %v225 = vunpack.c.0.s8 %v224
    %v226 = vlaneseq
    %v227 = vshrl.u32 %v226, 7
    %v228 = vsub.s32 %v225, %v227
    %v229 = vrot.slane %v221, %v228
    %v231 = vunpack.c.l.s4 1983009808
    %v232 = vunpack.c.0.s8 %v231
    %v233 = vlaneseq
    %v234 = vshrl.u32 %v233, 7
    %v235 = vsub.s32 %v232, %v234
    %v236 = vrot.slane %v222, %v235
    %v237 = vcombine.low %v213, %v229
    %v238 = vcombine.high %v213, %v229
    %v240 = vunpack.c.l.s4 1934713408
    %v241 = vunpack.c.0.s8 %v240
    %v242 = vlaneseq
    %v243 = vshrl.u32 %v242, 7
    %v244 = vsub.s32 %v241, %v243
    %v245 = vrot.slane %v237, %v244
    %v247 = vunpack.c.l.s4 1934713408
    %v248 = vunpack.c.0.s8 %v247
    %v249 = vlaneseq
    %v250 = vshrl.u32 %v249, 7
    %v251 = vsub.s32 %v248, %v250
    %v252 = vrot.slane %v238, %v251
    %v253 = vcombine.low %v220, %v236
    %v254 = vcombine.high %v220, %v236
    %v256 = vunpack.c.l.s4 1934713408
    %v257 = vunpack.c.0.s8 %v256
    %v258 = vlaneseq
    %v259 = vshrl.u32 %v258, 7
    %v260 = vsub.s32 %v257, %v259
    %v261 = vrot.slane %v253, %v260
    %v263 = vunpack.c.l.s4 1934713408
    %v264 = vunpack.c.0.s8 %v263
    %v265 = vlaneseq
    %v266 = vshrl.u32 %v265, 7
    %v267 = vsub.s32 %v264, %v266
    %v268 = vrot.slane %v254, %v267
    %v269 = vcombine.high %v245, 0.0
    %v270 = vcombine.high %v252, 0.0
    %v271 = vcombine.high %v261, 0.0
    %v272 = vcombine.high %v268, 0.0
    %v273 = vcombine.low %v30, %v112
    %v274 = vcombine.high %v30, %v112
    %v276 = vunpack.c.l.s4 1983009808
    %v277 = vunpack.c.0.s8 %v276
    %v278 = vlaneseq
    %v279 = vshrl.u32 %v278, 7
    %v280 = vsub.s32 %v277, %v279
    %v281 = vrot.slane %v273, %v280
    %v283 = vunpack.c.l.s4 1983009808
    %v284 = vunpack.c.0.s8 %v283
    %v285 = vlaneseq
    %v286 = vshrl.u32 %v285, 7
    %v287 = vsub.s32 %v284, %v286
    %v288 = vrot.slane %v274, %v287
    %v289 = vcombine.low %v64, %v160
    %v290 = vcombine.high %v64, %v160
    %v292 = vunpack.c.l.s4 1983009808
    %v293 = vunpack.c.0.s8 %v292
    %v294 = vlaneseq
    %v295 = vshrl.u32 %v294, 7
    %v296 = vsub.s32 %v293, %v295
    %v297 = vrot.slane %v289, %v296
    %v299 = vunpack.c.l.s4 1983009808
    %v300 = vunpack.c.0.s8 %v299
    %v301 = vlaneseq
    %v302 = vshrl.u32 %v301, 7
    %v303 = vsub.s32 %v300, %v302
    %v304 = vrot.slane %v290, %v303
    %v305 = vcombine.low %v281, %v297
    %v306 = vcombine.high %v281, %v297
    %v308 = vunpack.c.l.s4 1934713408
    %v309 = vunpack.c.0.s8 %v308
    %v310 = vlaneseq
    %v311 = vshrl.u32 %v310, 7
    %v312 = vsub.s32 %v309, %v311
    %v313 = vrot.slane %v305, %v312
    %v315 = vunpack.c.l.s4 1934713408
    %v316 = vunpack.c.0.s8 %v315
    %v317 = vlaneseq
    %v318 = vshrl.u32 %v317, 7
    %v319 = vsub.s32 %v316, %v318
    %v320 = vrot.slane %v306, %v319
    %v321 = vcombine.low %v288, %v304
    %v322 = vcombine.high %v288, %v304
    %v324 = vunpack.c.l.s4 1934713408
    %v325 = vunpack.c.0.s8 %v324
    %v326 = vlaneseq
    %v327 = vshrl.u32 %v326, 7
    %v328 = vsub.s32 %v325, %v327
    %v329 = vrot.slane %v321, %v328
    %v331 = vunpack.c.l.s4 1934713408
    %v332 = vunpack.c.0.s8 %v331
    %v333 = vlaneseq
    %v334 = vshrl.u32 %v333, 7
    %v335 = vsub.s32 %v332, %v334
    %v336 = vrot.slane %v322, %v335
    %v337 = vcombine.high %v313, 0.0
    %v338 = vcombine.high %v320, 0.0
    %v339 = vcombine.high %v329, 0.0
    %v340 = vcombine.high %v336, 0.0
    %v341 = vcombine.low %v31, %v114
    %v342 = vcombine.high %v31, %v114
    %v344 = vunpack.c.l.s4 1983009808
    %v345 = vunpack.c.0.s8 %v344
    %v346 = vlaneseq
    %v347 = vshrl.u32 %v346, 7
    %v348 = vsub.s32 %v345, %v347
    %v349 = vrot.slane %v341, %v348
    %v351 = vunpack.c.l.s4 1983009808
    %v352 = vunpack.c.0.s8 %v351
    %v353 = vlaneseq
    %v354 = vshrl.u32 %v353, 7
    %v355 = vsub.s32 %v352, %v354
    %v356 = vrot.slane %v342, %v355
    %v357 = vcombine.low %v66, %v162
    %v358 = vcombine.high %v66, %v162
    %v360 = vunpack.c.l.s4 1983009808
    %v361 = vunpack.c.0.s8 %v360
    %v362 = vlaneseq
    %v363 = vshrl.u32 %v362, 7
    %v364 = vsub.s32 %v361, %v363
    %v365 = vrot.slane %v357, %v364
    %v367 = vunpack.c.l.s4 1983009808
    %v368 = vunpack.c.0.s8 %v367
    %v369 = vlaneseq
    %v370 = vshrl.u32 %v369, 7
    %v371 = vsub.s32 %v368, %v370
    %v372 = vrot.slane %v358, %v371
    %v373 = vcombine.low %v349, %v365
    %v374 = vcombine.high %v349, %v365
    %v376 = vunpack.c.l.s4 1934713408
    %v377 = vunpack.c.0.s8 %v376
    %v378 = vlaneseq
    %v379 = vshrl.u32 %v378, 7
    %v380 = vsub.s32 %v377, %v379
    %v381 = vrot.slane %v373, %v380
    %v383 = vunpack.c.l.s4 1934713408
    %v384 = vunpack.c.0.s8 %v383
    %v385 = vlaneseq
    %v386 = vshrl.u32 %v385, 7
    %v387 = vsub.s32 %v384, %v386
    %v388 = vrot.slane %v374, %v387
    %v389 = vcombine.low %v356, %v372
    %v390 = vcombine.high %v356, %v372
    %v392 = vunpack.c.l.s4 1934713408
    %v393 = vunpack.c.0.s8 %v392
    %v394 = vlaneseq
    %v395 = vshrl.u32 %v394, 7
    %v396 = vsub.s32 %v393, %v395
    %v397 = vrot.slane %v389, %v396
    %v399 = vunpack.c.l.s4 1934713408
    %v400 = vunpack.c.0.s8 %v399
    %v401 = vlaneseq
    %v402 = vshrl.u32 %v401, 7
    %v403 = vsub.s32 %v400, %v402
    %v404 = vrot.slane %v390, %v403
    %v405 = vcombine.high %v381, 0.0
    %v406 = vcombine.high %v388, 0.0
    %v407 = vcombine.high %v397, 0.0
    %v408 = vcombine.high %v404, 0.0
    %v409 = vcombine.low %v32, %v116
    %v410 = vcombine.high %v32, %v116
    %v412 = vunpack.c.l.s4 1983009808
    %v413 = vunpack.c.0.s8 %v412
    %v414 = vlaneseq
    %v415 = vshrl.u32 %v414, 7
    %v416 = vsub.s32 %v413, %v415
    %v417 = vrot.slane %v409, %v416
    %v419 = vunpack.c.l.s4 1983009808
    %v420 = vunpack.c.0.s8 %v419
    %v421 = vlaneseq
    %v422 = vshrl.u32 %v421, 7
    %v423 = vsub.s32 %v420, %v422
    %v424 = vrot.slane %v410, %v423
    %v425 = vcombine.low %v68, %v164
    %v426 = vcombine.high %v68, %v164
    %v428 = vunpack.c.l.s4 1983009808
    %v429 = vunpack.c.0.s8 %v428
    %v430 = vlaneseq
    %v431 = vshrl.u32 %v430, 7
    %v432 = vsub.s32 %v429, %v431
    %v433 = vrot.slane %v425, %v432
    %v435 = vunpack.c.l.s4 1983009808
    %v436 = vunpack.c.0.s8 %v435
    %v437 = vlaneseq
    %v438 = vshrl.u32 %v437, 7
    %v439 = vsub.s32 %v436, %v438
    %v440 = vrot.slane %v426, %v439
    %v441 = vcombine.low %v417, %v433
    %v442 = vcombine.high %v417, %v433
    %v444 = vunpack.c.l.s4 1934713408
    %v445 = vunpack.c.0.s8 %v444
    %v446 = vlaneseq
    %v447 = vshrl.u32 %v446, 7
    %v448 = vsub.s32 %v445, %v447
    %v449 = vrot.slane %v441, %v448
    %v451 = vunpack.c.l.s4 1934713408
    %v452 = vunpack.c.0.s8 %v451
    %v453 = vlaneseq
    %v454 = vshrl.u32 %v453, 7
    %v455 = vsub.s32 %v452, %v454
    %v456 = vrot.slane %v442, %v455
    %v457 = vcombine.low %v424, %v440
    %v458 = vcombine.high %v424, %v440
    %v460 = vunpack.c.l.s4 1934713408
    %v461 = vunpack.c.0.s8 %v460
    %v462 = vlaneseq
    %v463 = vshrl.u32 %v462, 7
    %v464 = vsub.s32 %v461, %v463
    %v465 = vrot.slane %v457, %v464
    %v467 = vunpack.c.l.s4 1934713408
    %v468 = vunpack.c.0.s8 %v467
    %v469 = vlaneseq
    %v470 = vshrl.u32 %v469, 7
    %v471 = vsub.s32 %v468, %v470
    %v472 = vrot.slane %v458, %v471
    %v473 = vcombine.high %v449, 0.0
    %v474 = vcombine.high %v456, 0.0
    %v475 = vcombine.high %v465, 0.0
    %v476 = vcombine.high %v472, 0.0
    %v477 = vcombine.low %v33, %v118
    %v478 = vcombine.high %v33, %v118
    %v480 = vunpack.c.l.s4 1983009808
    %v481 = vunpack.c.0.s8 %v480
    %v482 = vlaneseq
    %v483 = vshrl.u32 %v482, 7
    %v484 = vsub.s32 %v481, %v483
    %v485 = vrot.slane %v477, %v484
    %v487 = vunpack.c.l.s4 1983009808
    %v488 = vunpack.c.0.s8 %v487
    %v489 = vlaneseq
    %v490 = vshrl.u32 %v489, 7
    %v491 = vsub.s32 %v488, %v490
    %v492 = vrot.slane %v478, %v491
    %v493 = vcombine.low %v70, %v166
    %v494 = vcombine.high %v70, %v166
    %v496 = vunpack.c.l.s4 1983009808
    %v497 = vunpack.c.0.s8 %v496
    %v498 = vlaneseq
    %v499 = vshrl.u32 %v498, 7
    %v500 = vsub.s32 %v497, %v499
    %v501 = vrot.slane %v493, %v500
    %v503 = vunpack.c.l.s4 1983009808
    %v504 = vunpack.c.0.s8 %v503
    %v505 = vlaneseq
    %v506 = vshrl.u32 %v505, 7
    %v507 = vsub.s32 %v504, %v506
    %v508 = vrot.slane %v494, %v507
    %v509 = vcombine.low %v485, %v501
    %v510 = vcombine.high %v485, %v501
    %v512 = vunpack.c.l.s4 1934713408
    %v513 = vunpack.c.0.s8 %v512
    %v514 = vlaneseq
    %v515 = vshrl.u32 %v514, 7
    %v516 = vsub.s32 %v513, %v515
    %v517 = vrot.slane %v509, %v516
    %v519 = vunpack.c.l.s4 1934713408
    %v520 = vunpack.c.0.s8 %v519
    %v521 = vlaneseq
    %v522 = vshrl.u32 %v521, 7
    %v523 = vsub.s32 %v520, %v522
    %v524 = vrot.slane %v510, %v523
    %v525 = vcombine.low %v492, %v508
    %v526 = vcombine.high %v492, %v508
    %v528 = vunpack.c.l.s4 1934713408
    %v529 = vunpack.c.0.s8 %v528
    %v530 = vlaneseq
    %v531 = vshrl.u32 %v530, 7
    %v532 = vsub.s32 %v529, %v531
    %v533 = vrot.slane %v525, %v532
    %v535 = vunpack.c.l.s4 1934713408
    %v536 = vunpack.c.0.s8 %v535
    %v537 = vlaneseq
    %v538 = vshrl.u32 %v537, 7
    %v539 = vsub.s32 %v536, %v538
    %v540 = vrot.slane %v526, %v539
    %v541 = vcombine.high %v517, 0.0
    %v542 = vcombine.high %v524, 0.0
    %v543 = vcombine.high %v533, 0.0
    %v544 = vcombine.high %v540, 0.0
    %v545 = vcombine.low %v34, %v120
    %v546 = vcombine.high %v34, %v120
    %v548 = vunpack.c.l.s4 1983009808
    %v549 = vunpack.c.0.s8 %v548
    %v550 = vlaneseq
    %v551 = vshrl.u32 %v550, 7
    %v552 = vsub.s32 %v549, %v551
    %v553 = vrot.slane %v545, %v552
    %v555 = vunpack.c.l.s4 1983009808
    %v556 = vunpack.c.0.s8 %v555
    %v557 = vlaneseq
    %v558 = vshrl.u32 %v557, 7
    %v559 = vsub.s32 %v556, %v558
    %v560 = vrot.slane %v546, %v559
    %v561 = vcombine.low %v72, %v168
    %v562 = vcombine.high %v72, %v168
    %v564 = vunpack.c.l.s4 1983009808
    %v565 = vunpack.c.0.s8 %v564
    %v566 = vlaneseq
    %v567 = vshrl.u32 %v566, 7
    %v568 = vsub.s32 %v565, %v567
    %v569 = vrot.slane %v561, %v568
    %v571 = vunpack.c.l.s4 1983009808
    %v572 = vunpack.c.0.s8 %v571
    %v573 = vlaneseq
    %v574 = vshrl.u32 %v573, 7
    %v575 = vsub.s32 %v572, %v574
    %v576 = vrot.slane %v562, %v575
    %v577 = vcombine.low %v553, %v569
    %v578 = vcombine.high %v553, %v569
    %v580 = vunpack.c.l.s4 1934713408
    %v581 = vunpack.c.0.s8 %v580
    %v582 = vlaneseq
    %v583 = vshrl.u32 %v582, 7
    %v584 = vsub.s32 %v581, %v583
    %v585 = vrot.slane %v577, %v584
    %v587 = vunpack.c.l.s4 1934713408
    %v588 = vunpack.c.0.s8 %v587
    %v589 = vlaneseq
    %v590 = vshrl.u32 %v589, 7
    %v591 = vsub.s32 %v588, %v590
    %v592 = vrot.slane %v578, %v591
    %v593 = vcombine.low %v560, %v576
    %v594 = vcombine.high %v560, %v576
    %v596 = vunpack.c.l.s4 1934713408
    %v597 = vunpack.c.0.s8 %v596
    %v598 = vlaneseq
    %v599 = vshrl.u32 %v598, 7
    %v600 = vsub.s32 %v597, %v599
    %v601 = vrot.slane %v593, %v600
    %v603 = vunpack.c.l.s4 1934713408
    %v604 = vunpack.c.0.s8 %v603
    %v605 = vlaneseq
    %v606 = vshrl.u32 %v605, 7
    %v607 = vsub.s32 %v604, %v606
    %v608 = vrot.slane %v594, %v607
    %v609 = vcombine.high %v585, 0.0
    %v610 = vcombine.high %v592, 0.0
    %v611 = vcombine.high %v601, 0.0
    %v612 = vcombine.high %v608, 0.0
    %v613 = vcombine.low %v35, %v122
    %v614 = vcombine.high %v35, %v122
    %v616 = vunpack.c.l.s4 1983009808
    %v617 = vunpack.c.0.s8 %v616
    %v618 = vlaneseq
    %v619 = vshrl.u32 %v618, 7
    %v620 = vsub.s32 %v617, %v619
    %v621 = vrot.slane %v613, %v620
    %v623 = vunpack.c.l.s4 1983009808
    %v624 = vunpack.c.0.s8 %v623
    %v625 = vlaneseq
    %v626 = vshrl.u32 %v625, 7
    %v627 = vsub.s32 %v624, %v626
    %v628 = vrot.slane %v614, %v627
    %v629 = vcombine.low %v74, %v170
    %v630 = vcombine.high %v74, %v170
    %v632 = vunpack.c.l.s4 1983009808
    %v633 = vunpack.c.0.s8 %v632
    %v634 = vlaneseq
    %v635 = vshrl.u32 %v634, 7
    %v636 = vsub.s32 %v633, %v635
    %v637 = vrot.slane %v629, %v636
    %v639 = vunpack.c.l.s4 1983009808
    %v640 = vunpack.c.0.s8 %v639
    %v641 = vlaneseq
    %v642 = vshrl.u32 %v641, 7
    %v643 = vsub.s32 %v640, %v642
    %v644 = vrot.slane %v630, %v643
    %v645 = vcombine.low %v621, %v637
    %v646 = vcombine.high %v621, %v637
    %v648 = vunpack.c.l.s4 1934713408
    %v649 = vunpack.c.0.s8 %v648
    %v650 = vlaneseq
    %v651 = vshrl.u32 %v650, 7
    %v652 = vsub.s32 %v649, %v651
    %v653 = vrot.slane %v645, %v652
    %v655 = vunpack.c.l.s4 1934713408
    %v656 = vunpack.c.0.s8 %v655
    %v657 = vlaneseq
    %v658 = vshrl.u32 %v657, 7
    %v659 = vsub.s32 %v656, %v658
    %v660 = vrot.slane %v646, %v659
    %v661 = vcombine.low %v628, %v644
    %v662 = vcombine.high %v628, %v644
    %v664 = vunpack.c.l.s4 1934713408
    %v665 = vunpack.c.0.s8 %v664
    %v666 = vlaneseq
    %v667 = vshrl.u32 %v666, 7
    %v668 = vsub.s32 %v665, %v667
    %v669 = vrot.slane %v661, %v668
    %v671 = vunpack.c.l.s4 1934713408
    %v672 = vunpack.c.0.s8 %v671
    %v673 = vlaneseq
    %v674 = vshrl.u32 %v673, 7
    %v675 = vsub.s32 %v672, %v674
    %v676 = vrot.slane %v662, %v675
    %v677 = vcombine.high %v653, 0.0
    %v678 = vcombine.high %v660, 0.0
    %v679 = vcombine.high %v669, 0.0
    %v680 = vcombine.high %v676, 0.0
    %v681 = vcombine.low %v36, %v124
    %v682 = vcombine.high %v36, %v124
    %v684 = vunpack.c.l.s4 1983009808
    %v685 = vunpack.c.0.s8 %v684
    %v686 = vlaneseq
    %v687 = vshrl.u32 %v686, 7
    %v688 = vsub.s32 %v685, %v687
    %v689 = vrot.slane %v681, %v688
    %v691 = vunpack.c.l.s4 1983009808
    %v692 = vunpack.c.0.s8 %v691
    %v693 = vlaneseq
    %v694 = vshrl.u32 %v693, 7
    %v695 = vsub.s32 %v692, %v694
    %v696 = vrot.slane %v682, %v695
    %v697 = vcombine.low %v76, %v172
    %v698 = vcombine.high %v76, %v172
    %v700 = vunpack.c.l.s4 1983009808
    %v701 = vunpack.c.0.s8 %v700
    %v702 = vlaneseq
    %v703 = vshrl.u32 %v702, 7
    %v704 = vsub.s32 %v701, %v703
    %v705 = vrot.slane %v697, %v704
    %v707 = vunpack.c.l.s4 1983009808
    %v708 = vunpack.c.0.s8 %v707
    %v709 = vlaneseq
    %v710 = vshrl.u32 %v709, 7
    %v711 = vsub.s32 %v708, %v710
    %v712 = vrot.slane %v698, %v711
    %v713 = vcombine.low %v689, %v705
    %v714 = vcombine.high %v689, %v705
    %v716 = vunpack.c.l.s4 1934713408
    %v717 = vunpack.c.0.s8 %v716
    %v718 = vlaneseq
    %v719 = vshrl.u32 %v718, 7
    %v720 = vsub.s32 %v717, %v719
    %v721 = vrot.slane %v713, %v720
    %v723 = vunpack.c.l.s4 1934713408
    %v724 = vunpack.c.0.s8 %v723
    %v725 = vlaneseq
    %v726 = vshrl.u32 %v725, 7
    %v727 = vsub.s32 %v724, %v726
    %v728 = vrot.slane %v714, %v727
    %v729 = vcombine.low %v696, %v712
    %v730 = vcombine.high %v696, %v712
    %v732 = vunpack.c.l.s4 1934713408
    %v733 = vunpack.c.0.s8 %v732
    %v734 = vlaneseq
    %v735 = vshrl.u32 %v734, 7
    %v736 = vsub.s32 %v733, %v735
    %v737 = vrot.slane %v729, %v736
    %v739 = vunpack.c.l.s4 1934713408
    %v740 = vunpack.c.0.s8 %v739
    %v741 = vlaneseq
    %v742 = vshrl.u32 %v741, 7
    %v743 = vsub.s32 %v740, %v742
    %v744 = vrot.slane %v730, %v743
    %v745 = vcombine.high %v721, 0.0
    %v746 = vcombine.high %v728, 0.0
    %v747 = vcombine.high %v737, 0.0
    %v748 = vcombine.high %v744, 0.0
    %v749 = vcombine.low %v37, %v126
    %v750 = vcombine.high %v37, %v126
    %v752 = vunpack.c.l.s4 1983009808
    %v753 = vunpack.c.0.s8 %v752
    %v754 = vlaneseq
    %v755 = vshrl.u32 %v754, 7
    %v756 = vsub.s32 %v753, %v755
    %v757 = vrot.slane %v749, %v756
    %v759 = vunpack.c.l.s4 1983009808
    %v760 = vunpack.c.0.s8 %v759
    %v761 = vlaneseq
    %v762 = vshrl.u32 %v761, 7
    %v763 = vsub.s32 %v760, %v762
    %v764 = vrot.slane %v750, %v763
    %v765 = vcombine.low %v78, %v174
    %v766 = vcombine.high %v78, %v174
    %v768 = vunpack.c.l.s4 1983009808
    %v769 = vunpack.c.0.s8 %v768
    %v770 = vlaneseq
    %v771 = vshrl.u32 %v770, 7
    %v772 = vsub.s32 %v769, %v771
    %v773 = vrot.slane %v765, %v772
    %v775 = vunpack.c.l.s4 1983009808
    %v776 = vunpack.c.0.s8 %v775
    %v777 = vlaneseq
    %v778 = vshrl.u32 %v777, 7
    %v779 = vsub.s32 %v776, %v778
    %v780 = vrot.slane %v766, %v779
    %v781 = vcombine.low %v757, %v773
    %v782 = vcombine.high %v757, %v773
    %v784 = vunpack.c.l.s4 1934713408
    %v785 = vunpack.c.0.s8 %v784
    %v786 = vlaneseq
    %v787 = vshrl.u32 %v786, 7
    %v788 = vsub.s32 %v785, %v787
    %v789 = vrot.slane %v781, %v788
    %v791 = vunpack.c.l.s4 1934713408
    %v792 = vunpack.c.0.s8 %v791
    %v793 = vlaneseq
    %v794 = vshrl.u32 %v793, 7
    %v795 = vsub.s32 %v792, %v794
    %v796 = vrot.slane %v782, %v795
    %v797 = vcombine.low %v764, %v780
    %v798 = vcombine.high %v764, %v780
    %v800 = vunpack.c.l.s4 1934713408
    %v801 = vunpack.c.0.s8 %v800
    %v802 = vlaneseq
    %v803 = vshrl.u32 %v802, 7
    %v804 = vsub.s32 %v801, %v803
    %v805 = vrot.slane %v797, %v804
    %v807 = vunpack.c.l.s4 1934713408
    %v808 = vunpack.c.0.s8 %v807
    %v809 = vlaneseq
    %v810 = vshrl.u32 %v809, 7
    %v811 = vsub.s32 %v808, %v810
    %v812 = vrot.slane %v798, %v811
    %v813 = vcombine.high %v789, 0.0
    %v814 = vcombine.high %v796, 0.0
    %v815 = vcombine.high %v805, 0.0
    %v816 = vcombine.high %v812, 0.0
    %v817 = vcombine.low %v38, %v128
    %v818 = vcombine.high %v38, %v128
    %v820 = vunpack.c.l.s4 1983009808
    %v821 = vunpack.c.0.s8 %v820
    %v822 = vlaneseq
    %v823 = vshrl.u32 %v822, 7
    %v824 = vsub.s32 %v821, %v823
    %v825 = vrot.slane %v817, %v824
    %v827 = vunpack.c.l.s4 1983009808
    %v828 = vunpack.c.0.s8 %v827
    %v829 = vlaneseq
    %v830 = vshrl.u32 %v829, 7
    %v831 = vsub.s32 %v828, %v830
    %v832 = vrot.slane %v818, %v831
    %v833 = vcombine.low %v80, %v176
    %v834 = vcombine.high %v80, %v176
    %v836 = vunpack.c.l.s4 1983009808
    %v837 = vunpack.c.0.s8 %v836
    %v838 = vlaneseq
    %v839 = vshrl.u32 %v838, 7
    %v840 = vsub.s32 %v837, %v839
    %v841 = vrot.slane %v833, %v840
    %v843 = vunpack.c.l.s4 1983009808
    %v844 = vunpack.c.0.s8 %v843
    %v845 = vlaneseq
    %v846 = vshrl.u32 %v845, 7
    %v847 = vsub.s32 %v844, %v846
    %v848 = vrot.slane %v834, %v847
    %v849 = vcombine.low %v825, %v841
    %v850 = vcombine.high %v825, %v841
    %v852 = vunpack.c.l.s4 1934713408
    %v853 = vunpack.c.0.s8 %v852
    %v854 = vlaneseq
    %v855 = vshrl.u32 %v854, 7
    %v856 = vsub.s32 %v853, %v855
    %v857 = vrot.slane %v849, %v856
    %v859 = vunpack.c.l.s4 1934713408
    %v860 = vunpack.c.0.s8 %v859
    %v861 = vlaneseq
    %v862 = vshrl.u32 %v861, 7
    %v863 = vsub.s32 %v860, %v862
    %v864 = vrot.slane %v850, %v863
    %v865 = vcombine.low %v832, %v848
    %v866 = vcombine.high %v832, %v848
    %v868 = vunpack.c.l.s4 1934713408
    %v869 = vunpack.c.0.s8 %v868
    %v870 = vlaneseq
    %v871 = vshrl.u32 %v870, 7
    %v872 = vsub.s32 %v869, %v871
    %v873 = vrot.slane %v865, %v872
    %v875 = vunpack.c.l.s4 1934713408
    %v876 = vunpack.c.0.s8 %v875
    %v877 = vlaneseq
    %v878 = vshrl.u32 %v877, 7
    %v879 = vsub.s32 %v876, %v878
    %v880 = vrot.slane %v866, %v879
    %v881 = vcombine.high %v857, 0.0
    %v882 = vcombine.high %v864, 0.0
    %v883 = vcombine.high %v873, 0.0
    %v884 = vcombine.high %v880, 0.0
    %v885 = vcombine.low %v39, %v130
    %v886 = vcombine.high %v39, %v130
    %v888 = vunpack.c.l.s4 1983009808
    %v889 = vunpack.c.0.s8 %v888
    %v890 = vlaneseq
    %v891 = vshrl.u32 %v890, 7
    %v892 = vsub.s32 %v889, %v891
    %v893 = vrot.slane %v885, %v892
    %v895 = vunpack.c.l.s4 1983009808
    %v896 = vunpack.c.0.s8 %v895
    %v897 = vlaneseq
    %v898 = vshrl.u32 %v897, 7
    %v899 = vsub.s32 %v896, %v898
    %v900 = vrot.slane %v886, %v899
    %v901 = vcombine.low %v82, %v178
    %v902 = vcombine.high %v82, %v178
    %v904 = vunpack.c.l.s4 1983009808
    %v905 = vunpack.c.0.s8 %v904
    %v906 = vlaneseq
    %v907 = vshrl.u32 %v906, 7
    %v908 = vsub.s32 %v905, %v907
    %v909 = vrot.slane %v901, %v908
    %v911 = vunpack.c.l.s4 1983009808
    %v912 = vunpack.c.0.s8 %v911
    %v913 = vlaneseq
    %v914 = vshrl.u32 %v913, 7
    %v915 = vsub.s32 %v912, %v914
    %v916 = vrot.slane %v902, %v915
    %v917 = vcombine.low %v893, %v909
    %v918 = vcombine.high %v893, %v909
    %v920 = vunpack.c.l.s4 1934713408
    %v921 = vunpack.c.0.s8 %v920
    %v922 = vlaneseq
    %v923 = vshrl.u32 %v922, 7
    %v924 = vsub.s32 %v921, %v923
    %v925 = vrot.slane %v917, %v924
    %v927 = vunpack.c.l.s4 1934713408
    %v928 = vunpack.c.0.s8 %v927
    %v929 = vlaneseq
    %v930 = vshrl.u32 %v929, 7
    %v931 = vsub.s32 %v928, %v930
    %v932 = vrot.slane %v918, %v931
    %v933 = vcombine.low %v900, %v916
    %v934 = vcombine.high %v900, %v916
    %v936 = vunpack.c.l.s4 1934713408
    %v937 = vunpack.c.0.s8 %v936
    %v938 = vlaneseq
    %v939 = vshrl.u32 %v938, 7
    %v940 = vsub.s32 %v937, %v939
    %v941 = vrot.slane %v933, %v940
    %v943 = vunpack.c.l.s4 1934713408
    %v944 = vunpack.c.0.s8 %v943
    %v945 = vlaneseq
    %v946 = vshrl.u32 %v945, 7
    %v947 = vsub.s32 %v944, %v946
    %v948 = vrot.slane %v934, %v947
    %v949 = vcombine.high %v925, 0.0
    %v950 = vcombine.high %v932, 0.0
    %v951 = vcombine.high %v941, 0.0
    %v952 = vcombine.high %v948, 0.0
    %v953 = vcombine.low %v40, %v132
    %v954 = vcombine.high %v40, %v132
    %v956 = vunpack.c.l.s4 1983009808
    %v957 = vunpack.c.0.s8 %v956
    %v958 = vlaneseq
    %v959 = vshrl.u32 %v958, 7
    %v960 = vsub.s32 %v957, %v959
    %v961 = vrot.slane %v953, %v960
    %v963 = vunpack.c.l.s4 1983009808
    %v964 = vunpack.c.0.s8 %v963
    %v965 = vlaneseq
    %v966 = vshrl.u32 %v965, 7
    %v967 = vsub.s32 %v964, %v966
    %v968 = vrot.slane %v954, %v967
    %v969 = vcombine.low %v84, %v180
    %v970 = vcombine.high %v84, %v180
    %v972 = vunpack.c.l.s4 1983009808
    %v973 = vunpack.c.0.s8 %v972
    %v974 = vlaneseq
    %v975 = vshrl.u32 %v974, 7
    %v976 = vsub.s32 %v973, %v975
    %v977 = vrot.slane %v969, %v976
    %v979 = vunpack.c.l.s4 1983009808
    %v980 = vunpack.c.0.s8 %v979
    %v981 = vlaneseq
    %v982 = vshrl.u32 %v981, 7
    %v983 = vsub.s32 %v980, %v982
    %v984 = vrot.slane %v970, %v983
    %v985 = vcombine.low %v961, %v977
    %v986 = vcombine.high %v961, %v977
    %v988 = vunpack.c.l.s4 1934713408
    %v989 = vunpack.c.0.s8 %v988
    %v990 = vlaneseq
    %v991 = vshrl.u32 %v990, 7
    %v992 = vsub.s32 %v989, %v991
    %v993 = vrot.slane %v985, %v992
    %v995 = vunpack.c.l.s4 1934713408
    %v996 = vunpack.c.0.s8 %v995
    %v997 = vlaneseq
    %v998 = vshrl.u32 %v997, 7
    %v999 = vsub.s32 %v996, %v998
    %v1000 = vrot.slane %v986, %v999
    %v1001 = vcombine.low %v968, %v984
    %v1002 = vcombine.high %v968, %v984
    %v1004 = vunpack.c.l.s4 1934713408
    %v1005 = vunpack.c.0.s8 %v1004
    %v1006 = vlaneseq
    %v1007 = vshrl.u32 %v1006, 7
    %v1008 = vsub.s32 %v1005, %v1007
    %v1009 = vrot.slane %v1001, %v1008
    %v1011 = vunpack.c.l.s4 1934713408
    %v1012 = vunpack.c.0.s8 %v1011
    %v1013 = vlaneseq
    %v1014 = vshrl.u32 %v1013, 7
    %v1015 = vsub.s32 %v1012, %v1014
    %v1016 = vrot.slane %v1002, %v1015
    %v1017 = vcombine.high %v993, 0.0
    %v1018 = vcombine.high %v1000, 0.0
    %v1019 = vcombine.high %v1009, 0.0
    %v1020 = vcombine.high %v1016, 0.0
    %v1021 = vcombine.low %v41, %v134
    %v1022 = vcombine.high %v41, %v134
    %v1024 = vunpack.c.l.s4 1983009808
    %v1025 = vunpack.c.0.s8 %v1024
    %v1026 = vlaneseq
    %v1027 = vshrl.u32 %v1026, 7
    %v1028 = vsub.s32 %v1025, %v1027
    %v1029 = vrot.slane %v1021, %v1028
    %v1031 = vunpack.c.l.s4 1983009808
    %v1032 = vunpack.c.0.s8 %v1031
    %v1033 = vlaneseq
    %v1034 = vshrl.u32 %v1033, 7
    %v1035 = vsub.s32 %v1032, %v1034
    %v1036 = vrot.slane %v1022, %v1035
    %v1037 = vcombine.low %v86, %v182
    %v1038 = vcombine.high %v86, %v182
    %v1040 = vunpack.c.l.s4 1983009808
    %v1041 = vunpack.c.0.s8 %v1040
    %v1042 = vlaneseq
    %v1043 = vshrl.u32 %v1042, 7
    %v1044 = vsub.s32 %v1041, %v1043
    %v1045 = vrot.slane %v1037, %v1044
    %v1047 = vunpack.c.l.s4 1983009808
    %v1048 = vunpack.c.0.s8 %v1047
    %v1049 = vlaneseq
    %v1050 = vshrl.u32 %v1049, 7
    %v1051 = vsub.s32 %v1048, %v1050
    %v1052 = vrot.slane %v1038, %v1051
    %v1053 = vcombine.low %v1029, %v1045
    %v1054 = vcombine.high %v1029, %v1045
    %v1056 = vunpack.c.l.s4 1934713408
    %v1057 = vunpack.c.0.s8 %v1056
    %v1058 = vlaneseq
    %v1059 = vshrl.u32 %v1058, 7
    %v1060 = vsub.s32 %v1057, %v1059
    %v1061 = vrot.slane %v1053, %v1060
    %v1063 = vunpack.c.l.s4 1934713408
    %v1064 = vunpack.c.0.s8 %v1063
    %v1065 = vlaneseq
    %v1066 = vshrl.u32 %v1065, 7
    %v1067 = vsub.s32 %v1064, %v1066
    %v1068 = vrot.slane %v1054, %v1067
    %v1069 = vcombine.low %v1036, %v1052
    %v1070 = vcombine.high %v1036, %v1052
    %v1072 = vunpack.c.l.s4 1934713408
    %v1073 = vunpack.c.0.s8 %v1072
    %v1074 = vlaneseq
    %v1075 = vshrl.u32 %v1074, 7
    %v1076 = vsub.s32 %v1073, %v1075
    %v1077 = vrot.slane %v1069, %v1076
    %v1079 = vunpack.c.l.s4 1934713408
    %v1080 = vunpack.c.0.s8 %v1079
    %v1081 = vlaneseq
    %v1082 = vshrl.u32 %v1081, 7
    %v1083 = vsub.s32 %v1080, %v1082
    %v1084 = vrot.slane %v1070, %v1083
    %v1085 = vcombine.high %v1061, 0.0
    %v1086 = vcombine.high %v1068, 0.0
    %v1087 = vcombine.high %v1077, 0.0
    %v1088 = vcombine.high %v1084, 0.0
    %v1089 = vcombine.low %v42, %v136
    %v1090 = vcombine.high %v42, %v136
    %v1092 = vunpack.c.l.s4 1983009808
    %v1093 = vunpack.c.0.s8 %v1092
    %v1094 = vlaneseq
    %v1095 = vshrl.u32 %v1094, 7
    %v1096 = vsub.s32 %v1093, %v1095
    %v1097 = vrot.slane %v1089, %v1096
    %v1099 = vunpack.c.l.s4 1983009808
    %v1100 = vunpack.c.0.s8 %v1099
    %v1101 = vlaneseq
    %v1102 = vshrl.u32 %v1101, 7
    %v1103 = vsub.s32 %v1100, %v1102
    %v1104 = vrot.slane %v1090, %v1103
    %v1105 = vcombine.low %v88, %v184
    %v1106 = vcombine.high %v88, %v184
    %v1108 = vunpack.c.l.s4 1983009808
    %v1109 = vunpack.c.0.s8 %v1108
    %v1110 = vlaneseq
    %v1111 = vshrl.u32 %v1110, 7
    %v1112 = vsub.s32 %v1109, %v1111
    %v1113 = vrot.slane %v1105, %v1112
    %v1115 = vunpack.c.l.s4 1983009808
    %v1116 = vunpack.c.0.s8 %v1115
    %v1117 = vlaneseq
    %v1118 = vshrl.u32 %v1117, 7
    %v1119 = vsub.s32 %v1116, %v1118
    %v1120 = vrot.slane %v1106, %v1119
    %v1121 = vcombine.low %v1097, %v1113
    %v1122 = vcombine.high %v1097, %v1113
    %v1124 = vunpack.c.l.s4 1934713408
    %v1125 = vunpack.c.0.s8 %v1124
    %v1126 = vlaneseq
    %v1127 = vshrl.u32 %v1126, 7
    %v1128 = vsub.s32 %v1125, %v1127
    %v1129 = vrot.slane %v1121, %v1128
    %v1131 = vunpack.c.l.s4 1934713408
    %v1132 = vunpack.c.0.s8 %v1131
    %v1133 = vlaneseq
    %v1134 = vshrl.u32 %v1133, 7
    %v1135 = vsub.s32 %v1132, %v1134
    %v1136 = vrot.slane %v1122, %v1135
    %v1137 = vcombine.low %v1104, %v1120
    %v1138 = vcombine.high %v1104, %v1120
    %v1140 = vunpack.c.l.s4 1934713408
    %v1141 = vunpack.c.0.s8 %v1140
    %v1142 = vlaneseq
    %v1143 = vshrl.u32 %v1142, 7
    %v1144 = vsub.s32 %v1141, %v1143
    %v1145 = vrot.slane %v1137, %v1144
    %v1147 = vunpack.c.l.s4 1934713408
    %v1148 = vunpack.c.0.s8 %v1147
    %v1149 = vlaneseq
    %v1150 = vshrl.u32 %v1149, 7
    %v1151 = vsub.s32 %v1148, %v1150
    %v1152 = vrot.slane %v1138, %v1151
    %v1153 = vcombine.high %v1129, 0.0
    %v1154 = vcombine.high %v1136, 0.0
    %v1155 = vcombine.high %v1145, 0.0
    %v1156 = vcombine.high %v1152, 0.0
    %v1157 = vcombine.low %v43, %v138
    %v1158 = vcombine.high %v43, %v138
    %v1160 = vunpack.c.l.s4 1983009808
    %v1161 = vunpack.c.0.s8 %v1160
    %v1162 = vlaneseq
    %v1163 = vshrl.u32 %v1162, 7
    %v1164 = vsub.s32 %v1161, %v1163
    %v1165 = vrot.slane %v1157, %v1164
    %v1167 = vunpack.c.l.s4 1983009808
    %v1168 = vunpack.c.0.s8 %v1167
    %v1169 = vlaneseq
    %v1170 = vshrl.u32 %v1169, 7
    %v1171 = vsub.s32 %v1168, %v1170
    %v1172 = vrot.slane %v1158, %v1171
    %v1173 = vcombine.low %v90, %v186
    %v1174 = vcombine.high %v90, %v186
    %v1176 = vunpack.c.l.s4 1983009808
    %v1177 = vunpack.c.0.s8 %v1176
    %v1178 = vlaneseq
    %v1179 = vshrl.u32 %v1178, 7
    %v1180 = vsub.s32 %v1177, %v1179
    %v1181 = vrot.slane %v1173, %v1180
    %v1183 = vunpack.c.l.s4 1983009808
    %v1184 = vunpack.c.0.s8 %v1183
    %v1185 = vlaneseq
    %v1186 = vshrl.u32 %v1185, 7
    %v1187 = vsub.s32 %v1184, %v1186
    %v1188 = vrot.slane %v1174, %v1187
    %v1189 = vcombine.low %v1165, %v1181
    %v1190 = vcombine.high %v1165, %v1181
    %v1192 = vunpack.c.l.s4 1934713408
    %v1193 = vunpack.c.0.s8 %v1192
    %v1194 = vlaneseq
    %v1195 = vshrl.u32 %v1194, 7
    %v1196 = vsub.s32 %v1193, %v1195
    %v1197 = vrot.slane %v1189, %v1196
    %v1199 = vunpack.c.l.s4 1934713408
    %v1200 = vunpack.c.0.s8 %v1199
    %v1201 = vlaneseq
    %v1202 = vshrl.u32 %v1201, 7
    %v1203 = vsub.s32 %v1200, %v1202
    %v1204 = vrot.slane %v1190, %v1203
    %v1205 = vcombine.low %v1172, %v1188
    %v1206 = vcombine.high %v1172, %v1188
    %v1208 = vunpack.c.l.s4 1934713408
    %v1209 = vunpack.c.0.s8 %v1208
    %v1210 = vlaneseq
    %v1211 = vshrl.u32 %v1210, 7
    %v1212 = vsub.s32 %v1209, %v1211
    %v1213 = vrot.slane %v1205, %v1212
    %v1215 = vunpack.c.l.s4 1934713408
    %v1216 = vunpack.c.0.s8 %v1215
    %v1217 = vlaneseq
    %v1218 = vshrl.u32 %v1217, 7
    %v1219 = vsub.s32 %v1216, %v1218
    %v1220 = vrot.slane %v1206, %v1219
    %v1221 = vcombine.high %v1197, 0.0
    %v1222 = vcombine.high %v1204, 0.0
    %v1223 = vcombine.high %v1213, 0.0
    %v1224 = vcombine.high %v1220, 0.0
    %v1225 = vcombine.low %v44, %v140
    %v1226 = vcombine.high %v44, %v140
    %v1228 = vunpack.c.l.s4 1983009808
    %v1229 = vunpack.c.0.s8 %v1228
    %v1230 = vlaneseq
    %v1231 = vshrl.u32 %v1230, 7
    %v1232 = vsub.s32 %v1229, %v1231
    %v1233 = vrot.slane %v1225, %v1232
    %v1235 = vunpack.c.l.s4 1983009808
    %v1236 = vunpack.c.0.s8 %v1235
    %v1237 = vlaneseq
    %v1238 = vshrl.u32 %v1237, 7
    %v1239 = vsub.s32 %v1236, %v1238
    %v1240 = vrot.slane %v1226, %v1239
    %v1241 = vcombine.low %v92, %v188
    %v1242 = vcombine.high %v92, %v188
    %v1244 = vunpack.c.l.s4 1983009808
    %v1245 = vunpack.c.0.s8 %v1244
    %v1246 = vlaneseq
    %v1247 = vshrl.u32 %v1246, 7
    %v1248 = vsub.s32 %v1245, %v1247
    %v1249 = vrot.slane %v1241, %v1248
    %v1251 = vunpack.c.l.s4 1983009808
    %v1252 = vunpack.c.0.s8 %v1251
    %v1253 = vlaneseq
    %v1254 = vshrl.u32 %v1253, 7
    %v1255 = vsub.s32 %v1252, %v1254
    %v1256 = vrot.slane %v1242, %v1255
    %v1257 = vcombine.low %v1233, %v1249
    %v1258 = vcombine.high %v1233, %v1249
    %v1260 = vunpack.c.l.s4 1934713408
    %v1261 = vunpack.c.0.s8 %v1260
    %v1262 = vlaneseq
    %v1263 = vshrl.u32 %v1262, 7
    %v1264 = vsub.s32 %v1261, %v1263
    %v1265 = vrot.slane %v1257, %v1264
    %v1267 = vunpack.c.l.s4 1934713408
    %v1268 = vunpack.c.0.s8 %v1267
    %v1269 = vlaneseq
    %v1270 = vshrl.u32 %v1269, 7
    %v1271 = vsub.s32 %v1268, %v1270
    %v1272 = vrot.slane %v1258, %v1271
    %v1273 = vcombine.low %v1240, %v1256
    %v1274 = vcombine.high %v1240, %v1256
    %v1276 = vunpack.c.l.s4 1934713408
    %v1277 = vunpack.c.0.s8 %v1276
    %v1278 = vlaneseq
    %v1279 = vshrl.u32 %v1278, 7
    %v1280 = vsub.s32 %v1277, %v1279
    %v1281 = vrot.slane %v1273, %v1280
    %v1283 = vunpack.c.l.s4 1934713408
    %v1284 = vunpack.c.0.s8 %v1283
    %v1285 = vlaneseq
    %v1286 = vshrl.u32 %v1285, 7
    %v1287 = vsub.s32 %v1284, %v1286
    %v1288 = vrot.slane %v1274, %v1287
    %v1289 = vcombine.high %v1265, 0.0
    %v1290 = vcombine.high %v1272, 0.0
    %v1291 = vcombine.high %v1281, 0.0
    %v1292 = vcombine.high %v1288, 0.0
    %vm1293 = vcmask 257024
    %v1294 = vsel %vm1293, %v245, 0.0
    %1295 = vadd.xlane.f32.xlu0 %v1294
    %v1296 = vpop.xlane.xlu0 %1295
    %v1297 = vsel %vm1293, %v269, 0.0
    %1298 = vadd.xlane.f32.xlu0 %v1297
    %v1299 = vpop.xlane.xlu0 %1298
    %v1300 = vsel %vm1293, %v252, 0.0
    %1301 = vadd.xlane.f32.xlu0 %v1300
    %v1302 = vpop.xlane.xlu0 %1301
    %v1303 = vsel %vm1293, %v270, 0.0
    %1304 = vadd.xlane.f32.xlu0 %v1303
    %v1305 = vpop.xlane.xlu0 %1304
    %v1306 = vsel %vm1293, %v261, 0.0
    %1307 = vadd.xlane.f32.xlu0 %v1306
    %v1308 = vpop.xlane.xlu0 %1307
    %v1309 = vsel %vm1293, %v271, 0.0
    %1310 = vadd.xlane.f32.xlu0 %v1309
    %v1311 = vpop.xlane.xlu0 %1310
    %v1312 = vsel %vm1293, %v268, 0.0
    %1313 = vadd.xlane.f32.xlu0 %v1312
    %v1314 = vpop.xlane.xlu0 %1313
    %v1315 = vsel %vm1293, %v272, 0.0
    %1316 = vadd.xlane.f32.xlu0 %v1315
    %v1317 = vpop.xlane.xlu0 %1316
    %v1318 = vsel %vm1293, %v313, 0.0
    %1319 = vadd.xlane.f32.xlu0 %v1318
    %v1320 = vpop.xlane.xlu0 %1319
    %v1321 = vsel %vm1293, %v337, 0.0
    %1322 = vadd.xlane.f32.xlu0 %v1321
    %v1323 = vpop.xlane.xlu0 %1322
    %v1324 = vsel %vm1293, %v320, 0.0
    %1325 = vadd.xlane.f32.xlu0 %v1324
    %v1326 = vpop.xlane.xlu0 %1325
    %v1327 = vsel %vm1293, %v338, 0.0
    %1328 = vadd.xlane.f32.xlu0 %v1327
    %v1329 = vpop.xlane.xlu0 %1328
    %v1330 = vsel %vm1293, %v329, 0.0
    %1331 = vadd.xlane.f32.xlu0 %v1330
    %v1332 = vpop.xlane.xlu0 %1331
    %v1333 = vsel %vm1293, %v339, 0.0
    %1334 = vadd.xlane.f32.xlu0 %v1333
    %v1335 = vpop.xlane.xlu0 %1334
    %v1336 = vsel %vm1293, %v336, 0.0
    %1337 = vadd.xlane.f32.xlu0 %v1336
    %v1338 = vpop.xlane.xlu0 %1337
    %v1339 = vsel %vm1293, %v340, 0.0
    %1340 = vadd.xlane.f32.xlu0 %v1339
    %v1341 = vpop.xlane.xlu0 %1340
    %v1342 = vsel %vm1293, %v381, 0.0
    %1343 = vadd.xlane.f32.xlu0 %v1342
    %v1344 = vpop.xlane.xlu0 %1343
    %v1345 = vsel %vm1293, %v405, 0.0
    %1346 = vadd.xlane.f32.xlu0 %v1345
    %v1347 = vpop.xlane.xlu0 %1346
    %v1348 = vsel %vm1293, %v388, 0.0
    %1349 = vadd.xlane.f32.xlu0 %v1348
    %v1350 = vpop.xlane.xlu0 %1349
    %v1351 = vsel %vm1293, %v406, 0.0
    %1352 = vadd.xlane.f32.xlu0 %v1351
    %v1353 = vpop.xlane.xlu0 %1352
    %v1354 = vsel %vm1293, %v397, 0.0
    %1355 = vadd.xlane.f32.xlu0 %v1354
    %v1356 = vpop.xlane.xlu0 %1355
    %v1357 = vsel %vm1293, %v407, 0.0
    %1358 = vadd.xlane.f32.xlu0 %v1357
    %v1359 = vpop.xlane.xlu0 %1358
    %v1360 = vsel %vm1293, %v404, 0.0
    %1361 = vadd.xlane.f32.xlu0 %v1360
    %v1362 = vpop.xlane.xlu0 %1361
    %v1363 = vsel %vm1293, %v408, 0.0
    %1364 = vadd.xlane.f32.xlu0 %v1363
    %v1365 = vpop.xlane.xlu0 %1364
    %v1366 = vsel %vm1293, %v449, 0.0
    %1367 = vadd.xlane.f32.xlu0 %v1366
    %v1368 = vpop.xlane.xlu0 %1367
    %v1369 = vsel %vm1293, %v473, 0.0
    %1370 = vadd.xlane.f32.xlu0 %v1369
    %v1371 = vpop.xlane.xlu0 %1370
    %v1372 = vsel %vm1293, %v456, 0.0
    %1373 = vadd.xlane.f32.xlu0 %v1372
    %v1374 = vpop.xlane.xlu0 %1373
    %v1375 = vsel %vm1293, %v474, 0.0
    %1376 = vadd.xlane.f32.xlu0 %v1375
    %v1377 = vpop.xlane.xlu0 %1376
    %v1378 = vsel %vm1293, %v465, 0.0
    %1379 = vadd.xlane.f32.xlu0 %v1378
    %v1380 = vpop.xlane.xlu0 %1379
    %v1381 = vsel %vm1293, %v475, 0.0
    %1382 = vadd.xlane.f32.xlu0 %v1381
    %v1383 = vpop.xlane.xlu0 %1382
    %v1384 = vsel %vm1293, %v472, 0.0
    %1385 = vadd.xlane.f32.xlu0 %v1384
    %v1386 = vpop.xlane.xlu0 %1385
    %v1387 = vsel %vm1293, %v476, 0.0
    %1388 = vadd.xlane.f32.xlu0 %v1387
    %v1389 = vpop.xlane.xlu0 %1388
    %v1390 = vsel %vm1293, %v517, 0.0
    %1391 = vadd.xlane.f32.xlu0 %v1390
    %v1392 = vpop.xlane.xlu0 %1391
    %v1393 = vsel %vm1293, %v541, 0.0
    %1394 = vadd.xlane.f32.xlu0 %v1393
    %v1395 = vpop.xlane.xlu0 %1394
    %v1396 = vsel %vm1293, %v524, 0.0
    %1397 = vadd.xlane.f32.xlu0 %v1396
    %v1398 = vpop.xlane.xlu0 %1397
    %v1399 = vsel %vm1293, %v542, 0.0
    %1400 = vadd.xlane.f32.xlu0 %v1399
    %v1401 = vpop.xlane.xlu0 %1400
    %v1402 = vsel %vm1293, %v533, 0.0
    %1403 = vadd.xlane.f32.xlu0 %v1402
    %v1404 = vpop.xlane.xlu0 %1403
    %v1405 = vsel %vm1293, %v543, 0.0
    %1406 = vadd.xlane.f32.xlu0 %v1405
    %v1407 = vpop.xlane.xlu0 %1406
    %v1408 = vsel %vm1293, %v540, 0.0
    %1409 = vadd.xlane.f32.xlu0 %v1408
    %v1410 = vpop.xlane.xlu0 %1409
    %v1411 = vsel %vm1293, %v544, 0.0
    %1412 = vadd.xlane.f32.xlu0 %v1411
    %v1413 = vpop.xlane.xlu0 %1412
    %v1414 = vsel %vm1293, %v585, 0.0
    %1415 = vadd.xlane.f32.xlu0 %v1414
    %v1416 = vpop.xlane.xlu0 %1415
    %v1417 = vsel %vm1293, %v609, 0.0
    %1418 = vadd.xlane.f32.xlu0 %v1417
    %v1419 = vpop.xlane.xlu0 %1418
    %v1420 = vsel %vm1293, %v592, 0.0
    %1421 = vadd.xlane.f32.xlu0 %v1420
    %v1422 = vpop.xlane.xlu0 %1421
    %v1423 = vsel %vm1293, %v610, 0.0
    %1424 = vadd.xlane.f32.xlu0 %v1423
    %v1425 = vpop.xlane.xlu0 %1424
    %v1426 = vsel %vm1293, %v601, 0.0
    %1427 = vadd.xlane.f32.xlu0 %v1426
    %v1428 = vpop.xlane.xlu0 %1427
    %v1429 = vsel %vm1293, %v611, 0.0
    %1430 = vadd.xlane.f32.xlu0 %v1429
    %v1431 = vpop.xlane.xlu0 %1430
    %v1432 = vsel %vm1293, %v608, 0.0
    %1433 = vadd.xlane.f32.xlu0 %v1432
    %v1434 = vpop.xlane.xlu0 %1433
    %v1435 = vsel %vm1293, %v612, 0.0
    %1436 = vadd.xlane.f32.xlu0 %v1435
    %v1437 = vpop.xlane.xlu0 %1436
    %v1438 = vsel %vm1293, %v653, 0.0
    %1439 = vadd.xlane.f32.xlu0 %v1438
    %v1440 = vpop.xlane.xlu0 %1439
    %v1441 = vsel %vm1293, %v677, 0.0
    %1442 = vadd.xlane.f32.xlu0 %v1441
    %v1443 = vpop.xlane.xlu0 %1442
    %v1444 = vsel %vm1293, %v660, 0.0
    %1445 = vadd.xlane.f32.xlu0 %v1444
    %v1446 = vpop.xlane.xlu0 %1445
    %v1447 = vsel %vm1293, %v678, 0.0
    %1448 = vadd.xlane.f32.xlu0 %v1447
    %v1449 = vpop.xlane.xlu0 %1448
    %v1450 = vsel %vm1293, %v669, 0.0
    %1451 = vadd.xlane.f32.xlu0 %v1450
    %v1452 = vpop.xlane.xlu0 %1451
    %v1453 = vsel %vm1293, %v679, 0.0
    %1454 = vadd.xlane.f32.xlu0 %v1453
    %v1455 = vpop.xlane.xlu0 %1454
    %v1456 = vsel %vm1293, %v676, 0.0
    %1457 = vadd.xlane.f32.xlu0 %v1456
    %v1458 = vpop.xlane.xlu0 %1457
    %v1459 = vsel %vm1293, %v680, 0.0
    %1460 = vadd.xlane.f32.xlu0 %v1459
    %v1461 = vpop.xlane.xlu0 %1460
    %v1462 = vsel %vm1293, %v721, 0.0
    %1463 = vadd.xlane.f32.xlu0 %v1462
    %v1464 = vpop.xlane.xlu0 %1463
    %v1465 = vsel %vm1293, %v745, 0.0
    %1466 = vadd.xlane.f32.xlu0 %v1465
    %v1467 = vpop.xlane.xlu0 %1466
    %v1468 = vsel %vm1293, %v728, 0.0
    %1469 = vadd.xlane.f32.xlu0 %v1468
    %v1470 = vpop.xlane.xlu0 %1469
    %v1471 = vsel %vm1293, %v746, 0.0
    %1472 = vadd.xlane.f32.xlu0 %v1471
    %v1473 = vpop.xlane.xlu0 %1472
    %v1474 = vsel %vm1293, %v737, 0.0
    %1475 = vadd.xlane.f32.xlu0 %v1474
    %v1476 = vpop.xlane.xlu0 %1475
    %v1477 = vsel %vm1293, %v747, 0.0
    %1478 = vadd.xlane.f32.xlu0 %v1477
    %v1479 = vpop.xlane.xlu0 %1478
    %v1480 = vsel %vm1293, %v744, 0.0
    %1481 = vadd.xlane.f32.xlu0 %v1480
    %v1482 = vpop.xlane.xlu0 %1481
    %v1483 = vsel %vm1293, %v748, 0.0
    %1484 = vadd.xlane.f32.xlu0 %v1483
    %v1485 = vpop.xlane.xlu0 %1484
    %v1486 = vsel %vm1293, %v789, 0.0
    %1487 = vadd.xlane.f32.xlu0 %v1486
    %v1488 = vpop.xlane.xlu0 %1487
    %v1489 = vsel %vm1293, %v813, 0.0
    %1490 = vadd.xlane.f32.xlu0 %v1489
    %v1491 = vpop.xlane.xlu0 %1490
    %v1492 = vsel %vm1293, %v796, 0.0
    %1493 = vadd.xlane.f32.xlu0 %v1492
    %v1494 = vpop.xlane.xlu0 %1493
    %v1495 = vsel %vm1293, %v814, 0.0
    %1496 = vadd.xlane.f32.xlu0 %v1495
    %v1497 = vpop.xlane.xlu0 %1496
    %v1498 = vsel %vm1293, %v805, 0.0
    %1499 = vadd.xlane.f32.xlu0 %v1498
    %v1500 = vpop.xlane.xlu0 %1499
    %v1501 = vsel %vm1293, %v815, 0.0
    %1502 = vadd.xlane.f32.xlu0 %v1501
    %v1503 = vpop.xlane.xlu0 %1502
    %v1504 = vsel %vm1293, %v812, 0.0
    %1505 = vadd.xlane.f32.xlu0 %v1504
    %v1506 = vpop.xlane.xlu0 %1505
    %v1507 = vsel %vm1293, %v816, 0.0
    %1508 = vadd.xlane.f32.xlu0 %v1507
    %v1509 = vpop.xlane.xlu0 %1508
    %v1510 = vsel %vm1293, %v857, 0.0
    %1511 = vadd.xlane.f32.xlu0 %v1510
    %v1512 = vpop.xlane.xlu0 %1511
    %v1513 = vsel %vm1293, %v881, 0.0
    %1514 = vadd.xlane.f32.xlu0 %v1513
    %v1515 = vpop.xlane.xlu0 %1514
    %v1516 = vsel %vm1293, %v864, 0.0
    %1517 = vadd.xlane.f32.xlu0 %v1516
    %v1518 = vpop.xlane.xlu0 %1517
    %v1519 = vsel %vm1293, %v882, 0.0
    %1520 = vadd.xlane.f32.xlu0 %v1519
    %v1521 = vpop.xlane.xlu0 %1520
    %v1522 = vsel %vm1293, %v873, 0.0
    %1523 = vadd.xlane.f32.xlu0 %v1522
    %v1524 = vpop.xlane.xlu0 %1523
    %v1525 = vsel %vm1293, %v883, 0.0
    %1526 = vadd.xlane.f32.xlu0 %v1525
    %v1527 = vpop.xlane.xlu0 %1526
    %v1528 = vsel %vm1293, %v880, 0.0
    %1529 = vadd.xlane.f32.xlu0 %v1528
    %v1530 = vpop.xlane.xlu0 %1529
    %v1531 = vsel %vm1293, %v884, 0.0
    %1532 = vadd.xlane.f32.xlu0 %v1531
    %v1533 = vpop.xlane.xlu0 %1532
    %v1534 = vsel %vm1293, %v925, 0.0
    %1535 = vadd.xlane.f32.xlu0 %v1534
    %v1536 = vpop.xlane.xlu0 %1535
    %v1537 = vsel %vm1293, %v949, 0.0
    %1538 = vadd.xlane.f32.xlu0 %v1537
    %v1539 = vpop.xlane.xlu0 %1538
    %v1540 = vsel %vm1293, %v932, 0.0
    %1541 = vadd.xlane.f32.xlu0 %v1540
    %v1542 = vpop.xlane.xlu0 %1541
    %v1543 = vsel %vm1293, %v950, 0.0
    %1544 = vadd.xlane.f32.xlu0 %v1543
    %v1545 = vpop.xlane.xlu0 %1544
    %v1546 = vsel %vm1293, %v941, 0.0
    %1547 = vadd.xlane.f32.xlu0 %v1546
    %v1548 = vpop.xlane.xlu0 %1547
    %v1549 = vsel %vm1293, %v951, 0.0
    %1550 = vadd.xlane.f32.xlu0 %v1549
    %v1551 = vpop.xlane.xlu0 %1550
    %v1552 = vsel %vm1293, %v948, 0.0
    %1553 = vadd.xlane.f32.xlu0 %v1552
    %v1554 = vpop.xlane.xlu0 %1553
    %v1555 = vsel %vm1293, %v952, 0.0
    %1556 = vadd.xlane.f32.xlu0 %v1555
    %v1557 = vpop.xlane.xlu0 %1556
    %v1558 = vsel %vm1293, %v993, 0.0
    %1559 = vadd.xlane.f32.xlu0 %v1558
    %v1560 = vpop.xlane.xlu0 %1559
    %v1561 = vsel %vm1293, %v1017, 0.0
    %1562 = vadd.xlane.f32.xlu0 %v1561
    %v1563 = vpop.xlane.xlu0 %1562
    %v1564 = vsel %vm1293, %v1000, 0.0
    %1565 = vadd.xlane.f32.xlu0 %v1564
    %v1566 = vpop.xlane.xlu0 %1565
    %v1567 = vsel %vm1293, %v1018, 0.0
    %1568 = vadd.xlane.f32.xlu0 %v1567
    %v1569 = vpop.xlane.xlu0 %1568
    %v1570 = vsel %vm1293, %v1009, 0.0
    %1571 = vadd.xlane.f32.xlu0 %v1570
    %v1572 = vpop.xlane.xlu0 %1571
    %v1573 = vsel %vm1293, %v1019, 0.0
    %1574 = vadd.xlane.f32.xlu0 %v1573
    %v1575 = vpop.xlane.xlu0 %1574
    %v1576 = vsel %vm1293, %v1016, 0.0
    %1577 = vadd.xlane.f32.xlu0 %v1576
    %v1578 = vpop.xlane.xlu0 %1577
    %v1579 = vsel %vm1293, %v1020, 0.0
    %1580 = vadd.xlane.f32.xlu0 %v1579
    %v1581 = vpop.xlane.xlu0 %1580
    %v1582 = vsel %vm1293, %v1061, 0.0
    %1583 = vadd.xlane.f32.xlu0 %v1582
    %v1584 = vpop.xlane.xlu0 %1583
    %v1585 = vsel %vm1293, %v1085, 0.0
    %1586 = vadd.xlane.f32.xlu0 %v1585
    %v1587 = vpop.xlane.xlu0 %1586
    %v1588 = vsel %vm1293, %v1068, 0.0
    %1589 = vadd.xlane.f32.xlu0 %v1588
    %v1590 = vpop.xlane.xlu0 %1589
    %v1591 = vsel %vm1293, %v1086, 0.0
    %1592 = vadd.xlane.f32.xlu0 %v1591
    %v1593 = vpop.xlane.xlu0 %1592
    %v1594 = vsel %vm1293, %v1077, 0.0
    %1595 = vadd.xlane.f32.xlu0 %v1594
    %v1596 = vpop.xlane.xlu0 %1595
    %v1597 = vsel %vm1293, %v1087, 0.0
    %1598 = vadd.xlane.f32.xlu0 %v1597
    %v1599 = vpop.xlane.xlu0 %1598
    %v1600 = vsel %vm1293, %v1084, 0.0
    %1601 = vadd.xlane.f32.xlu0 %v1600
    %v1602 = vpop.xlane.xlu0 %1601
    %v1603 = vsel %vm1293, %v1088, 0.0
    %1604 = vadd.xlane.f32.xlu0 %v1603
    %v1605 = vpop.xlane.xlu0 %1604
    %v1606 = vsel %vm1293, %v1129, 0.0
    %1607 = vadd.xlane.f32.xlu0 %v1606
    %v1608 = vpop.xlane.xlu0 %1607
    %v1609 = vsel %vm1293, %v1153, 0.0
    %1610 = vadd.xlane.f32.xlu0 %v1609
    %v1611 = vpop.xlane.xlu0 %1610
    %v1612 = vsel %vm1293, %v1136, 0.0
    %1613 = vadd.xlane.f32.xlu0 %v1612
    %v1614 = vpop.xlane.xlu0 %1613
    %v1615 = vsel %vm1293, %v1154, 0.0
    %1616 = vadd.xlane.f32.xlu0 %v1615
    %v1617 = vpop.xlane.xlu0 %1616
    %v1618 = vsel %vm1293, %v1145, 0.0
    %1619 = vadd.xlane.f32.xlu0 %v1618
    %v1620 = vpop.xlane.xlu0 %1619
    %v1621 = vsel %vm1293, %v1155, 0.0
    %1622 = vadd.xlane.f32.xlu0 %v1621
    %v1623 = vpop.xlane.xlu0 %1622
    %v1624 = vsel %vm1293, %v1152, 0.0
    %1625 = vadd.xlane.f32.xlu0 %v1624
    %v1626 = vpop.xlane.xlu0 %1625
    %v1627 = vsel %vm1293, %v1156, 0.0
    %1628 = vadd.xlane.f32.xlu0 %v1627
    %v1629 = vpop.xlane.xlu0 %1628
    %v1630 = vsel %vm1293, %v1197, 0.0
    %1631 = vadd.xlane.f32.xlu0 %v1630
    %v1632 = vpop.xlane.xlu0 %1631
    %v1633 = vsel %vm1293, %v1221, 0.0
    %1634 = vadd.xlane.f32.xlu0 %v1633
    %v1635 = vpop.xlane.xlu0 %1634
    %v1636 = vsel %vm1293, %v1204, 0.0
    %1637 = vadd.xlane.f32.xlu0 %v1636
    %v1638 = vpop.xlane.xlu0 %1637
    %v1639 = vsel %vm1293, %v1222, 0.0
    %1640 = vadd.xlane.f32.xlu0 %v1639
    %v1641 = vpop.xlane.xlu0 %1640
    %v1642 = vsel %vm1293, %v1213, 0.0
    %1643 = vadd.xlane.f32.xlu0 %v1642
    %v1644 = vpop.xlane.xlu0 %1643
    %v1645 = vsel %vm1293, %v1223, 0.0
    %1646 = vadd.xlane.f32.xlu0 %v1645
    %v1647 = vpop.xlane.xlu0 %1646
    %v1648 = vsel %vm1293, %v1220, 0.0
    %1649 = vadd.xlane.f32.xlu0 %v1648
    %v1650 = vpop.xlane.xlu0 %1649
    %v1651 = vsel %vm1293, %v1224, 0.0
    %1652 = vadd.xlane.f32.xlu0 %v1651
    %v1653 = vpop.xlane.xlu0 %1652
    %v1654 = vsel %vm1293, %v1265, 0.0
    %1655 = vadd.xlane.f32.xlu0 %v1654
    %v1656 = vpop.xlane.xlu0 %1655
    %v1657 = vsel %vm1293, %v1289, 0.0
    %1658 = vadd.xlane.f32.xlu0 %v1657
    %v1659 = vpop.xlane.xlu0 %1658
    %v1660 = vsel %vm1293, %v1272, 0.0
    %1661 = vadd.xlane.f32.xlu0 %v1660
    %v1662 = vpop.xlane.xlu0 %1661
    %v1663 = vsel %vm1293, %v1290, 0.0
    %1664 = vadd.xlane.f32.xlu0 %v1663
    %v1665 = vpop.xlane.xlu0 %1664
    %v1666 = vsel %vm1293, %v1281, 0.0
    %1667 = vadd.xlane.f32.xlu0 %v1666
    %v1668 = vpop.xlane.xlu0 %1667
    %v1669 = vsel %vm1293, %v1291, 0.0
    %1670 = vadd.xlane.f32.xlu0 %v1669
    %v1671 = vpop.xlane.xlu0 %1670
    %v1672 = vsel %vm1293, %v1288, 0.0
    %1673 = vadd.xlane.f32.xlu0 %v1672
    %v1674 = vpop.xlane.xlu0 %1673
    %v1675 = vsel %vm1293, %v1292, 0.0
    %1676 = vadd.xlane.f32.xlu0 %v1675
    %v1677 = vpop.xlane.xlu0 %1676
    %v1678 = vrcp.pop 32.0
    %v1679 = vmul.f32 %v1296, %v1678
    %v1680 = vmul.f32 %v1299, %v1678
    %v1681 = vmul.f32 %v1302, %v1678
    %v1682 = vmul.f32 %v1305, %v1678
    %v1683 = vmul.f32 %v1308, %v1678
    %v1684 = vmul.f32 %v1311, %v1678
    %v1685 = vmul.f32 %v1314, %v1678
    %v1686 = vmul.f32 %v1317, %v1678
    %v1687 = vmul.f32 %v1320, %v1678
    %v1688 = vmul.f32 %v1323, %v1678
    %v1689 = vmul.f32 %v1326, %v1678
    %v1690 = vmul.f32 %v1329, %v1678
    %v1691 = vmul.f32 %v1332, %v1678
    %v1692 = vmul.f32 %v1335, %v1678
    %v1693 = vmul.f32 %v1338, %v1678
    %v1694 = vmul.f32 %v1341, %v1678
    %v1695 = vmul.f32 %v1344, %v1678
    %v1696 = vmul.f32 %v1347, %v1678
    %v1697 = vmul.f32 %v1350, %v1678
    %v1698 = vmul.f32 %v1353, %v1678
    %v1699 = vmul.f32 %v1356, %v1678
    %v1700 = vmul.f32 %v1359, %v1678
    %v1701 = vmul.f32 %v1362, %v1678
    %v1702 = vmul.f32 %v1365, %v1678
    %v1703 = vmul.f32 %v1368, %v1678
    %v1704 = vmul.f32 %v1371, %v1678
    %v1705 = vmul.f32 %v1374, %v1678
    %v1706 = vmul.f32 %v1377, %v1678
    %v1707 = vmul.f32 %v1380, %v1678
    %v1708 = vmul.f32 %v1383, %v1678
    %v1709 = vmul.f32 %v1386, %v1678
    %v1710 = vmul.f32 %v1389, %v1678
    %v1711 = vmul.f32 %v1392, %v1678
    %v1712 = vmul.f32 %v1395, %v1678
    %v1713 = vmul.f32 %v1398, %v1678
    %v1714 = vmul.f32 %v1401, %v1678
    %v1715 = vmul.f32 %v1404, %v1678
    %v1716 = vmul.f32 %v1407, %v1678
    %v1717 = vmul.f32 %v1410, %v1678
    %v1718 = vmul.f32 %v1413, %v1678
    %v1719 = vmul.f32 %v1416, %v1678
    %v1720 = vmul.f32 %v1419, %v1678
    %v1721 = vmul.f32 %v1422, %v1678
    %v1722 = vmul.f32 %v1425, %v1678
    %v1723 = vmul.f32 %v1428, %v1678
    %v1724 = vmul.f32 %v1431, %v1678
    %v1725 = vmul.f32 %v1434, %v1678
    %v1726 = vmul.f32 %v1437, %v1678
    %v1727 = vmul.f32 %v1440, %v1678
    %v1728 = vmul.f32 %v1443, %v1678
    %v1729 = vmul.f32 %v1446, %v1678
    %v1730 = vmul.f32 %v1449, %v1678
    %v1731 = vmul.f32 %v1452, %v1678
    %v1732 = vmul.f32 %v1455, %v1678
    %v1733 = vmul.f32 %v1458, %v1678
    %v1734 = vmul.f32 %v1461, %v1678
    %v1735 = vmul.f32 %v1464, %v1678
    %v1736 = vmul.f32 %v1467, %v1678
    %v1737 = vmul.f32 %v1470, %v1678
    %v1738 = vmul.f32 %v1473, %v1678
    %v1739 = vmul.f32 %v1476, %v1678
    %v1740 = vmul.f32 %v1479, %v1678
    %v1741 = vmul.f32 %v1482, %v1678
    %v1742 = vmul.f32 %v1485, %v1678
    %v1743 = vmul.f32 %v1488, %v1678
    %v1744 = vmul.f32 %v1491, %v1678
    %v1745 = vmul.f32 %v1494, %v1678
    %v1746 = vmul.f32 %v1497, %v1678
    %v1747 = vmul.f32 %v1500, %v1678
    %v1748 = vmul.f32 %v1503, %v1678
    %v1749 = vmul.f32 %v1506, %v1678
    %v1750 = vmul.f32 %v1509, %v1678
    %v1751 = vmul.f32 %v1512, %v1678
    %v1752 = vmul.f32 %v1515, %v1678
    %v1753 = vmul.f32 %v1518, %v1678
    %v1754 = vmul.f32 %v1521, %v1678
    %v1755 = vmul.f32 %v1524, %v1678
    %v1756 = vmul.f32 %v1527, %v1678
    %v1757 = vmul.f32 %v1530, %v1678
    %v1758 = vmul.f32 %v1533, %v1678
    %v1759 = vmul.f32 %v1536, %v1678
    %v1760 = vmul.f32 %v1539, %v1678
    %v1761 = vmul.f32 %v1542, %v1678
    %v1762 = vmul.f32 %v1545, %v1678
    %v1763 = vmul.f32 %v1548, %v1678
    %v1764 = vmul.f32 %v1551, %v1678
    %v1765 = vmul.f32 %v1554, %v1678
    %v1766 = vmul.f32 %v1557, %v1678
    %v1767 = vmul.f32 %v1560, %v1678
    %v1768 = vmul.f32 %v1563, %v1678
    %v1769 = vmul.f32 %v1566, %v1678
    %v1770 = vmul.f32 %v1569, %v1678
    %v1771 = vmul.f32 %v1572, %v1678
    %v1772 = vmul.f32 %v1575, %v1678
    %v1773 = vmul.f32 %v1578, %v1678
    %v1774 = vmul.f32 %v1581, %v1678
    %v1775 = vmul.f32 %v1584, %v1678
    %v1776 = vmul.f32 %v1587, %v1678
    %v1777 = vmul.f32 %v1590, %v1678
    %v1778 = vmul.f32 %v1593, %v1678
    %v1779 = vmul.f32 %v1596, %v1678
    %v1780 = vmul.f32 %v1599, %v1678
    %v1781 = vmul.f32 %v1602, %v1678
    %v1782 = vmul.f32 %v1605, %v1678
    %v1783 = vmul.f32 %v1608, %v1678
    %v1784 = vmul.f32 %v1611, %v1678
    %v1785 = vmul.f32 %v1614, %v1678
    %v1786 = vmul.f32 %v1617, %v1678
    %v1787 = vmul.f32 %v1620, %v1678
    %v1788 = vmul.f32 %v1623, %v1678
    %v1789 = vmul.f32 %v1626, %v1678
    %v1790 = vmul.f32 %v1629, %v1678
    %v1791 = vmul.f32 %v1632, %v1678
    %v1792 = vmul.f32 %v1635, %v1678
    %v1793 = vmul.f32 %v1638, %v1678
    %v1794 = vmul.f32 %v1641, %v1678
    %v1795 = vmul.f32 %v1644, %v1678
    %v1796 = vmul.f32 %v1647, %v1678
    %v1797 = vmul.f32 %v1650, %v1678
    %v1798 = vmul.f32 %v1653, %v1678
    %v1799 = vmul.f32 %v1656, %v1678
    %v1800 = vmul.f32 %v1659, %v1678
    %v1801 = vmul.f32 %v1662, %v1678
    %v1802 = vmul.f32 %v1665, %v1678
    %v1803 = vmul.f32 %v1668, %v1678
    %v1804 = vmul.f32 %v1671, %v1678
    %v1805 = vmul.f32 %v1674, %v1678
    %v1806 = vmul.f32 %v1677, %v1678
    %v1807 = vsub.f32 %v245, %v1679
    %v1808 = vsub.f32 %v269, %v1680
    %v1809 = vsub.f32 %v252, %v1681
    %v1810 = vsub.f32 %v270, %v1682
    %v1811 = vsub.f32 %v261, %v1683
    %v1812 = vsub.f32 %v271, %v1684
    %v1813 = vsub.f32 %v268, %v1685
    %v1814 = vsub.f32 %v272, %v1686
    %v1815 = vsub.f32 %v313, %v1687
    %v1816 = vsub.f32 %v337, %v1688
    %v1817 = vsub.f32 %v320, %v1689
    %v1818 = vsub.f32 %v338, %v1690
    %v1819 = vsub.f32 %v329, %v1691
    %v1820 = vsub.f32 %v339, %v1692
    %v1821 = vsub.f32 %v336, %v1693
    %v1822 = vsub.f32 %v340, %v1694
    %v1823 = vsub.f32 %v381, %v1695
    %v1824 = vsub.f32 %v405, %v1696
    %v1825 = vsub.f32 %v388, %v1697
    %v1826 = vsub.f32 %v406, %v1698
    %v1827 = vsub.f32 %v397, %v1699
    %v1828 = vsub.f32 %v407, %v1700
    %v1829 = vsub.f32 %v404, %v1701
    %v1830 = vsub.f32 %v408, %v1702
    %v1831 = vsub.f32 %v449, %v1703
    %v1832 = vsub.f32 %v473, %v1704
    %v1833 = vsub.f32 %v456, %v1705
    %v1834 = vsub.f32 %v474, %v1706
    %v1835 = vsub.f32 %v465, %v1707
    %v1836 = vsub.f32 %v475, %v1708
    %v1837 = vsub.f32 %v472, %v1709
    %v1838 = vsub.f32 %v476, %v1710
    %v1839 = vsub.f32 %v517, %v1711
    %v1840 = vsub.f32 %v541, %v1712
    %v1841 = vsub.f32 %v524, %v1713
    %v1842 = vsub.f32 %v542, %v1714
    %v1843 = vsub.f32 %v533, %v1715
    %v1844 = vsub.f32 %v543, %v1716
    %v1845 = vsub.f32 %v540, %v1717
    %v1846 = vsub.f32 %v544, %v1718
    %v1847 = vsub.f32 %v585, %v1719
    %v1848 = vsub.f32 %v609, %v1720
    %v1849 = vsub.f32 %v592, %v1721
    %v1850 = vsub.f32 %v610, %v1722
    %v1851 = vsub.f32 %v601, %v1723
    %v1852 = vsub.f32 %v611, %v1724
    %v1853 = vsub.f32 %v608, %v1725
    %v1854 = vsub.f32 %v612, %v1726
    %v1855 = vsub.f32 %v653, %v1727
    %v1856 = vsub.f32 %v677, %v1728
    %v1857 = vsub.f32 %v660, %v1729
    %v1858 = vsub.f32 %v678, %v1730
    %v1859 = vsub.f32 %v669, %v1731
    %v1860 = vsub.f32 %v679, %v1732
    %v1861 = vsub.f32 %v676, %v1733
    %v1862 = vsub.f32 %v680, %v1734
    %v1863 = vsub.f32 %v721, %v1735
    %v1864 = vsub.f32 %v745, %v1736
    %v1865 = vsub.f32 %v728, %v1737
    %v1866 = vsub.f32 %v746, %v1738
    %v1867 = vsub.f32 %v737, %v1739
    %v1868 = vsub.f32 %v747, %v1740
    %v1869 = vsub.f32 %v744, %v1741
    %v1870 = vsub.f32 %v748, %v1742
    %v1871 = vsub.f32 %v789, %v1743
    %v1872 = vsub.f32 %v813, %v1744
    %v1873 = vsub.f32 %v796, %v1745
    %v1874 = vsub.f32 %v814, %v1746
    %v1875 = vsub.f32 %v805, %v1747
    %v1876 = vsub.f32 %v815, %v1748
    %v1877 = vsub.f32 %v812, %v1749
    %v1878 = vsub.f32 %v816, %v1750
    %v1879 = vsub.f32 %v857, %v1751
    %v1880 = vsub.f32 %v881, %v1752
    %v1881 = vsub.f32 %v864, %v1753
    %v1882 = vsub.f32 %v882, %v1754
    %v1883 = vsub.f32 %v873, %v1755
    %v1884 = vsub.f32 %v883, %v1756
    %v1885 = vsub.f32 %v880, %v1757
    %v1886 = vsub.f32 %v884, %v1758
    %v1887 = vsub.f32 %v925, %v1759
    %v1888 = vsub.f32 %v949, %v1760
    %v1889 = vsub.f32 %v932, %v1761
    %v1890 = vsub.f32 %v950, %v1762
    %v1891 = vsub.f32 %v941, %v1763
    %v1892 = vsub.f32 %v951, %v1764
    %v1893 = vsub.f32 %v948, %v1765
    %v1894 = vsub.f32 %v952, %v1766
    %v1895 = vsub.f32 %v993, %v1767
    %v1896 = vsub.f32 %v1017, %v1768
    %v1897 = vsub.f32 %v1000, %v1769
    %v1898 = vsub.f32 %v1018, %v1770
    %v1899 = vsub.f32 %v1009, %v1771
    %v1900 = vsub.f32 %v1019, %v1772
    %v1901 = vsub.f32 %v1016, %v1773
    %v1902 = vsub.f32 %v1020, %v1774
    %v1903 = vsub.f32 %v1061, %v1775
    %v1904 = vsub.f32 %v1085, %v1776
    %v1905 = vsub.f32 %v1068, %v1777
    %v1906 = vsub.f32 %v1086, %v1778
    %v1907 = vsub.f32 %v1077, %v1779
    %v1908 = vsub.f32 %v1087, %v1780
    %v1909 = vsub.f32 %v1084, %v1781
    %v1910 = vsub.f32 %v1088, %v1782
    %v1911 = vsub.f32 %v1129, %v1783
    %v1912 = vsub.f32 %v1153, %v1784
    %v1913 = vsub.f32 %v1136, %v1785
    %v1914 = vsub.f32 %v1154, %v1786
    %v1915 = vsub.f32 %v1145, %v1787
    %v1916 = vsub.f32 %v1155, %v1788
    %v1917 = vsub.f32 %v1152, %v1789
    %v1918 = vsub.f32 %v1156, %v1790
    %v1919 = vsub.f32 %v1197, %v1791
    %v1920 = vsub.f32 %v1221, %v1792
    %v1921 = vsub.f32 %v1204, %v1793
    %v1922 = vsub.f32 %v1222, %v1794
    %v1923 = vsub.f32 %v1213, %v1795
    %v1924 = vsub.f32 %v1223, %v1796
    %v1925 = vsub.f32 %v1220, %v1797
    %v1926 = vsub.f32 %v1224, %v1798
    %v1927 = vsub.f32 %v1265, %v1799
    %v1928 = vsub.f32 %v1289, %v1800
    %v1929 = vsub.f32 %v1272, %v1801
    %v1930 = vsub.f32 %v1290, %v1802
    %v1931 = vsub.f32 %v1281, %v1803
    %v1932 = vsub.f32 %v1291, %v1804
    %v1933 = vsub.f32 %v1288, %v1805
    %v1934 = vsub.f32 %v1292, %v1806
    %v1935 = vmul.f32 %v1807, %v1807
    %v1936 = vmul.f32 %v1808, %v1808
    %v1937 = vmul.f32 %v1809, %v1809
    %v1938 = vmul.f32 %v1810, %v1810
    %v1939 = vmul.f32 %v1811, %v1811
    %v1940 = vmul.f32 %v1812, %v1812
    %v1941 = vmul.f32 %v1813, %v1813
    %v1942 = vmul.f32 %v1814, %v1814
    %v1943 = vmul.f32 %v1815, %v1815
    %v1944 = vmul.f32 %v1816, %v1816
    %v1945 = vmul.f32 %v1817, %v1817
    %v1946 = vmul.f32 %v1818, %v1818
    %v1947 = vmul.f32 %v1819, %v1819
    %v1948 = vmul.f32 %v1820, %v1820
    %v1949 = vmul.f32 %v1821, %v1821
    %v1950 = vmul.f32 %v1822, %v1822
    %v1951 = vmul.f32 %v1823, %v1823
    %v1952 = vmul.f32 %v1824, %v1824
    %v1953 = vmul.f32 %v1825, %v1825
    %v1954 = vmul.f32 %v1826, %v1826
    %v1955 = vmul.f32 %v1827, %v1827
    %v1956 = vmul.f32 %v1828, %v1828
    %v1957 = vmul.f32 %v1829, %v1829
    %v1958 = vmul.f32 %v1830, %v1830
    %v1959 = vmul.f32 %v1831, %v1831
    %v1960 = vmul.f32 %v1832, %v1832
    %v1961 = vmul.f32 %v1833, %v1833
    %v1962 = vmul.f32 %v1834, %v1834
    %v1963 = vmul.f32 %v1835, %v1835
    %v1964 = vmul.f32 %v1836, %v1836
    %v1965 = vmul.f32 %v1837, %v1837
    %v1966 = vmul.f32 %v1838, %v1838
    %v1967 = vmul.f32 %v1839, %v1839
    %v1968 = vmul.f32 %v1840, %v1840
    %v1969 = vmul.f32 %v1841, %v1841
    %v1970 = vmul.f32 %v1842, %v1842
    %v1971 = vmul.f32 %v1843, %v1843
    %v1972 = vmul.f32 %v1844, %v1844
    %v1973 = vmul.f32 %v1845, %v1845
    %v1974 = vmul.f32 %v1846, %v1846
    %v1975 = vmul.f32 %v1847, %v1847
    %v1976 = vmul.f32 %v1848, %v1848
    %v1977 = vmul.f32 %v1849, %v1849
    %v1978 = vmul.f32 %v1850, %v1850
    %v1979 = vmul.f32 %v1851, %v1851
    %v1980 = vmul.f32 %v1852, %v1852
    %v1981 = vmul.f32 %v1853, %v1853
    %v1982 = vmul.f32 %v1854, %v1854
    %v1983 = vmul.f32 %v1855, %v1855
    %v1984 = vmul.f32 %v1856, %v1856
    %v1985 = vmul.f32 %v1857, %v1857
    %v1986 = vmul.f32 %v1858, %v1858
    %v1987 = vmul.f32 %v1859, %v1859
    %v1988 = vmul.f32 %v1860, %v1860
    %v1989 = vmul.f32 %v1861, %v1861
    %v1990 = vmul.f32 %v1862, %v1862
    %v1991 = vmul.f32 %v1863, %v1863
    %v1992 = vmul.f32 %v1864, %v1864
    %v1993 = vmul.f32 %v1865, %v1865
    %v1994 = vmul.f32 %v1866, %v1866
    %v1995 = vmul.f32 %v1867, %v1867
    %v1996 = vmul.f32 %v1868, %v1868
    %v1997 = vmul.f32 %v1869, %v1869
    %v1998 = vmul.f32 %v1870, %v1870
    %v1999 = vmul.f32 %v1871, %v1871
    %v2000 = vmul.f32 %v1872, %v1872
    %v2001 = vmul.f32 %v1873, %v1873
    %v2002 = vmul.f32 %v1874, %v1874
    %v2003 = vmul.f32 %v1875, %v1875
    %v2004 = vmul.f32 %v1876, %v1876
    %v2005 = vmul.f32 %v1877, %v1877
    %v2006 = vmul.f32 %v1878, %v1878
    %v2007 = vmul.f32 %v1879, %v1879
    %v2008 = vmul.f32 %v1880, %v1880
    %v2009 = vmul.f32 %v1881, %v1881
    %v2010 = vmul.f32 %v1882, %v1882
    %v2011 = vmul.f32 %v1883, %v1883
    %v2012 = vmul.f32 %v1884, %v1884
    %v2013 = vmul.f32 %v1885, %v1885
    %v2014 = vmul.f32 %v1886, %v1886
    %v2015 = vmul.f32 %v1887, %v1887
    %v2016 = vmul.f32 %v1888, %v1888
    %v2017 = vmul.f32 %v1889, %v1889
    %v2018 = vmul.f32 %v1890, %v1890
    %v2019 = vmul.f32 %v1891, %v1891
    %v2020 = vmul.f32 %v1892, %v1892
    %v2021 = vmul.f32 %v1893, %v1893
    %v2022 = vmul.f32 %v1894, %v1894
    %v2023 = vmul.f32 %v1895, %v1895
    %v2024 = vmul.f32 %v1896, %v1896
    %v2025 = vmul.f32 %v1897, %v1897
    %v2026 = vmul.f32 %v1898, %v1898
    %v2027 = vmul.f32 %v1899, %v1899
    %v2028 = vmul.f32 %v1900, %v1900
    %v2029 = vmul.f32 %v1901, %v1901
    %v2030 = vmul.f32 %v1902, %v1902
    %v2031 = vmul.f32 %v1903, %v1903
    %v2032 = vmul.f32 %v1904, %v1904
    %v2033 = vmul.f32 %v1905, %v1905
    %v2034 = vmul.f32 %v1906, %v1906
    %v2035 = vmul.f32 %v1907, %v1907
    %v2036 = vmul.f32 %v1908, %v1908
    %v2037 = vmul.f32 %v1909, %v1909
    %v2038 = vmul.f32 %v1910, %v1910
    %v2039 = vmul.f32 %v1911, %v1911
    %v2040 = vmul.f32 %v1912, %v1912
    %v2041 = vmul.f32 %v1913, %v1913
    %v2042 = vmul.f32 %v1914, %v1914
    %v2043 = vmul.f32 %v1915, %v1915
    %v2044 = vmul.f32 %v1916, %v1916
    %v2045 = vmul.f32 %v1917, %v1917
    %v2046 = vmul.f32 %v1918, %v1918
    %v2047 = vmul.f32 %v1919, %v1919
    %v2048 = vmul.f32 %v1920, %v1920
    %v2049 = vmul.f32 %v1921, %v1921
    %v2050 = vmul.f32 %v1922, %v1922
    %v2051 = vmul.f32 %v1923, %v1923
    %v2052 = vmul.f32 %v1924, %v1924
    %v2053 = vmul.f32 %v1925, %v1925
    %v2054 = vmul.f32 %v1926, %v1926
    %v2055 = vmul.f32 %v1927, %v1927
    %v2056 = vmul.f32 %v1928, %v1928
    %v2057 = vmul.f32 %v1929, %v1929
    %v2058 = vmul.f32 %v1930, %v1930
    %v2059 = vmul.f32 %v1931, %v1931
    %v2060 = vmul.f32 %v1932, %v1932
    %v2061 = vmul.f32 %v1933, %v1933
    %v2062 = vmul.f32 %v1934, %v1934
    %v2063 = vsel %vm1293, %v1935, 0.0
    %2064 = vadd.xlane.f32.xlu0 %v2063
    %v2065 = vpop.xlane.xlu0 %2064
    %v2066 = vsel %vm1293, %v1936, 0.0
    %2067 = vadd.xlane.f32.xlu0 %v2066
    %v2068 = vpop.xlane.xlu0 %2067
    %v2069 = vsel %vm1293, %v1937, 0.0
    %2070 = vadd.xlane.f32.xlu0 %v2069
    %v2071 = vpop.xlane.xlu0 %2070
    %v2072 = vsel %vm1293, %v1938, 0.0
    %2073 = vadd.xlane.f32.xlu0 %v2072
    %v2074 = vpop.xlane.xlu0 %2073
    %v2075 = vsel %vm1293, %v1939, 0.0
    %2076 = vadd.xlane.f32.xlu0 %v2075
    %v2077 = vpop.xlane.xlu0 %2076
    %v2078 = vsel %vm1293, %v1940, 0.0
    %2079 = vadd.xlane.f32.xlu0 %v2078
    %v2080 = vpop.xlane.xlu0 %2079
    %v2081 = vsel %vm1293, %v1941, 0.0
    %2082 = vadd.xlane.f32.xlu0 %v2081
    %v2083 = vpop.xlane.xlu0 %2082
    %v2084 = vsel %vm1293, %v1942, 0.0
    %2085 = vadd.xlane.f32.xlu0 %v2084
    %v2086 = vpop.xlane.xlu0 %2085
    %v2087 = vsel %vm1293, %v1943, 0.0
    %2088 = vadd.xlane.f32.xlu0 %v2087
    %v2089 = vpop.xlane.xlu0 %2088
    %v2090 = vsel %vm1293, %v1944, 0.0
    %2091 = vadd.xlane.f32.xlu0 %v2090
    %v2092 = vpop.xlane.xlu0 %2091
    %v2093 = vsel %vm1293, %v1945, 0.0
    %2094 = vadd.xlane.f32.xlu0 %v2093
    %v2095 = vpop.xlane.xlu0 %2094
    %v2096 = vsel %vm1293, %v1946, 0.0
    %2097 = vadd.xlane.f32.xlu0 %v2096
    %v2098 = vpop.xlane.xlu0 %2097
    %v2099 = vsel %vm1293, %v1947, 0.0
    %2100 = vadd.xlane.f32.xlu0 %v2099
    %v2101 = vpop.xlane.xlu0 %2100
    %v2102 = vsel %vm1293, %v1948, 0.0
    %2103 = vadd.xlane.f32.xlu0 %v2102
    %v2104 = vpop.xlane.xlu0 %2103
    %v2105 = vsel %vm1293, %v1949, 0.0
    %2106 = vadd.xlane.f32.xlu0 %v2105
    %v2107 = vpop.xlane.xlu0 %2106
    %v2108 = vsel %vm1293, %v1950, 0.0
    %2109 = vadd.xlane.f32.xlu0 %v2108
    %v2110 = vpop.xlane.xlu0 %2109
    %v2111 = vsel %vm1293, %v1951, 0.0
    %2112 = vadd.xlane.f32.xlu0 %v2111
    %v2113 = vpop.xlane.xlu0 %2112
    %v2114 = vsel %vm1293, %v1952, 0.0
    %2115 = vadd.xlane.f32.xlu0 %v2114
    %v2116 = vpop.xlane.xlu0 %2115
    %v2117 = vsel %vm1293, %v1953, 0.0
    %2118 = vadd.xlane.f32.xlu0 %v2117
    %v2119 = vpop.xlane.xlu0 %2118
    %v2120 = vsel %vm1293, %v1954, 0.0
    %2121 = vadd.xlane.f32.xlu0 %v2120
    %v2122 = vpop.xlane.xlu0 %2121
    %v2123 = vsel %vm1293, %v1955, 0.0
    %2124 = vadd.xlane.f32.xlu0 %v2123
    %v2125 = vpop.xlane.xlu0 %2124
    %v2126 = vsel %vm1293, %v1956, 0.0
    %2127 = vadd.xlane.f32.xlu0 %v2126
    %v2128 = vpop.xlane.xlu0 %2127
    %v2129 = vsel %vm1293, %v1957, 0.0
    %2130 = vadd.xlane.f32.xlu0 %v2129
    %v2131 = vpop.xlane.xlu0 %2130
    %v2132 = vsel %vm1293, %v1958, 0.0
    %2133 = vadd.xlane.f32.xlu0 %v2132
    %v2134 = vpop.xlane.xlu0 %2133
    %v2135 = vsel %vm1293, %v1959, 0.0
    %2136 = vadd.xlane.f32.xlu0 %v2135
    %v2137 = vpop.xlane.xlu0 %2136
    %v2138 = vsel %vm1293, %v1960, 0.0
    %2139 = vadd.xlane.f32.xlu0 %v2138
    %v2140 = vpop.xlane.xlu0 %2139
    %v2141 = vsel %vm1293, %v1961, 0.0
    %2142 = vadd.xlane.f32.xlu0 %v2141
    %v2143 = vpop.xlane.xlu0 %2142
    %v2144 = vsel %vm1293, %v1962, 0.0
    %2145 = vadd.xlane.f32.xlu0 %v2144
    %v2146 = vpop.xlane.xlu0 %2145
    %v2147 = vsel %vm1293, %v1963, 0.0
    %2148 = vadd.xlane.f32.xlu0 %v2147
    %v2149 = vpop.xlane.xlu0 %2148
    %v2150 = vsel %vm1293, %v1964, 0.0
    %2151 = vadd.xlane.f32.xlu0 %v2150
    %v2152 = vpop.xlane.xlu0 %2151
    %v2153 = vsel %vm1293, %v1965, 0.0
    %2154 = vadd.xlane.f32.xlu0 %v2153
    %v2155 = vpop.xlane.xlu0 %2154
    %v2156 = vsel %vm1293, %v1966, 0.0
    %2157 = vadd.xlane.f32.xlu0 %v2156
    %v2158 = vpop.xlane.xlu0 %2157
    %v2159 = vsel %vm1293, %v1967, 0.0
    %2160 = vadd.xlane.f32.xlu0 %v2159
    %v2161 = vpop.xlane.xlu0 %2160
    %v2162 = vsel %vm1293, %v1968, 0.0
    %2163 = vadd.xlane.f32.xlu0 %v2162
    %v2164 = vpop.xlane.xlu0 %2163
    %v2165 = vsel %vm1293, %v1969, 0.0
    %2166 = vadd.xlane.f32.xlu0 %v2165
    %v2167 = vpop.xlane.xlu0 %2166
    %v2168 = vsel %vm1293, %v1970, 0.0
    %2169 = vadd.xlane.f32.xlu0 %v2168
    %v2170 = vpop.xlane.xlu0 %2169
    %v2171 = vsel %vm1293, %v1971, 0.0
    %2172 = vadd.xlane.f32.xlu0 %v2171
    %v2173 = vpop.xlane.xlu0 %2172
    %v2174 = vsel %vm1293, %v1972, 0.0
    %2175 = vadd.xlane.f32.xlu0 %v2174
    %v2176 = vpop.xlane.xlu0 %2175
    %v2177 = vsel %vm1293, %v1973, 0.0
    %2178 = vadd.xlane.f32.xlu0 %v2177
    %v2179 = vpop.xlane.xlu0 %2178
    %v2180 = vsel %vm1293, %v1974, 0.0
    %2181 = vadd.xlane.f32.xlu0 %v2180
    %v2182 = vpop.xlane.xlu0 %2181
    %v2183 = vsel %vm1293, %v1975, 0.0
    %2184 = vadd.xlane.f32.xlu0 %v2183
    %v2185 = vpop.xlane.xlu0 %2184
    %v2186 = vsel %vm1293, %v1976, 0.0
    %2187 = vadd.xlane.f32.xlu0 %v2186
    %v2188 = vpop.xlane.xlu0 %2187
    %v2189 = vsel %vm1293, %v1977, 0.0
    %2190 = vadd.xlane.f32.xlu0 %v2189
    %v2191 = vpop.xlane.xlu0 %2190
    %v2192 = vsel %vm1293, %v1978, 0.0
    %2193 = vadd.xlane.f32.xlu0 %v2192
    %v2194 = vpop.xlane.xlu0 %2193
    %v2195 = vsel %vm1293, %v1979, 0.0
    %2196 = vadd.xlane.f32.xlu0 %v2195
    %v2197 = vpop.xlane.xlu0 %2196
    %v2198 = vsel %vm1293, %v1980, 0.0
    %2199 = vadd.xlane.f32.xlu0 %v2198
    %v2200 = vpop.xlane.xlu0 %2199
    %v2201 = vsel %vm1293, %v1981, 0.0
    %2202 = vadd.xlane.f32.xlu0 %v2201
    %v2203 = vpop.xlane.xlu0 %2202
    %v2204 = vsel %vm1293, %v1982, 0.0
    %2205 = vadd.xlane.f32.xlu0 %v2204
    %v2206 = vpop.xlane.xlu0 %2205
    %v2207 = vsel %vm1293, %v1983, 0.0
    %2208 = vadd.xlane.f32.xlu0 %v2207
    %v2209 = vpop.xlane.xlu0 %2208
    %v2210 = vsel %vm1293, %v1984, 0.0
    %2211 = vadd.xlane.f32.xlu0 %v2210
    %v2212 = vpop.xlane.xlu0 %2211
    %v2213 = vsel %vm1293, %v1985, 0.0
    %2214 = vadd.xlane.f32.xlu0 %v2213
    %v2215 = vpop.xlane.xlu0 %2214
    %v2216 = vsel %vm1293, %v1986, 0.0
    %2217 = vadd.xlane.f32.xlu0 %v2216
    %v2218 = vpop.xlane.xlu0 %2217
    %v2219 = vsel %vm1293, %v1987, 0.0
    %2220 = vadd.xlane.f32.xlu0 %v2219
    %v2221 = vpop.xlane.xlu0 %2220
    %v2222 = vsel %vm1293, %v1988, 0.0
    %2223 = vadd.xlane.f32.xlu0 %v2222
    %v2224 = vpop.xlane.xlu0 %2223
    %v2225 = vsel %vm1293, %v1989, 0.0
    %2226 = vadd.xlane.f32.xlu0 %v2225
    %v2227 = vpop.xlane.xlu0 %2226
    %v2228 = vsel %vm1293, %v1990, 0.0
    %2229 = vadd.xlane.f32.xlu0 %v2228
    %v2230 = vpop.xlane.xlu0 %2229
    %v2231 = vsel %vm1293, %v1991, 0.0
    %2232 = vadd.xlane.f32.xlu0 %v2231
    %v2233 = vpop.xlane.xlu0 %2232
    %v2234 = vsel %vm1293, %v1992, 0.0
    %2235 = vadd.xlane.f32.xlu0 %v2234
    %v2236 = vpop.xlane.xlu0 %2235
    %v2237 = vsel %vm1293, %v1993, 0.0
    %2238 = vadd.xlane.f32.xlu0 %v2237
    %v2239 = vpop.xlane.xlu0 %2238
    %v2240 = vsel %vm1293, %v1994, 0.0
    %2241 = vadd.xlane.f32.xlu0 %v2240
    %v2242 = vpop.xlane.xlu0 %2241
    %v2243 = vsel %vm1293, %v1995, 0.0
    %2244 = vadd.xlane.f32.xlu0 %v2243
    %v2245 = vpop.xlane.xlu0 %2244
    %v2246 = vsel %vm1293, %v1996, 0.0
    %2247 = vadd.xlane.f32.xlu0 %v2246
    %v2248 = vpop.xlane.xlu0 %2247
    %v2249 = vsel %vm1293, %v1997, 0.0
    %2250 = vadd.xlane.f32.xlu0 %v2249
    %v2251 = vpop.xlane.xlu0 %2250
    %v2252 = vsel %vm1293, %v1998, 0.0
    %2253 = vadd.xlane.f32.xlu0 %v2252
    %v2254 = vpop.xlane.xlu0 %2253
    %v2255 = vsel %vm1293, %v1999, 0.0
    %2256 = vadd.xlane.f32.xlu0 %v2255
    %v2257 = vpop.xlane.xlu0 %2256
    %v2258 = vsel %vm1293, %v2000, 0.0
    %2259 = vadd.xlane.f32.xlu0 %v2258
    %v2260 = vpop.xlane.xlu0 %2259
    %v2261 = vsel %vm1293, %v2001, 0.0
    %2262 = vadd.xlane.f32.xlu0 %v2261
    %v2263 = vpop.xlane.xlu0 %2262
    %v2264 = vsel %vm1293, %v2002, 0.0
    %2265 = vadd.xlane.f32.xlu0 %v2264
    %v2266 = vpop.xlane.xlu0 %2265
    %v2267 = vsel %vm1293, %v2003, 0.0
    %2268 = vadd.xlane.f32.xlu0 %v2267
    %v2269 = vpop.xlane.xlu0 %2268
    %v2270 = vsel %vm1293, %v2004, 0.0
    %2271 = vadd.xlane.f32.xlu0 %v2270
    %v2272 = vpop.xlane.xlu0 %2271
    %v2273 = vsel %vm1293, %v2005, 0.0
    %2274 = vadd.xlane.f32.xlu0 %v2273
    %v2275 = vpop.xlane.xlu0 %2274
    %v2276 = vsel %vm1293, %v2006, 0.0
    %2277 = vadd.xlane.f32.xlu0 %v2276
    %v2278 = vpop.xlane.xlu0 %2277
    %v2279 = vsel %vm1293, %v2007, 0.0
    %2280 = vadd.xlane.f32.xlu0 %v2279
    %v2281 = vpop.xlane.xlu0 %2280
    %v2282 = vsel %vm1293, %v2008, 0.0
    %2283 = vadd.xlane.f32.xlu0 %v2282
    %v2284 = vpop.xlane.xlu0 %2283
    %v2285 = vsel %vm1293, %v2009, 0.0
    %2286 = vadd.xlane.f32.xlu0 %v2285
    %v2287 = vpop.xlane.xlu0 %2286
    %v2288 = vsel %vm1293, %v2010, 0.0
    %2289 = vadd.xlane.f32.xlu0 %v2288
    %v2290 = vpop.xlane.xlu0 %2289
    %v2291 = vsel %vm1293, %v2011, 0.0
    %2292 = vadd.xlane.f32.xlu0 %v2291
    %v2293 = vpop.xlane.xlu0 %2292
    %v2294 = vsel %vm1293, %v2012, 0.0
    %2295 = vadd.xlane.f32.xlu0 %v2294
    %v2296 = vpop.xlane.xlu0 %2295
    %v2297 = vsel %vm1293, %v2013, 0.0
    %2298 = vadd.xlane.f32.xlu0 %v2297
    %v2299 = vpop.xlane.xlu0 %2298
    %v2300 = vsel %vm1293, %v2014, 0.0
    %2301 = vadd.xlane.f32.xlu0 %v2300
    %v2302 = vpop.xlane.xlu0 %2301
    %v2303 = vsel %vm1293, %v2015, 0.0
    %2304 = vadd.xlane.f32.xlu0 %v2303
    %v2305 = vpop.xlane.xlu0 %2304
    %v2306 = vsel %vm1293, %v2016, 0.0
    %2307 = vadd.xlane.f32.xlu0 %v2306
    %v2308 = vpop.xlane.xlu0 %2307
    %v2309 = vsel %vm1293, %v2017, 0.0
    %2310 = vadd.xlane.f32.xlu0 %v2309
    %v2311 = vpop.xlane.xlu0 %2310
    %v2312 = vsel %vm1293, %v2018, 0.0
    %2313 = vadd.xlane.f32.xlu0 %v2312
    %v2314 = vpop.xlane.xlu0 %2313
    %v2315 = vsel %vm1293, %v2019, 0.0
    %2316 = vadd.xlane.f32.xlu0 %v2315
    %v2317 = vpop.xlane.xlu0 %2316
    %v2318 = vsel %vm1293, %v2020, 0.0
    %2319 = vadd.xlane.f32.xlu0 %v2318
    %v2320 = vpop.xlane.xlu0 %2319
    %v2321 = vsel %vm1293, %v2021, 0.0
    %2322 = vadd.xlane.f32.xlu0 %v2321
    %v2323 = vpop.xlane.xlu0 %2322
    %v2324 = vsel %vm1293, %v2022, 0.0
    %2325 = vadd.xlane.f32.xlu0 %v2324
    %v2326 = vpop.xlane.xlu0 %2325
    %v2327 = vsel %vm1293, %v2023, 0.0
    %2328 = vadd.xlane.f32.xlu0 %v2327
    %v2329 = vpop.xlane.xlu0 %2328
    %v2330 = vsel %vm1293, %v2024, 0.0
    %2331 = vadd.xlane.f32.xlu0 %v2330
    %v2332 = vpop.xlane.xlu0 %2331
    %v2333 = vsel %vm1293, %v2025, 0.0
    %2334 = vadd.xlane.f32.xlu0 %v2333
    %v2335 = vpop.xlane.xlu0 %2334
    %v2336 = vsel %vm1293, %v2026, 0.0
    %2337 = vadd.xlane.f32.xlu0 %v2336
    %v2338 = vpop.xlane.xlu0 %2337
    %v2339 = vsel %vm1293, %v2027, 0.0
    %2340 = vadd.xlane.f32.xlu0 %v2339
    %v2341 = vpop.xlane.xlu0 %2340
    %v2342 = vsel %vm1293, %v2028, 0.0
    %2343 = vadd.xlane.f32.xlu0 %v2342
    %v2344 = vpop.xlane.xlu0 %2343
    %v2345 = vsel %vm1293, %v2029, 0.0
    %2346 = vadd.xlane.f32.xlu0 %v2345
    %v2347 = vpop.xlane.xlu0 %2346
    %v2348 = vsel %vm1293, %v2030, 0.0
    %2349 = vadd.xlane.f32.xlu0 %v2348
    %v2350 = vpop.xlane.xlu0 %2349
    %v2351 = vsel %vm1293, %v2031, 0.0
    %2352 = vadd.xlane.f32.xlu0 %v2351
    %v2353 = vpop.xlane.xlu0 %2352
    %v2354 = vsel %vm1293, %v2032, 0.0
    %2355 = vadd.xlane.f32.xlu0 %v2354
    %v2356 = vpop.xlane.xlu0 %2355
    %v2357 = vsel %vm1293, %v2033, 0.0
    %2358 = vadd.xlane.f32.xlu0 %v2357
    %v2359 = vpop.xlane.xlu0 %2358
    %v2360 = vsel %vm1293, %v2034, 0.0
    %2361 = vadd.xlane.f32.xlu0 %v2360
    %v2362 = vpop.xlane.xlu0 %2361
    %v2363 = vsel %vm1293, %v2035, 0.0
    %2364 = vadd.xlane.f32.xlu0 %v2363
    %v2365 = vpop.xlane.xlu0 %2364
    %v2366 = vsel %vm1293, %v2036, 0.0
    %2367 = vadd.xlane.f32.xlu0 %v2366
    %v2368 = vpop.xlane.xlu0 %2367
    %v2369 = vsel %vm1293, %v2037, 0.0
    %2370 = vadd.xlane.f32.xlu0 %v2369
    %v2371 = vpop.xlane.xlu0 %2370
    %v2372 = vsel %vm1293, %v2038, 0.0
    %2373 = vadd.xlane.f32.xlu0 %v2372
    %v2374 = vpop.xlane.xlu0 %2373
    %v2375 = vsel %vm1293, %v2039, 0.0
    %2376 = vadd.xlane.f32.xlu0 %v2375
    %v2377 = vpop.xlane.xlu0 %2376
    %v2378 = vsel %vm1293, %v2040, 0.0
    %2379 = vadd.xlane.f32.xlu0 %v2378
    %v2380 = vpop.xlane.xlu0 %2379
    %v2381 = vsel %vm1293, %v2041, 0.0
    %2382 = vadd.xlane.f32.xlu0 %v2381
    %v2383 = vpop.xlane.xlu0 %2382
    %v2384 = vsel %vm1293, %v2042, 0.0
    %2385 = vadd.xlane.f32.xlu0 %v2384
    %v2386 = vpop.xlane.xlu0 %2385
    %v2387 = vsel %vm1293, %v2043, 0.0
    %2388 = vadd.xlane.f32.xlu0 %v2387
    %v2389 = vpop.xlane.xlu0 %2388
    %v2390 = vsel %vm1293, %v2044, 0.0
    %2391 = vadd.xlane.f32.xlu0 %v2390
    %v2392 = vpop.xlane.xlu0 %2391
    %v2393 = vsel %vm1293, %v2045, 0.0
    %2394 = vadd.xlane.f32.xlu0 %v2393
    %v2395 = vpop.xlane.xlu0 %2394
    %v2396 = vsel %vm1293, %v2046, 0.0
    %2397 = vadd.xlane.f32.xlu0 %v2396
    %v2398 = vpop.xlane.xlu0 %2397
    %v2399 = vsel %vm1293, %v2047, 0.0
    %2400 = vadd.xlane.f32.xlu0 %v2399
    %v2401 = vpop.xlane.xlu0 %2400
    %v2402 = vsel %vm1293, %v2048, 0.0
    %2403 = vadd.xlane.f32.xlu0 %v2402
    %v2404 = vpop.xlane.xlu0 %2403
    %v2405 = vsel %vm1293, %v2049, 0.0
    %2406 = vadd.xlane.f32.xlu0 %v2405
    %v2407 = vpop.xlane.xlu0 %2406
    %v2408 = vsel %vm1293, %v2050, 0.0
    %2409 = vadd.xlane.f32.xlu0 %v2408
    %v2410 = vpop.xlane.xlu0 %2409
    %v2411 = vsel %vm1293, %v2051, 0.0
    %2412 = vadd.xlane.f32.xlu0 %v2411
    %v2413 = vpop.xlane.xlu0 %2412
    %v2414 = vsel %vm1293, %v2052, 0.0
    %2415 = vadd.xlane.f32.xlu0 %v2414
    %v2416 = vpop.xlane.xlu0 %2415
    %v2417 = vsel %vm1293, %v2053, 0.0
    %2418 = vadd.xlane.f32.xlu0 %v2417
    %v2419 = vpop.xlane.xlu0 %2418
    %v2420 = vsel %vm1293, %v2054, 0.0
    %2421 = vadd.xlane.f32.xlu0 %v2420
    %v2422 = vpop.xlane.xlu0 %2421
    %v2423 = vsel %vm1293, %v2055, 0.0
    %2424 = vadd.xlane.f32.xlu0 %v2423
    %v2425 = vpop.xlane.xlu0 %2424
    %v2426 = vsel %vm1293, %v2056, 0.0
    %2427 = vadd.xlane.f32.xlu0 %v2426
    %v2428 = vpop.xlane.xlu0 %2427
    %v2429 = vsel %vm1293, %v2057, 0.0
    %2430 = vadd.xlane.f32.xlu0 %v2429
    %v2431 = vpop.xlane.xlu0 %2430
    %v2432 = vsel %vm1293, %v2058, 0.0
    %2433 = vadd.xlane.f32.xlu0 %v2432
    %v2434 = vpop.xlane.xlu0 %2433
    %v2435 = vsel %vm1293, %v2059, 0.0
    %2436 = vadd.xlane.f32.xlu0 %v2435
    %v2437 = vpop.xlane.xlu0 %2436
    %v2438 = vsel %vm1293, %v2060, 0.0
    %2439 = vadd.xlane.f32.xlu0 %v2438
    %v2440 = vpop.xlane.xlu0 %2439
    %v2441 = vsel %vm1293, %v2061, 0.0
    %2442 = vadd.xlane.f32.xlu0 %v2441
    %v2443 = vpop.xlane.xlu0 %2442
    %v2444 = vsel %vm1293, %v2062, 0.0
    %2445 = vadd.xlane.f32.xlu0 %v2444
    %v2446 = vpop.xlane.xlu0 %2445
    %v2447 = vmul.f32 %v2065, %v1678
    %v2448 = vmul.f32 %v2068, %v1678
    %v2449 = vmul.f32 %v2071, %v1678
    %v2450 = vmul.f32 %v2074, %v1678
    %v2451 = vmul.f32 %v2077, %v1678
    %v2452 = vmul.f32 %v2080, %v1678
    %v2453 = vmul.f32 %v2083, %v1678
    %v2454 = vmul.f32 %v2086, %v1678
    %v2455 = vmul.f32 %v2089, %v1678
    %v2456 = vmul.f32 %v2092, %v1678
    %v2457 = vmul.f32 %v2095, %v1678
    %v2458 = vmul.f32 %v2098, %v1678
    %v2459 = vmul.f32 %v2101, %v1678
    %v2460 = vmul.f32 %v2104, %v1678
    %v2461 = vmul.f32 %v2107, %v1678
    %v2462 = vmul.f32 %v2110, %v1678
    %v2463 = vmul.f32 %v2113, %v1678
    %v2464 = vmul.f32 %v2116, %v1678
    %v2465 = vmul.f32 %v2119, %v1678
    %v2466 = vmul.f32 %v2122, %v1678
    %v2467 = vmul.f32 %v2125, %v1678
    %v2468 = vmul.f32 %v2128, %v1678
    %v2469 = vmul.f32 %v2131, %v1678
    %v2470 = vmul.f32 %v2134, %v1678
    %v2471 = vmul.f32 %v2137, %v1678
    %v2472 = vmul.f32 %v2140, %v1678
    %v2473 = vmul.f32 %v2143, %v1678
    %v2474 = vmul.f32 %v2146, %v1678
    %v2475 = vmul.f32 %v2149, %v1678
    %v2476 = vmul.f32 %v2152, %v1678
    %v2477 = vmul.f32 %v2155, %v1678
    %v2478 = vmul.f32 %v2158, %v1678
    %v2479 = vmul.f32 %v2161, %v1678
    %v2480 = vmul.f32 %v2164, %v1678
    %v2481 = vmul.f32 %v2167, %v1678
    %v2482 = vmul.f32 %v2170, %v1678
    %v2483 = vmul.f32 %v2173, %v1678
    %v2484 = vmul.f32 %v2176, %v1678
    %v2485 = vmul.f32 %v2179, %v1678
    %v2486 = vmul.f32 %v2182, %v1678
    %v2487 = vmul.f32 %v2185, %v1678
    %v2488 = vmul.f32 %v2188, %v1678
    %v2489 = vmul.f32 %v2191, %v1678
    %v2490 = vmul.f32 %v2194, %v1678
    %v2491 = vmul.f32 %v2197, %v1678
    %v2492 = vmul.f32 %v2200, %v1678
    %v2493 = vmul.f32 %v2203, %v1678
    %v2494 = vmul.f32 %v2206, %v1678
    %v2495 = vmul.f32 %v2209, %v1678
    %v2496 = vmul.f32 %v2212, %v1678
    %v2497 = vmul.f32 %v2215, %v1678
    %v2498 = vmul.f32 %v2218, %v1678
    %v2499 = vmul.f32 %v2221, %v1678
    %v2500 = vmul.f32 %v2224, %v1678
    %v2501 = vmul.f32 %v2227, %v1678
    %v2502 = vmul.f32 %v2230, %v1678
    %v2503 = vmul.f32 %v2233, %v1678
    %v2504 = vmul.f32 %v2236, %v1678
    %v2505 = vmul.f32 %v2239, %v1678
    %v2506 = vmul.f32 %v2242, %v1678
    %v2507 = vmul.f32 %v2245, %v1678
    %v2508 = vmul.f32 %v2248, %v1678
    %v2509 = vmul.f32 %v2251, %v1678
    %v2510 = vmul.f32 %v2254, %v1678
    %v2511 = vmul.f32 %v2257, %v1678
    %v2512 = vmul.f32 %v2260, %v1678
    %v2513 = vmul.f32 %v2263, %v1678
    %v2514 = vmul.f32 %v2266, %v1678
    %v2515 = vmul.f32 %v2269, %v1678
    %v2516 = vmul.f32 %v2272, %v1678
    %v2517 = vmul.f32 %v2275, %v1678
    %v2518 = vmul.f32 %v2278, %v1678
    %v2519 = vmul.f32 %v2281, %v1678
    %v2520 = vmul.f32 %v2284, %v1678
    %v2521 = vmul.f32 %v2287, %v1678
    %v2522 = vmul.f32 %v2290, %v1678
    %v2523 = vmul.f32 %v2293, %v1678
    %v2524 = vmul.f32 %v2296, %v1678
    %v2525 = vmul.f32 %v2299, %v1678
    %v2526 = vmul.f32 %v2302, %v1678
    %v2527 = vmul.f32 %v2305, %v1678
    %v2528 = vmul.f32 %v2308, %v1678
    %v2529 = vmul.f32 %v2311, %v1678
    %v2530 = vmul.f32 %v2314, %v1678
    %v2531 = vmul.f32 %v2317, %v1678
    %v2532 = vmul.f32 %v2320, %v1678
    %v2533 = vmul.f32 %v2323, %v1678
    %v2534 = vmul.f32 %v2326, %v1678
    %v2535 = vmul.f32 %v2329, %v1678
    %v2536 = vmul.f32 %v2332, %v1678
    %v2537 = vmul.f32 %v2335, %v1678
    %v2538 = vmul.f32 %v2338, %v1678
    %v2539 = vmul.f32 %v2341, %v1678
    %v2540 = vmul.f32 %v2344, %v1678
    %v2541 = vmul.f32 %v2347, %v1678
    %v2542 = vmul.f32 %v2350, %v1678
    %v2543 = vmul.f32 %v2353, %v1678
    %v2544 = vmul.f32 %v2356, %v1678
    %v2545 = vmul.f32 %v2359, %v1678
    %v2546 = vmul.f32 %v2362, %v1678
    %v2547 = vmul.f32 %v2365, %v1678
    %v2548 = vmul.f32 %v2368, %v1678
    %v2549 = vmul.f32 %v2371, %v1678
    %v2550 = vmul.f32 %v2374, %v1678
    %v2551 = vmul.f32 %v2377, %v1678
    %v2552 = vmul.f32 %v2380, %v1678
    %v2553 = vmul.f32 %v2383, %v1678
    %v2554 = vmul.f32 %v2386, %v1678
    %v2555 = vmul.f32 %v2389, %v1678
    %v2556 = vmul.f32 %v2392, %v1678
    %v2557 = vmul.f32 %v2395, %v1678
    %v2558 = vmul.f32 %v2398, %v1678
    %v2559 = vmul.f32 %v2401, %v1678
    %v2560 = vmul.f32 %v2404, %v1678
    %v2561 = vmul.f32 %v2407, %v1678
    %v2562 = vmul.f32 %v2410, %v1678
    %v2563 = vmul.f32 %v2413, %v1678
    %v2564 = vmul.f32 %v2416, %v1678
    %v2565 = vmul.f32 %v2419, %v1678
    %v2566 = vmul.f32 %v2422, %v1678
    %v2567 = vmul.f32 %v2425, %v1678
    %v2568 = vmul.f32 %v2428, %v1678
    %v2569 = vmul.f32 %v2431, %v1678
    %v2570 = vmul.f32 %v2434, %v1678
    %v2571 = vmul.f32 %v2437, %v1678
    %v2572 = vmul.f32 %v2440, %v1678
    %v2573 = vmul.f32 %v2443, %v1678
    %v2574 = vmul.f32 %v2446, %v1678
    %v2575 = vadd.f32 %v2447, 1e-05
    %v2576 = vadd.f32 %v2448, 1e-05
    %v2577 = vadd.f32 %v2449, 1e-05
    %v2578 = vadd.f32 %v2450, 1e-05
    %v2579 = vadd.f32 %v2451, 1e-05
    %v2580 = vadd.f32 %v2452, 1e-05
    %v2581 = vadd.f32 %v2453, 1e-05
    %v2582 = vadd.f32 %v2454, 1e-05
    %v2583 = vadd.f32 %v2455, 1e-05
    %v2584 = vadd.f32 %v2456, 1e-05
    %v2585 = vadd.f32 %v2457, 1e-05
    %v2586 = vadd.f32 %v2458, 1e-05
    %v2587 = vadd.f32 %v2459, 1e-05
    %v2588 = vadd.f32 %v2460, 1e-05
    %v2589 = vadd.f32 %v2461, 1e-05
    %v2590 = vadd.f32 %v2462, 1e-05
    %v2591 = vadd.f32 %v2463, 1e-05
    %v2592 = vadd.f32 %v2464, 1e-05
    %v2593 = vadd.f32 %v2465, 1e-05
    %v2594 = vadd.f32 %v2466, 1e-05
    %v2595 = vadd.f32 %v2467, 1e-05
    %v2596 = vadd.f32 %v2468, 1e-05
    %v2597 = vadd.f32 %v2469, 1e-05
    %v2598 = vadd.f32 %v2470, 1e-05
    %v2599 = vadd.f32 %v2471, 1e-05
    %v2600 = vadd.f32 %v2472, 1e-05
    %v2601 = vadd.f32 %v2473, 1e-05
    %v2602 = vadd.f32 %v2474, 1e-05
    %v2603 = vadd.f32 %v2475, 1e-05
    %v2604 = vadd.f32 %v2476, 1e-05
    %v2605 = vadd.f32 %v2477, 1e-05
    %v2606 = vadd.f32 %v2478, 1e-05
    %v2607 = vadd.f32 %v2479, 1e-05
    %v2608 = vadd.f32 %v2480, 1e-05
    %v2609 = vadd.f32 %v2481, 1e-05
    %v2610 = vadd.f32 %v2482, 1e-05
    %v2611 = vadd.f32 %v2483, 1e-05
    %v2612 = vadd.f32 %v2484, 1e-05
    %v2613 = vadd.f32 %v2485, 1e-05
    %v2614 = vadd.f32 %v2486, 1e-05
    %v2615 = vadd.f32 %v2487, 1e-05
    %v2616 = vadd.f32 %v2488, 1e-05
    %v2617 = vadd.f32 %v2489, 1e-05
    %v2618 = vadd.f32 %v2490, 1e-05
    %v2619 = vadd.f32 %v2491, 1e-05
    %v2620 = vadd.f32 %v2492, 1e-05
    %v2621 = vadd.f32 %v2493, 1e-05
    %v2622 = vadd.f32 %v2494, 1e-05
    %v2623 = vadd.f32 %v2495, 1e-05
    %v2624 = vadd.f32 %v2496, 1e-05
    %v2625 = vadd.f32 %v2497, 1e-05
    %v2626 = vadd.f32 %v2498, 1e-05
    %v2627 = vadd.f32 %v2499, 1e-05
    %v2628 = vadd.f32 %v2500, 1e-05
    %v2629 = vadd.f32 %v2501, 1e-05
    %v2630 = vadd.f32 %v2502, 1e-05
    %v2631 = vadd.f32 %v2503, 1e-05
    %v2632 = vadd.f32 %v2504, 1e-05
    %v2633 = vadd.f32 %v2505, 1e-05
    %v2634 = vadd.f32 %v2506, 1e-05
    %v2635 = vadd.f32 %v2507, 1e-05
    %v2636 = vadd.f32 %v2508, 1e-05
    %v2637 = vadd.f32 %v2509, 1e-05
    %v2638 = vadd.f32 %v2510, 1e-05
    %v2639 = vadd.f32 %v2511, 1e-05
    %v2640 = vadd.f32 %v2512, 1e-05
    %v2641 = vadd.f32 %v2513, 1e-05
    %v2642 = vadd.f32 %v2514, 1e-05
    %v2643 = vadd.f32 %v2515, 1e-05
    %v2644 = vadd.f32 %v2516, 1e-05
    %v2645 = vadd.f32 %v2517, 1e-05
    %v2646 = vadd.f32 %v2518, 1e-05
    %v2647 = vadd.f32 %v2519, 1e-05
    %v2648 = vadd.f32 %v2520, 1e-05
    %v2649 = vadd.f32 %v2521, 1e-05
    %v2650 = vadd.f32 %v2522, 1e-05
    %v2651 = vadd.f32 %v2523, 1e-05
    %v2652 = vadd.f32 %v2524, 1e-05
    %v2653 = vadd.f32 %v2525, 1e-05
    %v2654 = vadd.f32 %v2526, 1e-05
    %v2655 = vadd.f32 %v2527, 1e-05
    %v2656 = vadd.f32 %v2528, 1e-05
    %v2657 = vadd.f32 %v2529, 1e-05
    %v2658 = vadd.f32 %v2530, 1e-05
    %v2659 = vadd.f32 %v2531, 1e-05
    %v2660 = vadd.f32 %v2532, 1e-05
    %v2661 = vadd.f32 %v2533, 1e-05
    %v2662 = vadd.f32 %v2534, 1e-05
    %v2663 = vadd.f32 %v2535, 1e-05
    %v2664 = vadd.f32 %v2536, 1e-05
    %v2665 = vadd.f32 %v2537, 1e-05
    %v2666 = vadd.f32 %v2538, 1e-05
    %v2667 = vadd.f32 %v2539, 1e-05
    %v2668 = vadd.f32 %v2540, 1e-05
    %v2669 = vadd.f32 %v2541, 1e-05
    %v2670 = vadd.f32 %v2542, 1e-05
    %v2671 = vadd.f32 %v2543, 1e-05
    %v2672 = vadd.f32 %v2544, 1e-05
    %v2673 = vadd.f32 %v2545, 1e-05
    %v2674 = vadd.f32 %v2546, 1e-05
    %v2675 = vadd.f32 %v2547, 1e-05
    %v2676 = vadd.f32 %v2548, 1e-05
    %v2677 = vadd.f32 %v2549, 1e-05
    %v2678 = vadd.f32 %v2550, 1e-05
    %v2679 = vadd.f32 %v2551, 1e-05
    %v2680 = vadd.f32 %v2552, 1e-05
    %v2681 = vadd.f32 %v2553, 1e-05
    %v2682 = vadd.f32 %v2554, 1e-05
    %v2683 = vadd.f32 %v2555, 1e-05
    %v2684 = vadd.f32 %v2556, 1e-05
    %v2685 = vadd.f32 %v2557, 1e-05
    %v2686 = vadd.f32 %v2558, 1e-05
    %v2687 = vadd.f32 %v2559, 1e-05
    %v2688 = vadd.f32 %v2560, 1e-05
    %v2689 = vadd.f32 %v2561, 1e-05
    %v2690 = vadd.f32 %v2562, 1e-05
    %v2691 = vadd.f32 %v2563, 1e-05
    %v2692 = vadd.f32 %v2564, 1e-05
    %v2693 = vadd.f32 %v2565, 1e-05
    %v2694 = vadd.f32 %v2566, 1e-05
    %v2695 = vadd.f32 %v2567, 1e-05
    %v2696 = vadd.f32 %v2568, 1e-05
    %v2697 = vadd.f32 %v2569, 1e-05
    %v2698 = vadd.f32 %v2570, 1e-05
    %v2699 = vadd.f32 %v2571, 1e-05
    %v2700 = vadd.f32 %v2572, 1e-05
    %v2701 = vadd.f32 %v2573, 1e-05
    %v2702 = vadd.f32 %v2574, 1e-05
    %v2703 = vrsqrt.pop %v2575
    %v2704 = vrsqrt.pop %v2576
    %v2705 = vrsqrt.pop %v2577
    %v2706 = vrsqrt.pop %v2578
    %v2707 = vrsqrt.pop %v2579
    %v2708 = vrsqrt.pop %v2580
    %v2709 = vrsqrt.pop %v2581
    %v2710 = vrsqrt.pop %v2582
    %v2711 = vrsqrt.pop %v2583
    %v2712 = vrsqrt.pop %v2584
    %v2713 = vrsqrt.pop %v2585
    %v2714 = vrsqrt.pop %v2586
    %v2715 = vrsqrt.pop %v2587
    %v2716 = vrsqrt.pop %v2588
    %v2717 = vrsqrt.pop %v2589
    %v2718 = vrsqrt.pop %v2590
    %v2719 = vrsqrt.pop %v2591
    %v2720 = vrsqrt.pop %v2592
    %v2721 = vrsqrt.pop %v2593
    %v2722 = vrsqrt.pop %v2594
    %v2723 = vrsqrt.pop %v2595
    %v2724 = vrsqrt.pop %v2596
    %v2725 = vrsqrt.pop %v2597
    %v2726 = vrsqrt.pop %v2598
    %v2727 = vrsqrt.pop %v2599
    %v2728 = vrsqrt.pop %v2600
    %v2729 = vrsqrt.pop %v2601
    %v2730 = vrsqrt.pop %v2602
    %v2731 = vrsqrt.pop %v2603
    %v2732 = vrsqrt.pop %v2604
    %v2733 = vrsqrt.pop %v2605
    %v2734 = vrsqrt.pop %v2606
    %v2735 = vrsqrt.pop %v2607
    %v2736 = vrsqrt.pop %v2608
    %v2737 = vrsqrt.pop %v2609
    %v2738 = vrsqrt.pop %v2610
    %v2739 = vrsqrt.pop %v2611
    %v2740 = vrsqrt.pop %v2612
    %v2741 = vrsqrt.pop %v2613
    %v2742 = vrsqrt.pop %v2614
    %v2743 = vrsqrt.pop %v2615
    %v2744 = vrsqrt.pop %v2616
    %v2745 = vrsqrt.pop %v2617
    %v2746 = vrsqrt.pop %v2618
    %v2747 = vrsqrt.pop %v2619
    %v2748 = vrsqrt.pop %v2620
    %v2749 = vrsqrt.pop %v2621
    %v2750 = vrsqrt.pop %v2622
    %v2751 = vrsqrt.pop %v2623
    %v2752 = vrsqrt.pop %v2624
    %v2753 = vrsqrt.pop %v2625
    %v2754 = vrsqrt.pop %v2626
    %v2755 = vrsqrt.pop %v2627
    %v2756 = vrsqrt.pop %v2628
    %v2757 = vrsqrt.pop %v2629
    %v2758 = vrsqrt.pop %v2630
    %v2759 = vrsqrt.pop %v2631
    %v2760 = vrsqrt.pop %v2632
    %v2761 = vrsqrt.pop %v2633
    %v2762 = vrsqrt.pop %v2634
    %v2763 = vrsqrt.pop %v2635
    %v2764 = vrsqrt.pop %v2636
    %v2765 = vrsqrt.pop %v2637
    %v2766 = vrsqrt.pop %v2638
    %v2767 = vrsqrt.pop %v2639
    %v2768 = vrsqrt.pop %v2640
    %v2769 = vrsqrt.pop %v2641
    %v2770 = vrsqrt.pop %v2642
    %v2771 = vrsqrt.pop %v2643
    %v2772 = vrsqrt.pop %v2644
    %v2773 = vrsqrt.pop %v2645
    %v2774 = vrsqrt.pop %v2646
    %v2775 = vrsqrt.pop %v2647
    %v2776 = vrsqrt.pop %v2648
    %v2777 = vrsqrt.pop %v2649
    %v2778 = vrsqrt.pop %v2650
    %v2779 = vrsqrt.pop %v2651
    %v2780 = vrsqrt.pop %v2652
    %v2781 = vrsqrt.pop %v2653
    %v2782 = vrsqrt.pop %v2654
    %v2783 = vrsqrt.pop %v2655
    %v2784 = vrsqrt.pop %v2656
    %v2785 = vrsqrt.pop %v2657
    %v2786 = vrsqrt.pop %v2658
    %v2787 = vrsqrt.pop %v2659
    %v2788 = vrsqrt.pop %v2660
    %v2789 = vrsqrt.pop %v2661
    %v2790 = vrsqrt.pop %v2662
    %v2791 = vrsqrt.pop %v2663
    %v2792 = vrsqrt.pop %v2664
    %v2793 = vrsqrt.pop %v2665
    %v2794 = vrsqrt.pop %v2666
    %v2795 = vrsqrt.pop %v2667
    %v2796 = vrsqrt.pop %v2668
    %v2797 = vrsqrt.pop %v2669
    %v2798 = vrsqrt.pop %v2670
    %v2799 = vrsqrt.pop %v2671
    %v2800 = vrsqrt.pop %v2672
    %v2801 = vrsqrt.pop %v2673
    %v2802 = vrsqrt.pop %v2674
    %v2803 = vrsqrt.pop %v2675
    %v2804 = vrsqrt.pop %v2676
    %v2805 = vrsqrt.pop %v2677
    %v2806 = vrsqrt.pop %v2678
    %v2807 = vrsqrt.pop %v2679
    %v2808 = vrsqrt.pop %v2680
    %v2809 = vrsqrt.pop %v2681
    %v2810 = vrsqrt.pop %v2682
    %v2811 = vrsqrt.pop %v2683
    %v2812 = vrsqrt.pop %v2684
    %v2813 = vrsqrt.pop %v2685
    %v2814 = vrsqrt.pop %v2686
    %v2815 = vrsqrt.pop %v2687
    %v2816 = vrsqrt.pop %v2688
    %v2817 = vrsqrt.pop %v2689
    %v2818 = vrsqrt.pop %v2690
    %v2819 = vrsqrt.pop %v2691
    %v2820 = vrsqrt.pop %v2692
    %v2821 = vrsqrt.pop %v2693
    %v2822 = vrsqrt.pop %v2694
    %v2823 = vrsqrt.pop %v2695
    %v2824 = vrsqrt.pop %v2696
    %v2825 = vrsqrt.pop %v2697
    %v2826 = vrsqrt.pop %v2698
    %v2827 = vrsqrt.pop %v2699
    %v2828 = vrsqrt.pop %v2700
    %v2829 = vrsqrt.pop %v2701
    %v2830 = vrsqrt.pop %v2702
    %v2831 = vmul.f32 %v1807, %v2703
    %v2832 = vmul.f32 %v1808, %v2704
    %v2833 = vmul.f32 %v1809, %v2705
    %v2834 = vmul.f32 %v1810, %v2706
    %v2835 = vmul.f32 %v1811, %v2707
    %v2836 = vmul.f32 %v1812, %v2708
    %v2837 = vmul.f32 %v1813, %v2709
    %v2838 = vmul.f32 %v1814, %v2710
    %v2839 = vmul.f32 %v1815, %v2711
    %v2840 = vmul.f32 %v1816, %v2712
    %v2841 = vmul.f32 %v1817, %v2713
    %v2842 = vmul.f32 %v1818, %v2714
    %v2843 = vmul.f32 %v1819, %v2715
    %v2844 = vmul.f32 %v1820, %v2716
    %v2845 = vmul.f32 %v1821, %v2717
    %v2846 = vmul.f32 %v1822, %v2718
    %v2847 = vmul.f32 %v1823, %v2719
    %v2848 = vmul.f32 %v1824, %v2720
    %v2849 = vmul.f32 %v1825, %v2721
    %v2850 = vmul.f32 %v1826, %v2722
    %v2851 = vmul.f32 %v1827, %v2723
    %v2852 = vmul.f32 %v1828, %v2724
    %v2853 = vmul.f32 %v1829, %v2725
    %v2854 = vmul.f32 %v1830, %v2726
    %v2855 = vmul.f32 %v1831, %v2727
    %v2856 = vmul.f32 %v1832, %v2728
    %v2857 = vmul.f32 %v1833, %v2729
    %v2858 = vmul.f32 %v1834, %v2730
    %v2859 = vmul.f32 %v1835, %v2731
    %v2860 = vmul.f32 %v1836, %v2732
    %v2861 = vmul.f32 %v1837, %v2733
    %v2862 = vmul.f32 %v1838, %v2734
    %v2863 = vmul.f32 %v1839, %v2735
    %v2864 = vmul.f32 %v1840, %v2736
    %v2865 = vmul.f32 %v1841, %v2737
    %v2866 = vmul.f32 %v1842, %v2738
    %v2867 = vmul.f32 %v1843, %v2739
    %v2868 = vmul.f32 %v1844, %v2740
    %v2869 = vmul.f32 %v1845, %v2741
    %v2870 = vmul.f32 %v1846, %v2742
    %v2871 = vmul.f32 %v1847, %v2743
    %v2872 = vmul.f32 %v1848, %v2744
    %v2873 = vmul.f32 %v1849, %v2745
    %v2874 = vmul.f32 %v1850, %v2746
    %v2875 = vmul.f32 %v1851, %v2747
    %v2876 = vmul.f32 %v1852, %v2748
    %v2877 = vmul.f32 %v1853, %v2749
    %v2878 = vmul.f32 %v1854, %v2750
    %v2879 = vmul.f32 %v1855, %v2751
    %v2880 = vmul.f32 %v1856, %v2752
    %v2881 = vmul.f32 %v1857, %v2753
    %v2882 = vmul.f32 %v1858, %v2754
    %v2883 = vmul.f32 %v1859, %v2755
    %v2884 = vmul.f32 %v1860, %v2756
    %v2885 = vmul.f32 %v1861, %v2757
    %v2886 = vmul.f32 %v1862, %v2758
    %v2887 = vmul.f32 %v1863, %v2759
    %v2888 = vmul.f32 %v1864, %v2760
    %v2889 = vmul.f32 %v1865, %v2761
    %v2890 = vmul.f32 %v1866, %v2762
    %v2891 = vmul.f32 %v1867, %v2763
    %v2892 = vmul.f32 %v1868, %v2764
    %v2893 = vmul.f32 %v1869, %v2765
    %v2894 = vmul.f32 %v1870, %v2766
    %v2895 = vmul.f32 %v1871, %v2767
    %v2896 = vmul.f32 %v1872, %v2768
    %v2897 = vmul.f32 %v1873, %v2769
    %v2898 = vmul.f32 %v1874, %v2770
    %v2899 = vmul.f32 %v1875, %v2771
    %v2900 = vmul.f32 %v1876, %v2772
    %v2901 = vmul.f32 %v1877, %v2773
    %v2902 = vmul.f32 %v1878, %v2774
    %v2903 = vmul.f32 %v1879, %v2775
    %v2904 = vmul.f32 %v1880, %v2776
    %v2905 = vmul.f32 %v1881, %v2777
    %v2906 = vmul.f32 %v1882, %v2778
    %v2907 = vmul.f32 %v1883, %v2779
    %v2908 = vmul.f32 %v1884, %v2780
    %v2909 = vmul.f32 %v1885, %v2781
    %v2910 = vmul.f32 %v1886, %v2782
    %v2911 = vmul.f32 %v1887, %v2783
    %v2912 = vmul.f32 %v1888, %v2784
    %v2913 = vmul.f32 %v1889, %v2785
    %v2914 = vmul.f32 %v1890, %v2786
    %v2915 = vmul.f32 %v1891, %v2787
    %v2916 = vmul.f32 %v1892, %v2788
    %v2917 = vmul.f32 %v1893, %v2789
    %v2918 = vmul.f32 %v1894, %v2790
    %v2919 = vmul.f32 %v1895, %v2791
    %v2920 = vmul.f32 %v1896, %v2792
    %v2921 = vmul.f32 %v1897, %v2793
    %v2922 = vmul.f32 %v1898, %v2794
    %v2923 = vmul.f32 %v1899, %v2795
    %v2924 = vmul.f32 %v1900, %v2796
    %v2925 = vmul.f32 %v1901, %v2797
    %v2926 = vmul.f32 %v1902, %v2798
    %v2927 = vmul.f32 %v1903, %v2799
    %v2928 = vmul.f32 %v1904, %v2800
    %v2929 = vmul.f32 %v1905, %v2801
    %v2930 = vmul.f32 %v1906, %v2802
    %v2931 = vmul.f32 %v1907, %v2803
    %v2932 = vmul.f32 %v1908, %v2804
    %v2933 = vmul.f32 %v1909, %v2805
    %v2934 = vmul.f32 %v1910, %v2806
    %v2935 = vmul.f32 %v1911, %v2807
    %v2936 = vmul.f32 %v1912, %v2808
    %v2937 = vmul.f32 %v1913, %v2809
    %v2938 = vmul.f32 %v1914, %v2810
    %v2939 = vmul.f32 %v1915, %v2811
    %v2940 = vmul.f32 %v1916, %v2812
    %v2941 = vmul.f32 %v1917, %v2813
    %v2942 = vmul.f32 %v1918, %v2814
    %v2943 = vmul.f32 %v1919, %v2815
    %v2944 = vmul.f32 %v1920, %v2816
    %v2945 = vmul.f32 %v1921, %v2817
    %v2946 = vmul.f32 %v1922, %v2818
    %v2947 = vmul.f32 %v1923, %v2819
    %v2948 = vmul.f32 %v1924, %v2820
    %v2949 = vmul.f32 %v1925, %v2821
    %v2950 = vmul.f32 %v1926, %v2822
    %v2951 = vmul.f32 %v1927, %v2823
    %v2952 = vmul.f32 %v1928, %v2824
    %v2953 = vmul.f32 %v1929, %v2825
    %v2954 = vmul.f32 %v1930, %v2826
    %v2955 = vmul.f32 %v1931, %v2827
    %v2956 = vmul.f32 %v1932, %v2828
    %v2957 = vmul.f32 %v1933, %v2829
    %v2958 = vmul.f32 %v1934, %v2830
    %v2959 = vcombine.low %v2831, %v2833
    %v2961 = vunpack.c.l.s4 1983009808
    %v2962 = vunpack.c.0.s8 %v2961
    %v2963 = vlaneseq
    %v2964 = vshrl.u32 %v2963, 7
    %v2965 = vsub.s32 %v2962, %v2964
    %v2966 = vrot.slane %v2959, %v2965
    %v2967 = vcombine.low %v2832, %v2834
    %v2969 = vunpack.c.l.s4 1983009808
    %v2970 = vunpack.c.0.s8 %v2969
    %v2971 = vlaneseq
    %v2972 = vshrl.u32 %v2971, 7
    %v2973 = vsub.s32 %v2970, %v2972
    %v2974 = vrot.slane %v2967, %v2973
    %v2975 = vcombine.low %v2835, %v2837
    %v2977 = vunpack.c.l.s4 1983009808
    %v2978 = vunpack.c.0.s8 %v2977
    %v2979 = vlaneseq
    %v2980 = vshrl.u32 %v2979, 7
    %v2981 = vsub.s32 %v2978, %v2980
    %v2982 = vrot.slane %v2975, %v2981
    %v2983 = vcombine.low %v2836, %v2838
    %v2985 = vunpack.c.l.s4 1983009808
    %v2986 = vunpack.c.0.s8 %v2985
    %v2987 = vlaneseq
    %v2988 = vshrl.u32 %v2987, 7
    %v2989 = vsub.s32 %v2986, %v2988
    %v2990 = vrot.slane %v2983, %v2989
    %v2991 = vcombine.low %v2966, %v2974
    %v2992 = vcombine.high %v2966, %v2974
    %v2994 = vunpack.c.l.s4 1934713408
    %v2995 = vunpack.c.0.s8 %v2994
    %v2996 = vlaneseq
    %v2997 = vshrl.u32 %v2996, 7
    %v2998 = vsub.s32 %v2995, %v2997
    %v2999 = vrot.slane %v2991, %v2998
    %v3001 = vunpack.c.l.s4 1934713408
    %v3002 = vunpack.c.0.s8 %v3001
    %v3003 = vlaneseq
    %v3004 = vshrl.u32 %v3003, 7
    %v3005 = vsub.s32 %v3002, %v3004
    %v3006 = vrot.slane %v2992, %v3005
    %v3007 = vcombine.low %v2982, %v2990
    %v3008 = vcombine.high %v2982, %v2990
    %v3010 = vunpack.c.l.s4 1934713408
    %v3011 = vunpack.c.0.s8 %v3010
    %v3012 = vlaneseq
    %v3013 = vshrl.u32 %v3012, 7
    %v3014 = vsub.s32 %v3011, %v3013
    %v3015 = vrot.slane %v3007, %v3014
    %v3017 = vunpack.c.l.s4 1934713408
    %v3018 = vunpack.c.0.s8 %v3017
    %v3019 = vlaneseq
    %v3020 = vshrl.u32 %v3019, 7
    %v3021 = vsub.s32 %v3018, %v3020
    %v3022 = vrot.slane %v3008, %v3021
    %v3023 = vcombine.low %v2999, %v3015
    %v3024 = vcombine.high %v2999, %v3015
    %v3025 = vcombine.low %v3006, %v3022
    %v3026 = vcombine.high %v3006, %v3022
    %v3027 = vcombine.low %v2839, %v2841
    %v3029 = vunpack.c.l.s4 1983009808
    %v3030 = vunpack.c.0.s8 %v3029
    %v3031 = vlaneseq
    %v3032 = vshrl.u32 %v3031, 7
    %v3033 = vsub.s32 %v3030, %v3032
    %v3034 = vrot.slane %v3027, %v3033
    %v3035 = vcombine.low %v2840, %v2842
    %v3037 = vunpack.c.l.s4 1983009808
    %v3038 = vunpack.c.0.s8 %v3037
    %v3039 = vlaneseq
    %v3040 = vshrl.u32 %v3039, 7
    %v3041 = vsub.s32 %v3038, %v3040
    %v3042 = vrot.slane %v3035, %v3041
    %v3043 = vcombine.low %v2843, %v2845
    %v3045 = vunpack.c.l.s4 1983009808
    %v3046 = vunpack.c.0.s8 %v3045
    %v3047 = vlaneseq
    %v3048 = vshrl.u32 %v3047, 7
    %v3049 = vsub.s32 %v3046, %v3048
    %v3050 = vrot.slane %v3043, %v3049
    %v3051 = vcombine.low %v2844, %v2846
    %v3053 = vunpack.c.l.s4 1983009808
    %v3054 = vunpack.c.0.s8 %v3053
    %v3055 = vlaneseq
    %v3056 = vshrl.u32 %v3055, 7
    %v3057 = vsub.s32 %v3054, %v3056
    %v3058 = vrot.slane %v3051, %v3057
    %v3059 = vcombine.low %v3034, %v3042
    %v3060 = vcombine.high %v3034, %v3042
    %v3062 = vunpack.c.l.s4 1934713408
    %v3063 = vunpack.c.0.s8 %v3062
    %v3064 = vlaneseq
    %v3065 = vshrl.u32 %v3064, 7
    %v3066 = vsub.s32 %v3063, %v3065
    %v3067 = vrot.slane %v3059, %v3066
    %v3069 = vunpack.c.l.s4 1934713408
    %v3070 = vunpack.c.0.s8 %v3069
    %v3071 = vlaneseq
    %v3072 = vshrl.u32 %v3071, 7
    %v3073 = vsub.s32 %v3070, %v3072
    %v3074 = vrot.slane %v3060, %v3073
    %v3075 = vcombine.low %v3050, %v3058
    %v3076 = vcombine.high %v3050, %v3058
    %v3078 = vunpack.c.l.s4 1934713408
    %v3079 = vunpack.c.0.s8 %v3078
    %v3080 = vlaneseq
    %v3081 = vshrl.u32 %v3080, 7
    %v3082 = vsub.s32 %v3079, %v3081
    %v3083 = vrot.slane %v3075, %v3082
    %v3085 = vunpack.c.l.s4 1934713408
    %v3086 = vunpack.c.0.s8 %v3085
    %v3087 = vlaneseq
    %v3088 = vshrl.u32 %v3087, 7
    %v3089 = vsub.s32 %v3086, %v3088
    %v3090 = vrot.slane %v3076, %v3089
    %v3091 = vcombine.low %v3067, %v3083
    %v3092 = vcombine.high %v3067, %v3083
    %v3093 = vcombine.low %v3074, %v3090
    %v3094 = vcombine.high %v3074, %v3090
    %v3095 = vcombine.low %v2847, %v2849
    %v3097 = vunpack.c.l.s4 1983009808
    %v3098 = vunpack.c.0.s8 %v3097
    %v3099 = vlaneseq
    %v3100 = vshrl.u32 %v3099, 7
    %v3101 = vsub.s32 %v3098, %v3100
    %v3102 = vrot.slane %v3095, %v3101
    %v3103 = vcombine.low %v2848, %v2850
    %v3105 = vunpack.c.l.s4 1983009808
    %v3106 = vunpack.c.0.s8 %v3105
    %v3107 = vlaneseq
    %v3108 = vshrl.u32 %v3107, 7
    %v3109 = vsub.s32 %v3106, %v3108
    %v3110 = vrot.slane %v3103, %v3109
    %v3111 = vcombine.low %v2851, %v2853
    %v3113 = vunpack.c.l.s4 1983009808
    %v3114 = vunpack.c.0.s8 %v3113
    %v3115 = vlaneseq
    %v3116 = vshrl.u32 %v3115, 7
    %v3117 = vsub.s32 %v3114, %v3116
    %v3118 = vrot.slane %v3111, %v3117
    %v3119 = vcombine.low %v2852, %v2854
    %v3121 = vunpack.c.l.s4 1983009808
    %v3122 = vunpack.c.0.s8 %v3121
    %v3123 = vlaneseq
    %v3124 = vshrl.u32 %v3123, 7
    %v3125 = vsub.s32 %v3122, %v3124
    %v3126 = vrot.slane %v3119, %v3125
    %v3127 = vcombine.low %v3102, %v3110
    %v3128 = vcombine.high %v3102, %v3110
    %v3130 = vunpack.c.l.s4 1934713408
    %v3131 = vunpack.c.0.s8 %v3130
    %v3132 = vlaneseq
    %v3133 = vshrl.u32 %v3132, 7
    %v3134 = vsub.s32 %v3131, %v3133
    %v3135 = vrot.slane %v3127, %v3134
    %v3137 = vunpack.c.l.s4 1934713408
    %v3138 = vunpack.c.0.s8 %v3137
    %v3139 = vlaneseq
    %v3140 = vshrl.u32 %v3139, 7
    %v3141 = vsub.s32 %v3138, %v3140
    %v3142 = vrot.slane %v3128, %v3141
    %v3143 = vcombine.low %v3118, %v3126
    %v3144 = vcombine.high %v3118, %v3126
    %v3146 = vunpack.c.l.s4 1934713408
    %v3147 = vunpack.c.0.s8 %v3146
    %v3148 = vlaneseq
    %v3149 = vshrl.u32 %v3148, 7
    %v3150 = vsub.s32 %v3147, %v3149
    %v3151 = vrot.slane %v3143, %v3150
    %v3153 = vunpack.c.l.s4 1934713408
    %v3154 = vunpack.c.0.s8 %v3153
    %v3155 = vlaneseq
    %v3156 = vshrl.u32 %v3155, 7
    %v3157 = vsub.s32 %v3154, %v3156
    %v3158 = vrot.slane %v3144, %v3157
    %v3159 = vcombine.low %v3135, %v3151
    %v3160 = vcombine.high %v3135, %v3151
    %v3161 = vcombine.low %v3142, %v3158
    %v3162 = vcombine.high %v3142, %v3158
    %v3163 = vcombine.low %v2855, %v2857
    %v3165 = vunpack.c.l.s4 1983009808
    %v3166 = vunpack.c.0.s8 %v3165
    %v3167 = vlaneseq
    %v3168 = vshrl.u32 %v3167, 7
    %v3169 = vsub.s32 %v3166, %v3168
    %v3170 = vrot.slane %v3163, %v3169
    %v3171 = vcombine.low %v2856, %v2858
    %v3173 = vunpack.c.l.s4 1983009808
    %v3174 = vunpack.c.0.s8 %v3173
    %v3175 = vlaneseq
    %v3176 = vshrl.u32 %v3175, 7
    %v3177 = vsub.s32 %v3174, %v3176
    %v3178 = vrot.slane %v3171, %v3177
    %v3179 = vcombine.low %v2859, %v2861
    %v3181 = vunpack.c.l.s4 1983009808
    %v3182 = vunpack.c.0.s8 %v3181
    %v3183 = vlaneseq
    %v3184 = vshrl.u32 %v3183, 7
    %v3185 = vsub.s32 %v3182, %v3184
    %v3186 = vrot.slane %v3179, %v3185
    %v3187 = vcombine.low %v2860, %v2862
    %v3189 = vunpack.c.l.s4 1983009808
    %v3190 = vunpack.c.0.s8 %v3189
    %v3191 = vlaneseq
    %v3192 = vshrl.u32 %v3191, 7
    %v3193 = vsub.s32 %v3190, %v3192
    %v3194 = vrot.slane %v3187, %v3193
    %v3195 = vcombine.low %v3170, %v3178
    %v3196 = vcombine.high %v3170, %v3178
    %v3198 = vunpack.c.l.s4 1934713408
    %v3199 = vunpack.c.0.s8 %v3198
    %v3200 = vlaneseq
    %v3201 = vshrl.u32 %v3200, 7
    %v3202 = vsub.s32 %v3199, %v3201
    %v3203 = vrot.slane %v3195, %v3202
    %v3205 = vunpack.c.l.s4 1934713408
    %v3206 = vunpack.c.0.s8 %v3205
    %v3207 = vlaneseq
    %v3208 = vshrl.u32 %v3207, 7
    %v3209 = vsub.s32 %v3206, %v3208
    %v3210 = vrot.slane %v3196, %v3209
    %v3211 = vcombine.low %v3186, %v3194
    %v3212 = vcombine.high %v3186, %v3194
    %v3214 = vunpack.c.l.s4 1934713408
    %v3215 = vunpack.c.0.s8 %v3214
    %v3216 = vlaneseq
    %v3217 = vshrl.u32 %v3216, 7
    %v3218 = vsub.s32 %v3215, %v3217
    %v3219 = vrot.slane %v3211, %v3218
    %v3221 = vunpack.c.l.s4 1934713408
    %v3222 = vunpack.c.0.s8 %v3221
    %v3223 = vlaneseq
    %v3224 = vshrl.u32 %v3223, 7
    %v3225 = vsub.s32 %v3222, %v3224
    %v3226 = vrot.slane %v3212, %v3225
    %v3227 = vcombine.low %v3203, %v3219
    %v3228 = vcombine.high %v3203, %v3219
    %v3229 = vcombine.low %v3210, %v3226
    %v3230 = vcombine.high %v3210, %v3226
    %v3231 = vcombine.low %v2863, %v2865
    %v3233 = vunpack.c.l.s4 1983009808
    %v3234 = vunpack.c.0.s8 %v3233
    %v3235 = vlaneseq
    %v3236 = vshrl.u32 %v3235, 7
    %v3237 = vsub.s32 %v3234, %v3236
    %v3238 = vrot.slane %v3231, %v3237
    %v3239 = vcombine.low %v2864, %v2866
    %v3241 = vunpack.c.l.s4 1983009808
    %v3242 = vunpack.c.0.s8 %v3241
    %v3243 = vlaneseq
    %v3244 = vshrl.u32 %v3243, 7
    %v3245 = vsub.s32 %v3242, %v3244
    %v3246 = vrot.slane %v3239, %v3245
    %v3247 = vcombine.low %v2867, %v2869
    %v3249 = vunpack.c.l.s4 1983009808
    %v3250 = vunpack.c.0.s8 %v3249
    %v3251 = vlaneseq
    %v3252 = vshrl.u32 %v3251, 7
    %v3253 = vsub.s32 %v3250, %v3252
    %v3254 = vrot.slane %v3247, %v3253
    %v3255 = vcombine.low %v2868, %v2870
    %v3257 = vunpack.c.l.s4 1983009808
    %v3258 = vunpack.c.0.s8 %v3257
    %v3259 = vlaneseq
    %v3260 = vshrl.u32 %v3259, 7
    %v3261 = vsub.s32 %v3258, %v3260
    %v3262 = vrot.slane %v3255, %v3261
    %v3263 = vcombine.low %v3238, %v3246
    %v3264 = vcombine.high %v3238, %v3246
    %v3266 = vunpack.c.l.s4 1934713408
    %v3267 = vunpack.c.0.s8 %v3266
    %v3268 = vlaneseq
    %v3269 = vshrl.u32 %v3268, 7
    %v3270 = vsub.s32 %v3267, %v3269
    %v3271 = vrot.slane %v3263, %v3270
    %v3273 = vunpack.c.l.s4 1934713408
    %v3274 = vunpack.c.0.s8 %v3273
    %v3275 = vlaneseq
    %v3276 = vshrl.u32 %v3275, 7
    %v3277 = vsub.s32 %v3274, %v3276
    %v3278 = vrot.slane %v3264, %v3277
    %v3279 = vcombine.low %v3254, %v3262
    %v3280 = vcombine.high %v3254, %v3262
    %v3282 = vunpack.c.l.s4 1934713408
    %v3283 = vunpack.c.0.s8 %v3282
    %v3284 = vlaneseq
    %v3285 = vshrl.u32 %v3284, 7
    %v3286 = vsub.s32 %v3283, %v3285
    %v3287 = vrot.slane %v3279, %v3286
    %v3289 = vunpack.c.l.s4 1934713408
    %v3290 = vunpack.c.0.s8 %v3289
    %v3291 = vlaneseq
    %v3292 = vshrl.u32 %v3291, 7
    %v3293 = vsub.s32 %v3290, %v3292
    %v3294 = vrot.slane %v3280, %v3293
    %v3295 = vcombine.low %v3271, %v3287
    %v3296 = vcombine.high %v3271, %v3287
    %v3297 = vcombine.low %v3278, %v3294
    %v3298 = vcombine.high %v3278, %v3294
    %v3299 = vcombine.low %v2871, %v2873
    %v3301 = vunpack.c.l.s4 1983009808
    %v3302 = vunpack.c.0.s8 %v3301
    %v3303 = vlaneseq
    %v3304 = vshrl.u32 %v3303, 7
    %v3305 = vsub.s32 %v3302, %v3304
    %v3306 = vrot.slane %v3299, %v3305
    %v3307 = vcombine.low %v2872, %v2874
    %v3309 = vunpack.c.l.s4 1983009808
    %v3310 = vunpack.c.0.s8 %v3309
    %v3311 = vlaneseq
    %v3312 = vshrl.u32 %v3311, 7
    %v3313 = vsub.s32 %v3310, %v3312
    %v3314 = vrot.slane %v3307, %v3313
    %v3315 = vcombine.low %v2875, %v2877
    %v3317 = vunpack.c.l.s4 1983009808
    %v3318 = vunpack.c.0.s8 %v3317
    %v3319 = vlaneseq
    %v3320 = vshrl.u32 %v3319, 7
    %v3321 = vsub.s32 %v3318, %v3320
    %v3322 = vrot.slane %v3315, %v3321
    %v3323 = vcombine.low %v2876, %v2878
    %v3325 = vunpack.c.l.s4 1983009808
    %v3326 = vunpack.c.0.s8 %v3325
    %v3327 = vlaneseq
    %v3328 = vshrl.u32 %v3327, 7
    %v3329 = vsub.s32 %v3326, %v3328
    %v3330 = vrot.slane %v3323, %v3329
    %v3331 = vcombine.low %v3306, %v3314
    %v3332 = vcombine.high %v3306, %v3314
    %v3334 = vunpack.c.l.s4 1934713408
    %v3335 = vunpack.c.0.s8 %v3334
    %v3336 = vlaneseq
    %v3337 = vshrl.u32 %v3336, 7
    %v3338 = vsub.s32 %v3335, %v3337
    %v3339 = vrot.slane %v3331, %v3338
    %v3341 = vunpack.c.l.s4 1934713408
    %v3342 = vunpack.c.0.s8 %v3341
    %v3343 = vlaneseq
    %v3344 = vshrl.u32 %v3343, 7
    %v3345 = vsub.s32 %v3342, %v3344
    %v3346 = vrot.slane %v3332, %v3345
    %v3347 = vcombine.low %v3322, %v3330
    %v3348 = vcombine.high %v3322, %v3330
    %v3350 = vunpack.c.l.s4 1934713408
    %v3351 = vunpack.c.0.s8 %v3350
    %v3352 = vlaneseq
    %v3353 = vshrl.u32 %v3352, 7
    %v3354 = vsub.s32 %v3351, %v3353
    %v3355 = vrot.slane %v3347, %v3354
    %v3357 = vunpack.c.l.s4 1934713408
    %v3358 = vunpack.c.0.s8 %v3357
    %v3359 = vlaneseq
    %v3360 = vshrl.u32 %v3359, 7
    %v3361 = vsub.s32 %v3358, %v3360
    %v3362 = vrot.slane %v3348, %v3361
    %v3363 = vcombine.low %v3339, %v3355
    %v3364 = vcombine.high %v3339, %v3355
    %v3365 = vcombine.low %v3346, %v3362
    %v3366 = vcombine.high %v3346, %v3362
    %v3367 = vcombine.low %v2879, %v2881
    %v3369 = vunpack.c.l.s4 1983009808
    %v3370 = vunpack.c.0.s8 %v3369
    %v3371 = vlaneseq
    %v3372 = vshrl.u32 %v3371, 7
    %v3373 = vsub.s32 %v3370, %v3372
    %v3374 = vrot.slane %v3367, %v3373
    %v3375 = vcombine.low %v2880, %v2882
    %v3377 = vunpack.c.l.s4 1983009808
    %v3378 = vunpack.c.0.s8 %v3377
    %v3379 = vlaneseq
    %v3380 = vshrl.u32 %v3379, 7
    %v3381 = vsub.s32 %v3378, %v3380
    %v3382 = vrot.slane %v3375, %v3381
    %v3383 = vcombine.low %v2883, %v2885
    %v3385 = vunpack.c.l.s4 1983009808
    %v3386 = vunpack.c.0.s8 %v3385
    %v3387 = vlaneseq
    %v3388 = vshrl.u32 %v3387, 7
    %v3389 = vsub.s32 %v3386, %v3388
    %v3390 = vrot.slane %v3383, %v3389
    %v3391 = vcombine.low %v2884, %v2886
    %v3393 = vunpack.c.l.s4 1983009808
    %v3394 = vunpack.c.0.s8 %v3393
    %v3395 = vlaneseq
    %v3396 = vshrl.u32 %v3395, 7
    %v3397 = vsub.s32 %v3394, %v3396
    %v3398 = vrot.slane %v3391, %v3397
    %v3399 = vcombine.low %v3374, %v3382
    %v3400 = vcombine.high %v3374, %v3382
    %v3402 = vunpack.c.l.s4 1934713408
    %v3403 = vunpack.c.0.s8 %v3402
    %v3404 = vlaneseq
    %v3405 = vshrl.u32 %v3404, 7
    %v3406 = vsub.s32 %v3403, %v3405
    %v3407 = vrot.slane %v3399, %v3406
    %v3409 = vunpack.c.l.s4 1934713408
    %v3410 = vunpack.c.0.s8 %v3409
    %v3411 = vlaneseq
    %v3412 = vshrl.u32 %v3411, 7
    %v3413 = vsub.s32 %v3410, %v3412
    %v3414 = vrot.slane %v3400, %v3413
    %v3415 = vcombine.low %v3390, %v3398
    %v3416 = vcombine.high %v3390, %v3398
    %v3418 = vunpack.c.l.s4 1934713408
    %v3419 = vunpack.c.0.s8 %v3418
    %v3420 = vlaneseq
    %v3421 = vshrl.u32 %v3420, 7
    %v3422 = vsub.s32 %v3419, %v3421
    %v3423 = vrot.slane %v3415, %v3422
    %v3425 = vunpack.c.l.s4 1934713408
    %v3426 = vunpack.c.0.s8 %v3425
    %v3427 = vlaneseq
    %v3428 = vshrl.u32 %v3427, 7
    %v3429 = vsub.s32 %v3426, %v3428
    %v3430 = vrot.slane %v3416, %v3429
    %v3431 = vcombine.low %v3407, %v3423
    %v3432 = vcombine.high %v3407, %v3423
    %v3433 = vcombine.low %v3414, %v3430
    %v3434 = vcombine.high %v3414, %v3430
    %v3435 = vcombine.low %v2887, %v2889
    %v3437 = vunpack.c.l.s4 1983009808
    %v3438 = vunpack.c.0.s8 %v3437
    %v3439 = vlaneseq
    %v3440 = vshrl.u32 %v3439, 7
    %v3441 = vsub.s32 %v3438, %v3440
    %v3442 = vrot.slane %v3435, %v3441
    %v3443 = vcombine.low %v2888, %v2890
    %v3445 = vunpack.c.l.s4 1983009808
    %v3446 = vunpack.c.0.s8 %v3445
    %v3447 = vlaneseq
    %v3448 = vshrl.u32 %v3447, 7
    %v3449 = vsub.s32 %v3446, %v3448
    %v3450 = vrot.slane %v3443, %v3449
    %v3451 = vcombine.low %v2891, %v2893
    %v3453 = vunpack.c.l.s4 1983009808
    %v3454 = vunpack.c.0.s8 %v3453
    %v3455 = vlaneseq
    %v3456 = vshrl.u32 %v3455, 7
    %v3457 = vsub.s32 %v3454, %v3456
    %v3458 = vrot.slane %v3451, %v3457
    %v3459 = vcombine.low %v2892, %v2894
    %v3461 = vunpack.c.l.s4 1983009808
    %v3462 = vunpack.c.0.s8 %v3461
    %v3463 = vlaneseq
    %v3464 = vshrl.u32 %v3463, 7
    %v3465 = vsub.s32 %v3462, %v3464
    %v3466 = vrot.slane %v3459, %v3465
    %v3467 = vcombine.low %v3442, %v3450
    %v3468 = vcombine.high %v3442, %v3450
    %v3470 = vunpack.c.l.s4 1934713408
    %v3471 = vunpack.c.0.s8 %v3470
    %v3472 = vlaneseq
    %v3473 = vshrl.u32 %v3472, 7
    %v3474 = vsub.s32 %v3471, %v3473
    %v3475 = vrot.slane %v3467, %v3474
    %v3477 = vunpack.c.l.s4 1934713408
    %v3478 = vunpack.c.0.s8 %v3477
    %v3479 = vlaneseq
    %v3480 = vshrl.u32 %v3479, 7
    %v3481 = vsub.s32 %v3478, %v3480
    %v3482 = vrot.slane %v3468, %v3481
    %v3483 = vcombine.low %v3458, %v3466
    %v3484 = vcombine.high %v3458, %v3466
    %v3486 = vunpack.c.l.s4 1934713408
    %v3487 = vunpack.c.0.s8 %v3486
    %v3488 = vlaneseq
    %v3489 = vshrl.u32 %v3488, 7
    %v3490 = vsub.s32 %v3487, %v3489
    %v3491 = vrot.slane %v3483, %v3490
    %v3493 = vunpack.c.l.s4 1934713408
    %v3494 = vunpack.c.0.s8 %v3493
    %v3495 = vlaneseq
    %v3496 = vshrl.u32 %v3495, 7
    %v3497 = vsub.s32 %v3494, %v3496
    %v3498 = vrot.slane %v3484, %v3497
    %v3499 = vcombine.low %v3475, %v3491
    %v3500 = vcombine.high %v3475, %v3491
    %v3501 = vcombine.low %v3482, %v3498
    %v3502 = vcombine.high %v3482, %v3498
    %v3503 = vcombine.low %v2895, %v2897
    %v3505 = vunpack.c.l.s4 1983009808
    %v3506 = vunpack.c.0.s8 %v3505
    %v3507 = vlaneseq
    %v3508 = vshrl.u32 %v3507, 7
    %v3509 = vsub.s32 %v3506, %v3508
    %v3510 = vrot.slane %v3503, %v3509
    %v3511 = vcombine.low %v2896, %v2898
    %v3513 = vunpack.c.l.s4 1983009808
    %v3514 = vunpack.c.0.s8 %v3513
    %v3515 = vlaneseq
    %v3516 = vshrl.u32 %v3515, 7
    %v3517 = vsub.s32 %v3514, %v3516
    %v3518 = vrot.slane %v3511, %v3517
    %v3519 = vcombine.low %v2899, %v2901
    %v3521 = vunpack.c.l.s4 1983009808
    %v3522 = vunpack.c.0.s8 %v3521
    %v3523 = vlaneseq
    %v3524 = vshrl.u32 %v3523, 7
    %v3525 = vsub.s32 %v3522, %v3524
    %v3526 = vrot.slane %v3519, %v3525
    %v3527 = vcombine.low %v2900, %v2902
    %v3529 = vunpack.c.l.s4 1983009808
    %v3530 = vunpack.c.0.s8 %v3529
    %v3531 = vlaneseq
    %v3532 = vshrl.u32 %v3531, 7
    %v3533 = vsub.s32 %v3530, %v3532
    %v3534 = vrot.slane %v3527, %v3533
    %v3535 = vcombine.low %v3510, %v3518
    %v3536 = vcombine.high %v3510, %v3518
    %v3538 = vunpack.c.l.s4 1934713408
    %v3539 = vunpack.c.0.s8 %v3538
    %v3540 = vlaneseq
    %v3541 = vshrl.u32 %v3540, 7
    %v3542 = vsub.s32 %v3539, %v3541
    %v3543 = vrot.slane %v3535, %v3542
    %v3545 = vunpack.c.l.s4 1934713408
    %v3546 = vunpack.c.0.s8 %v3545
    %v3547 = vlaneseq
    %v3548 = vshrl.u32 %v3547, 7
    %v3549 = vsub.s32 %v3546, %v3548
    %v3550 = vrot.slane %v3536, %v3549
    %v3551 = vcombine.low %v3526, %v3534
    %v3552 = vcombine.high %v3526, %v3534
    %v3554 = vunpack.c.l.s4 1934713408
    %v3555 = vunpack.c.0.s8 %v3554
    %v3556 = vlaneseq
    %v3557 = vshrl.u32 %v3556, 7
    %v3558 = vsub.s32 %v3555, %v3557
    %v3559 = vrot.slane %v3551, %v3558
    %v3561 = vunpack.c.l.s4 1934713408
    %v3562 = vunpack.c.0.s8 %v3561
    %v3563 = vlaneseq
    %v3564 = vshrl.u32 %v3563, 7
    %v3565 = vsub.s32 %v3562, %v3564
    %v3566 = vrot.slane %v3552, %v3565
    %v3567 = vcombine.low %v3543, %v3559
    %v3568 = vcombine.high %v3543, %v3559
    %v3569 = vcombine.low %v3550, %v3566
    %v3570 = vcombine.high %v3550, %v3566
    %v3571 = vcombine.low %v2903, %v2905
    %v3573 = vunpack.c.l.s4 1983009808
    %v3574 = vunpack.c.0.s8 %v3573
    %v3575 = vlaneseq
    %v3576 = vshrl.u32 %v3575, 7
    %v3577 = vsub.s32 %v3574, %v3576
    %v3578 = vrot.slane %v3571, %v3577
    %v3579 = vcombine.low %v2904, %v2906
    %v3581 = vunpack.c.l.s4 1983009808
    %v3582 = vunpack.c.0.s8 %v3581
    %v3583 = vlaneseq
    %v3584 = vshrl.u32 %v3583, 7
    %v3585 = vsub.s32 %v3582, %v3584
    %v3586 = vrot.slane %v3579, %v3585
    %v3587 = vcombine.low %v2907, %v2909
    %v3589 = vunpack.c.l.s4 1983009808
    %v3590 = vunpack.c.0.s8 %v3589
    %v3591 = vlaneseq
    %v3592 = vshrl.u32 %v3591, 7
    %v3593 = vsub.s32 %v3590, %v3592
    %v3594 = vrot.slane %v3587, %v3593
    %v3595 = vcombine.low %v2908, %v2910
    %v3597 = vunpack.c.l.s4 1983009808
    %v3598 = vunpack.c.0.s8 %v3597
    %v3599 = vlaneseq
    %v3600 = vshrl.u32 %v3599, 7
    %v3601 = vsub.s32 %v3598, %v3600
    %v3602 = vrot.slane %v3595, %v3601
    %v3603 = vcombine.low %v3578, %v3586
    %v3604 = vcombine.high %v3578, %v3586
    %v3606 = vunpack.c.l.s4 1934713408
    %v3607 = vunpack.c.0.s8 %v3606
    %v3608 = vlaneseq
    %v3609 = vshrl.u32 %v3608, 7
    %v3610 = vsub.s32 %v3607, %v3609
    %v3611 = vrot.slane %v3603, %v3610
    %v3613 = vunpack.c.l.s4 1934713408
    %v3614 = vunpack.c.0.s8 %v3613
    %v3615 = vlaneseq
    %v3616 = vshrl.u32 %v3615, 7
    %v3617 = vsub.s32 %v3614, %v3616
    %v3618 = vrot.slane %v3604, %v3617
    %v3619 = vcombine.low %v3594, %v3602
    %v3620 = vcombine.high %v3594, %v3602
    %v3622 = vunpack.c.l.s4 1934713408
    %v3623 = vunpack.c.0.s8 %v3622
    %v3624 = vlaneseq
    %v3625 = vshrl.u32 %v3624, 7
    %v3626 = vsub.s32 %v3623, %v3625
    %v3627 = vrot.slane %v3619, %v3626
    %v3629 = vunpack.c.l.s4 1934713408
    %v3630 = vunpack.c.0.s8 %v3629
    %v3631 = vlaneseq
    %v3632 = vshrl.u32 %v3631, 7
    %v3633 = vsub.s32 %v3630, %v3632
    %v3634 = vrot.slane %v3620, %v3633
    %v3635 = vcombine.low %v3611, %v3627
    %v3636 = vcombine.high %v3611, %v3627
    %v3637 = vcombine.low %v3618, %v3634
    %v3638 = vcombine.high %v3618, %v3634
    %v3639 = vcombine.low %v2911, %v2913
    %v3641 = vunpack.c.l.s4 1983009808
    %v3642 = vunpack.c.0.s8 %v3641
    %v3643 = vlaneseq
    %v3644 = vshrl.u32 %v3643, 7
    %v3645 = vsub.s32 %v3642, %v3644
    %v3646 = vrot.slane %v3639, %v3645
    %v3647 = vcombine.low %v2912, %v2914
    %v3649 = vunpack.c.l.s4 1983009808
    %v3650 = vunpack.c.0.s8 %v3649
    %v3651 = vlaneseq
    %v3652 = vshrl.u32 %v3651, 7
    %v3653 = vsub.s32 %v3650, %v3652
    %v3654 = vrot.slane %v3647, %v3653
    %v3655 = vcombine.low %v2915, %v2917
    %v3657 = vunpack.c.l.s4 1983009808
    %v3658 = vunpack.c.0.s8 %v3657
    %v3659 = vlaneseq
    %v3660 = vshrl.u32 %v3659, 7
    %v3661 = vsub.s32 %v3658, %v3660
    %v3662 = vrot.slane %v3655, %v3661
    %v3663 = vcombine.low %v2916, %v2918
    %v3665 = vunpack.c.l.s4 1983009808
    %v3666 = vunpack.c.0.s8 %v3665
    %v3667 = vlaneseq
    %v3668 = vshrl.u32 %v3667, 7
    %v3669 = vsub.s32 %v3666, %v3668
    %v3670 = vrot.slane %v3663, %v3669
    %v3671 = vcombine.low %v3646, %v3654
    %v3672 = vcombine.high %v3646, %v3654
    %v3674 = vunpack.c.l.s4 1934713408
    %v3675 = vunpack.c.0.s8 %v3674
    %v3676 = vlaneseq
    %v3677 = vshrl.u32 %v3676, 7
    %v3678 = vsub.s32 %v3675, %v3677
    %v3679 = vrot.slane %v3671, %v3678
    %v3681 = vunpack.c.l.s4 1934713408
    %v3682 = vunpack.c.0.s8 %v3681
    %v3683 = vlaneseq
    %v3684 = vshrl.u32 %v3683, 7
    %v3685 = vsub.s32 %v3682, %v3684
    %v3686 = vrot.slane %v3672, %v3685
    %v3687 = vcombine.low %v3662, %v3670
    %v3688 = vcombine.high %v3662, %v3670
    %v3690 = vunpack.c.l.s4 1934713408
    %v3691 = vunpack.c.0.s8 %v3690
    %v3692 = vlaneseq
    %v3693 = vshrl.u32 %v3692, 7
    %v3694 = vsub.s32 %v3691, %v3693
    %v3695 = vrot.slane %v3687, %v3694
    %v3697 = vunpack.c.l.s4 1934713408
    %v3698 = vunpack.c.0.s8 %v3697
    %v3699 = vlaneseq
    %v3700 = vshrl.u32 %v3699, 7
    %v3701 = vsub.s32 %v3698, %v3700
    %v3702 = vrot.slane %v3688, %v3701
    %v3703 = vcombine.low %v3679, %v3695
    %v3704 = vcombine.high %v3679, %v3695
    %v3705 = vcombine.low %v3686, %v3702
    %v3706 = vcombine.high %v3686, %v3702
    %v3707 = vcombine.low %v2919, %v2921
    %v3709 = vunpack.c.l.s4 1983009808
    %v3710 = vunpack.c.0.s8 %v3709
    %v3711 = vlaneseq
    %v3712 = vshrl.u32 %v3711, 7
    %v3713 = vsub.s32 %v3710, %v3712
    %v3714 = vrot.slane %v3707, %v3713
    %v3715 = vcombine.low %v2920, %v2922
    %v3717 = vunpack.c.l.s4 1983009808
    %v3718 = vunpack.c.0.s8 %v3717
    %v3719 = vlaneseq
    %v3720 = vshrl.u32 %v3719, 7
    %v3721 = vsub.s32 %v3718, %v3720
    %v3722 = vrot.slane %v3715, %v3721
    %v3723 = vcombine.low %v2923, %v2925
    %v3725 = vunpack.c.l.s4 1983009808
    %v3726 = vunpack.c.0.s8 %v3725
    %v3727 = vlaneseq
    %v3728 = vshrl.u32 %v3727, 7
    %v3729 = vsub.s32 %v3726, %v3728
    %v3730 = vrot.slane %v3723, %v3729
    %v3731 = vcombine.low %v2924, %v2926
    %v3733 = vunpack.c.l.s4 1983009808
    %v3734 = vunpack.c.0.s8 %v3733
    %v3735 = vlaneseq
    %v3736 = vshrl.u32 %v3735, 7
    %v3737 = vsub.s32 %v3734, %v3736
    %v3738 = vrot.slane %v3731, %v3737
    %v3739 = vcombine.low %v3714, %v3722
    %v3740 = vcombine.high %v3714, %v3722
    %v3742 = vunpack.c.l.s4 1934713408
    %v3743 = vunpack.c.0.s8 %v3742
    %v3744 = vlaneseq
    %v3745 = vshrl.u32 %v3744, 7
    %v3746 = vsub.s32 %v3743, %v3745
    %v3747 = vrot.slane %v3739, %v3746
    %v3749 = vunpack.c.l.s4 1934713408
    %v3750 = vunpack.c.0.s8 %v3749
    %v3751 = vlaneseq
    %v3752 = vshrl.u32 %v3751, 7
    %v3753 = vsub.s32 %v3750, %v3752
    %v3754 = vrot.slane %v3740, %v3753
    %v3755 = vcombine.low %v3730, %v3738
    %v3756 = vcombine.high %v3730, %v3738
    %v3758 = vunpack.c.l.s4 1934713408
    %v3759 = vunpack.c.0.s8 %v3758
    %v3760 = vlaneseq
    %v3761 = vshrl.u32 %v3760, 7
    %v3762 = vsub.s32 %v3759, %v3761
    %v3763 = vrot.slane %v3755, %v3762
    %v3765 = vunpack.c.l.s4 1934713408
    %v3766 = vunpack.c.0.s8 %v3765
    %v3767 = vlaneseq
    %v3768 = vshrl.u32 %v3767, 7
    %v3769 = vsub.s32 %v3766, %v3768
    %v3770 = vrot.slane %v3756, %v3769
    %v3771 = vcombine.low %v3747, %v3763
    %v3772 = vcombine.high %v3747, %v3763
    %v3773 = vcombine.low %v3754, %v3770
    %v3774 = vcombine.high %v3754, %v3770
    %v3775 = vcombine.low %v2927, %v2929
    %v3777 = vunpack.c.l.s4 1983009808
    %v3778 = vunpack.c.0.s8 %v3777
    %v3779 = vlaneseq
    %v3780 = vshrl.u32 %v3779, 7
    %v3781 = vsub.s32 %v3778, %v3780
    %v3782 = vrot.slane %v3775, %v3781
    %v3783 = vcombine.low %v2928, %v2930
    %v3785 = vunpack.c.l.s4 1983009808
    %v3786 = vunpack.c.0.s8 %v3785
    %v3787 = vlaneseq
    %v3788 = vshrl.u32 %v3787, 7
    %v3789 = vsub.s32 %v3786, %v3788
    %v3790 = vrot.slane %v3783, %v3789
    %v3791 = vcombine.low %v2931, %v2933
    %v3793 = vunpack.c.l.s4 1983009808
    %v3794 = vunpack.c.0.s8 %v3793
    %v3795 = vlaneseq
    %v3796 = vshrl.u32 %v3795, 7
    %v3797 = vsub.s32 %v3794, %v3796
    %v3798 = vrot.slane %v3791, %v3797
    %v3799 = vcombine.low %v2932, %v2934
    %v3801 = vunpack.c.l.s4 1983009808
    %v3802 = vunpack.c.0.s8 %v3801
    %v3803 = vlaneseq
    %v3804 = vshrl.u32 %v3803, 7
    %v3805 = vsub.s32 %v3802, %v3804
    %v3806 = vrot.slane %v3799, %v3805
    %v3807 = vcombine.low %v3782, %v3790
    %v3808 = vcombine.high %v3782, %v3790
    %v3810 = vunpack.c.l.s4 1934713408
    %v3811 = vunpack.c.0.s8 %v3810
    %v3812 = vlaneseq
    %v3813 = vshrl.u32 %v3812, 7
    %v3814 = vsub.s32 %v3811, %v3813
    %v3815 = vrot.slane %v3807, %v3814
    %v3817 = vunpack.c.l.s4 1934713408
    %v3818 = vunpack.c.0.s8 %v3817
    %v3819 = vlaneseq
    %v3820 = vshrl.u32 %v3819, 7
    %v3821 = vsub.s32 %v3818, %v3820
    %v3822 = vrot.slane %v3808, %v3821
    %v3823 = vcombine.low %v3798, %v3806
    %v3824 = vcombine.high %v3798, %v3806
    %v3826 = vunpack.c.l.s4 1934713408
    %v3827 = vunpack.c.0.s8 %v3826
    %v3828 = vlaneseq
    %v3829 = vshrl.u32 %v3828, 7
    %v3830 = vsub.s32 %v3827, %v3829
    %v3831 = vrot.slane %v3823, %v3830
    %v3833 = vunpack.c.l.s4 1934713408
    %v3834 = vunpack.c.0.s8 %v3833
    %v3835 = vlaneseq
    %v3836 = vshrl.u32 %v3835, 7
    %v3837 = vsub.s32 %v3834, %v3836
    %v3838 = vrot.slane %v3824, %v3837
    %v3839 = vcombine.low %v3815, %v3831
    %v3840 = vcombine.high %v3815, %v3831
    %v3841 = vcombine.low %v3822, %v3838
    %v3842 = vcombine.high %v3822, %v3838
    %v3843 = vcombine.low %v2935, %v2937
    %v3845 = vunpack.c.l.s4 1983009808
    %v3846 = vunpack.c.0.s8 %v3845
    %v3847 = vlaneseq
    %v3848 = vshrl.u32 %v3847, 7
    %v3849 = vsub.s32 %v3846, %v3848
    %v3850 = vrot.slane %v3843, %v3849
    %v3851 = vcombine.low %v2936, %v2938
    %v3853 = vunpack.c.l.s4 1983009808
    %v3854 = vunpack.c.0.s8 %v3853
    %v3855 = vlaneseq
    %v3856 = vshrl.u32 %v3855, 7
    %v3857 = vsub.s32 %v3854, %v3856
    %v3858 = vrot.slane %v3851, %v3857
    %v3859 = vcombine.low %v2939, %v2941
    %v3861 = vunpack.c.l.s4 1983009808
    %v3862 = vunpack.c.0.s8 %v3861
    %v3863 = vlaneseq
    %v3864 = vshrl.u32 %v3863, 7
    %v3865 = vsub.s32 %v3862, %v3864
    %v3866 = vrot.slane %v3859, %v3865
    %v3867 = vcombine.low %v2940, %v2942
    %v3869 = vunpack.c.l.s4 1983009808
    %v3870 = vunpack.c.0.s8 %v3869
    %v3871 = vlaneseq
    %v3872 = vshrl.u32 %v3871, 7
    %v3873 = vsub.s32 %v3870, %v3872
    %v3874 = vrot.slane %v3867, %v3873
    %v3875 = vcombine.low %v3850, %v3858
    %v3876 = vcombine.high %v3850, %v3858
    %v3878 = vunpack.c.l.s4 1934713408
    %v3879 = vunpack.c.0.s8 %v3878
    %v3880 = vlaneseq
    %v3881 = vshrl.u32 %v3880, 7
    %v3882 = vsub.s32 %v3879, %v3881
    %v3883 = vrot.slane %v3875, %v3882
    %v3885 = vunpack.c.l.s4 1934713408
    %v3886 = vunpack.c.0.s8 %v3885
    %v3887 = vlaneseq
    %v3888 = vshrl.u32 %v3887, 7
    %v3889 = vsub.s32 %v3886, %v3888
    %v3890 = vrot.slane %v3876, %v3889
    %v3891 = vcombine.low %v3866, %v3874
    %v3892 = vcombine.high %v3866, %v3874
    %v3894 = vunpack.c.l.s4 1934713408
    %v3895 = vunpack.c.0.s8 %v3894
    %v3896 = vlaneseq
    %v3897 = vshrl.u32 %v3896, 7
    %v3898 = vsub.s32 %v3895, %v3897
    %v3899 = vrot.slane %v3891, %v3898
    %v3901 = vunpack.c.l.s4 1934713408
    %v3902 = vunpack.c.0.s8 %v3901
    %v3903 = vlaneseq
    %v3904 = vshrl.u32 %v3903, 7
    %v3905 = vsub.s32 %v3902, %v3904
    %v3906 = vrot.slane %v3892, %v3905
    %v3907 = vcombine.low %v3883, %v3899
    %v3908 = vcombine.high %v3883, %v3899
    %v3909 = vcombine.low %v3890, %v3906
    %v3910 = vcombine.high %v3890, %v3906
    %v3911 = vcombine.low %v2943, %v2945
    %v3913 = vunpack.c.l.s4 1983009808
    %v3914 = vunpack.c.0.s8 %v3913
    %v3915 = vlaneseq
    %v3916 = vshrl.u32 %v3915, 7
    %v3917 = vsub.s32 %v3914, %v3916
    %v3918 = vrot.slane %v3911, %v3917
    %v3919 = vcombine.low %v2944, %v2946
    %v3921 = vunpack.c.l.s4 1983009808
    %v3922 = vunpack.c.0.s8 %v3921
    %v3923 = vlaneseq
    %v3924 = vshrl.u32 %v3923, 7
    %v3925 = vsub.s32 %v3922, %v3924
    %v3926 = vrot.slane %v3919, %v3925
    %v3927 = vcombine.low %v2947, %v2949
    %v3929 = vunpack.c.l.s4 1983009808
    %v3930 = vunpack.c.0.s8 %v3929
    %v3931 = vlaneseq
    %v3932 = vshrl.u32 %v3931, 7
    %v3933 = vsub.s32 %v3930, %v3932
    %v3934 = vrot.slane %v3927, %v3933
    %v3935 = vcombine.low %v2948, %v2950
    %v3937 = vunpack.c.l.s4 1983009808
    %v3938 = vunpack.c.0.s8 %v3937
    %v3939 = vlaneseq
    %v3940 = vshrl.u32 %v3939, 7
    %v3941 = vsub.s32 %v3938, %v3940
    %v3942 = vrot.slane %v3935, %v3941
    %v3943 = vcombine.low %v3918, %v3926
    %v3944 = vcombine.high %v3918, %v3926
    %v3946 = vunpack.c.l.s4 1934713408
    %v3947 = vunpack.c.0.s8 %v3946
    %v3948 = vlaneseq
    %v3949 = vshrl.u32 %v3948, 7
    %v3950 = vsub.s32 %v3947, %v3949
    %v3951 = vrot.slane %v3943, %v3950
    %v3953 = vunpack.c.l.s4 1934713408
    %v3954 = vunpack.c.0.s8 %v3953
    %v3955 = vlaneseq
    %v3956 = vshrl.u32 %v3955, 7
    %v3957 = vsub.s32 %v3954, %v3956
    %v3958 = vrot.slane %v3944, %v3957
    %v3959 = vcombine.low %v3934, %v3942
    %v3960 = vcombine.high %v3934, %v3942
    %v3962 = vunpack.c.l.s4 1934713408
    %v3963 = vunpack.c.0.s8 %v3962
    %v3964 = vlaneseq
    %v3965 = vshrl.u32 %v3964, 7
    %v3966 = vsub.s32 %v3963, %v3965
    %v3967 = vrot.slane %v3959, %v3966
    %v3969 = vunpack.c.l.s4 1934713408
    %v3970 = vunpack.c.0.s8 %v3969
    %v3971 = vlaneseq
    %v3972 = vshrl.u32 %v3971, 7
    %v3973 = vsub.s32 %v3970, %v3972
    %v3974 = vrot.slane %v3960, %v3973
    %v3975 = vcombine.low %v3951, %v3967
    %v3976 = vcombine.high %v3951, %v3967
    %v3977 = vcombine.low %v3958, %v3974
    %v3978 = vcombine.high %v3958, %v3974
    %v3979 = vcombine.low %v2951, %v2953
    %v3981 = vunpack.c.l.s4 1983009808
    %v3982 = vunpack.c.0.s8 %v3981
    %v3983 = vlaneseq
    %v3984 = vshrl.u32 %v3983, 7
    %v3985 = vsub.s32 %v3982, %v3984
    %v3986 = vrot.slane %v3979, %v3985
    %v3987 = vcombine.low %v2952, %v2954
    %v3989 = vunpack.c.l.s4 1983009808
    %v3990 = vunpack.c.0.s8 %v3989
    %v3991 = vlaneseq
    %v3992 = vshrl.u32 %v3991, 7
    %v3993 = vsub.s32 %v3990, %v3992
    %v3994 = vrot.slane %v3987, %v3993
    %v3995 = vcombine.low %v2955, %v2957
    %v3997 = vunpack.c.l.s4 1983009808
    %v3998 = vunpack.c.0.s8 %v3997
    %v3999 = vlaneseq
    %v4000 = vshrl.u32 %v3999, 7
    %v4001 = vsub.s32 %v3998, %v4000
    %v4002 = vrot.slane %v3995, %v4001
    %v4003 = vcombine.low %v2956, %v2958
    %v4005 = vunpack.c.l.s4 1983009808
    %v4006 = vunpack.c.0.s8 %v4005
    %v4007 = vlaneseq
    %v4008 = vshrl.u32 %v4007, 7
    %v4009 = vsub.s32 %v4006, %v4008
    %v4010 = vrot.slane %v4003, %v4009
    %v4011 = vcombine.low %v3986, %v3994
    %v4012 = vcombine.high %v3986, %v3994
    %v4014 = vunpack.c.l.s4 1934713408
    %v4015 = vunpack.c.0.s8 %v4014
    %v4016 = vlaneseq
    %v4017 = vshrl.u32 %v4016, 7
    %v4018 = vsub.s32 %v4015, %v4017
    %v4019 = vrot.slane %v4011, %v4018
    %v4021 = vunpack.c.l.s4 1934713408
    %v4022 = vunpack.c.0.s8 %v4021
    %v4023 = vlaneseq
    %v4024 = vshrl.u32 %v4023, 7
    %v4025 = vsub.s32 %v4022, %v4024
    %v4026 = vrot.slane %v4012, %v4025
    %v4027 = vcombine.low %v4002, %v4010
    %v4028 = vcombine.high %v4002, %v4010
    %v4030 = vunpack.c.l.s4 1934713408
    %v4031 = vunpack.c.0.s8 %v4030
    %v4032 = vlaneseq
    %v4033 = vshrl.u32 %v4032, 7
    %v4034 = vsub.s32 %v4031, %v4033
    %v4035 = vrot.slane %v4027, %v4034
    %v4037 = vunpack.c.l.s4 1934713408
    %v4038 = vunpack.c.0.s8 %v4037
    %v4039 = vlaneseq
    %v4040 = vshrl.u32 %v4039, 7
    %v4041 = vsub.s32 %v4038, %v4040
    %v4042 = vrot.slane %v4028, %v4041
    %v4043 = vcombine.low %v4019, %v4035
    %v4044 = vcombine.high %v4019, %v4035
    %v4045 = vcombine.low %v4026, %v4042
    %v4046 = vcombine.high %v4026, %v4042
    %4063 = vrot.lane.b32.xlu0 %v3024, 32
    %v4064 = vpop.permute.xlu0 %4063
    %4065 = vrot.lane.b32.xlu0 %v3092, 32
    %v4066 = vpop.permute.xlu0 %4065
    %4067 = vrot.lane.b32.xlu0 %v3160, 32
    %v4068 = vpop.permute.xlu0 %4067
    %4069 = vrot.lane.b32.xlu0 %v3228, 32
    %v4070 = vpop.permute.xlu0 %4069
    %4071 = vrot.lane.b32.xlu0 %v3296, 32
    %v4072 = vpop.permute.xlu0 %4071
    %4073 = vrot.lane.b32.xlu0 %v3364, 32
    %v4074 = vpop.permute.xlu0 %4073
    %4075 = vrot.lane.b32.xlu0 %v3432, 32
    %v4076 = vpop.permute.xlu0 %4075
    %4077 = vrot.lane.b32.xlu0 %v3500, 32
    %v4078 = vpop.permute.xlu0 %4077
    %4079 = vrot.lane.b32.xlu0 %v3568, 32
    %v4080 = vpop.permute.xlu0 %4079
    %4081 = vrot.lane.b32.xlu0 %v3636, 32
    %v4082 = vpop.permute.xlu0 %4081
    %4083 = vrot.lane.b32.xlu0 %v3704, 32
    %v4084 = vpop.permute.xlu0 %4083
    %4085 = vrot.lane.b32.xlu0 %v3772, 32
    %v4086 = vpop.permute.xlu0 %4085
    %4087 = vrot.lane.b32.xlu0 %v3840, 32
    %v4088 = vpop.permute.xlu0 %4087
    %4089 = vrot.lane.b32.xlu0 %v3908, 32
    %v4090 = vpop.permute.xlu0 %4089
    %4091 = vrot.lane.b32.xlu0 %v3976, 32
    %v4092 = vpop.permute.xlu0 %4091
    %4093 = vrot.lane.b32.xlu0 %v4044, 32
    %v4094 = vpop.permute.xlu0 %4093
    %4127 = vrot.lane.b32.xlu0 %v3025, 64
    %v4128 = vpop.permute.xlu0 %4127
    %4129 = vrot.lane.b32.xlu0 %v3093, 64
    %v4130 = vpop.permute.xlu0 %4129
    %4131 = vrot.lane.b32.xlu0 %v3161, 64
    %v4132 = vpop.permute.xlu0 %4131
    %4133 = vrot.lane.b32.xlu0 %v3229, 64
    %v4134 = vpop.permute.xlu0 %4133
    %4135 = vrot.lane.b32.xlu0 %v3297, 64
    %v4136 = vpop.permute.xlu0 %4135
    %4137 = vrot.lane.b32.xlu0 %v3365, 64
    %v4138 = vpop.permute.xlu0 %4137
    %4139 = vrot.lane.b32.xlu0 %v3433, 64
    %v4140 = vpop.permute.xlu0 %4139
    %4141 = vrot.lane.b32.xlu0 %v3501, 64
    %v4142 = vpop.permute.xlu0 %4141
    %4143 = vrot.lane.b32.xlu0 %v3569, 64
    %v4144 = vpop.permute.xlu0 %4143
    %4145 = vrot.lane.b32.xlu0 %v3637, 64
    %v4146 = vpop.permute.xlu0 %4145
    %4147 = vrot.lane.b32.xlu0 %v3705, 64
    %v4148 = vpop.permute.xlu0 %4147
    %4149 = vrot.lane.b32.xlu0 %v3773, 64
    %v4150 = vpop.permute.xlu0 %4149
    %4151 = vrot.lane.b32.xlu0 %v3841, 64
    %v4152 = vpop.permute.xlu0 %4151
    %4153 = vrot.lane.b32.xlu0 %v3909, 64
    %v4154 = vpop.permute.xlu0 %4153
    %4155 = vrot.lane.b32.xlu0 %v3977, 64
    %v4156 = vpop.permute.xlu0 %4155
    %4157 = vrot.lane.b32.xlu0 %v4045, 64
    %v4158 = vpop.permute.xlu0 %4157
    %4191 = vrot.lane.b32.xlu0 %v3026, 96
    %v4192 = vpop.permute.xlu0 %4191
    %4193 = vrot.lane.b32.xlu0 %v3094, 96
    %v4194 = vpop.permute.xlu0 %4193
    %4195 = vrot.lane.b32.xlu0 %v3162, 96
    %v4196 = vpop.permute.xlu0 %4195
    %4197 = vrot.lane.b32.xlu0 %v3230, 96
    %v4198 = vpop.permute.xlu0 %4197
    %4199 = vrot.lane.b32.xlu0 %v3298, 96
    %v4200 = vpop.permute.xlu0 %4199
    %4201 = vrot.lane.b32.xlu0 %v3366, 96
    %v4202 = vpop.permute.xlu0 %4201
    %4203 = vrot.lane.b32.xlu0 %v3434, 96
    %v4204 = vpop.permute.xlu0 %4203
    %4205 = vrot.lane.b32.xlu0 %v3502, 96
    %v4206 = vpop.permute.xlu0 %4205
    %4207 = vrot.lane.b32.xlu0 %v3570, 96
    %v4208 = vpop.permute.xlu0 %4207
    %4209 = vrot.lane.b32.xlu0 %v3638, 96
    %v4210 = vpop.permute.xlu0 %4209
    %4211 = vrot.lane.b32.xlu0 %v3706, 96
    %v4212 = vpop.permute.xlu0 %4211
    %4213 = vrot.lane.b32.xlu0 %v3774, 96
    %v4214 = vpop.permute.xlu0 %4213
    %4215 = vrot.lane.b32.xlu0 %v3842, 96
    %v4216 = vpop.permute.xlu0 %4215
    %4217 = vrot.lane.b32.xlu0 %v3910, 96
    %v4218 = vpop.permute.xlu0 %4217
    %4219 = vrot.lane.b32.xlu0 %v3978, 96
    %v4220 = vpop.permute.xlu0 %4219
    %4221 = vrot.lane.b32.xlu0 %v4046, 96
    %v4222 = vpop.permute.xlu0 %4221
    %vm4239 = vcmask 261120
    %v4240 = vsel %vm4239, %v3023, %v4064
    %v4241 = vsel %vm4239, %v3091, %v4066
    %v4242 = vsel %vm4239, %v3159, %v4068
    %v4243 = vsel %vm4239, %v3227, %v4070
    %v4244 = vsel %vm4239, %v3295, %v4072
    %v4245 = vsel %vm4239, %v3363, %v4074
    %v4246 = vsel %vm4239, %v3431, %v4076
    %v4247 = vsel %vm4239, %v3499, %v4078
    %v4248 = vsel %vm4239, %v3567, %v4080
    %v4249 = vsel %vm4239, %v3635, %v4082
    %v4250 = vsel %vm4239, %v3703, %v4084
    %v4251 = vsel %vm4239, %v3771, %v4086
    %v4252 = vsel %vm4239, %v3839, %v4088
    %v4253 = vsel %vm4239, %v3907, %v4090
    %v4254 = vsel %vm4239, %v3975, %v4092
    %v4255 = vsel %vm4239, %v4043, %v4094
    %vm4256 = vcmask 523264
    %v4257 = vsel %vm4256, %v4240, %v4128
    %v4258 = vsel %vm4256, %v4241, %v4130
    %v4259 = vsel %vm4256, %v4242, %v4132
    %v4260 = vsel %vm4256, %v4243, %v4134
    %v4261 = vsel %vm4256, %v4244, %v4136
    %v4262 = vsel %vm4256, %v4245, %v4138
    %v4263 = vsel %vm4256, %v4246, %v4140
    %v4264 = vsel %vm4256, %v4247, %v4142
    %v4265 = vsel %vm4256, %v4248, %v4144
    %v4266 = vsel %vm4256, %v4249, %v4146
    %v4267 = vsel %vm4256, %v4250, %v4148
    %v4268 = vsel %vm4256, %v4251, %v4150
    %v4269 = vsel %vm4256, %v4252, %v4152
    %v4270 = vsel %vm4256, %v4253, %v4154
    %v4271 = vsel %vm4256, %v4254, %v4156
    %v4272 = vsel %vm4256, %v4255, %v4158
    %vm4273 = vcmask 785408
    %v4274 = vsel %vm4273, %v4257, %v4192
    %v4275 = vsel %vm4273, %v4258, %v4194
    %v4276 = vsel %vm4273, %v4259, %v4196
    %v4277 = vsel %vm4273, %v4260, %v4198
    %v4278 = vsel %vm4273, %v4261, %v4200
    %v4279 = vsel %vm4273, %v4262, %v4202
    %v4280 = vsel %vm4273, %v4263, %v4204
    %v4281 = vsel %vm4273, %v4264, %v4206
    %v4282 = vsel %vm4273, %v4265, %v4208
    %v4283 = vsel %vm4273, %v4266, %v4210
    %v4284 = vsel %vm4273, %v4267, %v4212
    %v4285 = vsel %vm4273, %v4268, %v4214
    %v4286 = vsel %vm4273, %v4269, %v4216
    %v4287 = vsel %vm4273, %v4270, %v4218
    %v4288 = vsel %vm4273, %v4271, %v4220
    %v4289 = vsel %vm4273, %v4272, %v4222
    %v4290 = vld [vmem:[%s1] sm:$0x1]
    %v4292 = vlaneseq
    %v4293 = vshrl.u32 %v4292, 7
    %v4294 = vsub.s32 0, %v4293
    %v4295 = vrot.slane %v4290, %v4294
    %v4297 = vmul.f32 %v4274, %v4295
    %v4298 = vmul.f32 %v4275, %v4295
    %v4299 = vmul.f32 %v4276, %v4295
    %v4300 = vmul.f32 %v4277, %v4295
    %v4301 = vmul.f32 %v4278, %v4295
    %v4302 = vmul.f32 %v4279, %v4295
    %v4303 = vmul.f32 %v4280, %v4295
    %v4304 = vmul.f32 %v4281, %v4295
    %v4305 = vmul.f32 %v4282, %v4295
    %v4306 = vmul.f32 %v4283, %v4295
    %v4307 = vmul.f32 %v4284, %v4295
    %v4308 = vmul.f32 %v4285, %v4295
    %v4309 = vmul.f32 %v4286, %v4295
    %v4310 = vmul.f32 %v4287, %v4295
    %v4311 = vmul.f32 %v4288, %v4295
    %v4312 = vmul.f32 %v4289, %v4295
    %v4313 = vld [vmem:[%s2] sm:$0x1]
    %v4315 = vlaneseq
    %v4316 = vshrl.u32 %v4315, 7
    %v4317 = vsub.s32 0, %v4316
    %v4318 = vrot.slane %v4313, %v4317
    %v4320 = vadd.f32 %v4297, %v4318
    %v4321 = vadd.f32 %v4298, %v4318
    %v4322 = vadd.f32 %v4299, %v4318
    %v4323 = vadd.f32 %v4300, %v4318
    %v4324 = vadd.f32 %v4301, %v4318
    %v4325 = vadd.f32 %v4302, %v4318
    %v4326 = vadd.f32 %v4303, %v4318
    %v4327 = vadd.f32 %v4304, %v4318
    %v4328 = vadd.f32 %v4305, %v4318
    %v4329 = vadd.f32 %v4306, %v4318
    %v4330 = vadd.f32 %v4307, %v4318
    %v4331 = vadd.f32 %v4308, %v4318
    %v4332 = vadd.f32 %v4309, %v4318
    %v4333 = vadd.f32 %v4310, %v4318
    %v4334 = vadd.f32 %v4311, %v4318
    %v4335 = vadd.f32 %v4312, %v4318
    %4336 = vst [vmem:[#allocation5] sm:$0xff] %v4320
    %4337 = vst [vmem:[#allocation5 + $0x8] sm:$0xff] %v4321
    %4338 = vst [vmem:[#allocation5 + $0x10] sm:$0xff] %v4322
    %4339 = vst [vmem:[#allocation5 + $0x18] sm:$0xff] %v4323
    %4340 = vst [vmem:[#allocation5 + $0x20] sm:$0xff] %v4324
    %4341 = vst [vmem:[#allocation5 + $0x28] sm:$0xff] %v4325
    %4342 = vst [vmem:[#allocation5 + $0x30] sm:$0xff] %v4326
    %4343 = vst [vmem:[#allocation5 + $0x38] sm:$0xff] %v4327
    %4344 = vst [vmem:[#allocation5 + $0x40] sm:$0xff] %v4328
    %4345 = vst [vmem:[#allocation5 + $0x48] sm:$0xff] %v4329
    %4346 = vst [vmem:[#allocation5 + $0x50] sm:$0xff] %v4330
    %4347 = vst [vmem:[#allocation5 + $0x58] sm:$0xff] %v4331
    %4348 = vst [vmem:[#allocation5 + $0x60] sm:$0xff] %v4332
    %4349 = vst [vmem:[#allocation5 + $0x68] sm:$0xff] %v4333
    %4350 = vst [vmem:[#allocation5 + $0x70] sm:$0xff] %v4334
    %4351 = vst [vmem:[#allocation5 + $0x78] sm:$0xff] %v4335
    // Predicated region
    $region18: #{tpu_custom_call.1} parent=1 // pred_check
      _
    $region19: #{tpu_custom_call.1} parent=1 // pred_check_branch
      %4353 = sbr.rel (0) target = $region21
    $region20: #{tpu_custom_call.1} parent=1 // pred_region
      %s4355 = ssub.s32 2048, 2048
      %4356 = vsyncadd [#allocation4], %s4355
      %s4357 = sshll.u32 [#allocation5], 4
      %s4358 = int_to_ptr.vmem [resolvable:$true] %s4357
      %4363 = dma.vmem_to_hbm [thread:$0]  %s4358, 2048, %s3, [#allocation4], 128, 128, 8
    $region21: #{tpu_custom_call.1} parent=1 // pred_fallthru
      _
    // Predicated region
    $region22: #{tpu_custom_call.1} parent=1 // pred_check
      _
    $region23: #{tpu_custom_call.1} parent=1 // pred_check_branch
      %4365 = sbr.rel (0) target = $region25
    $region24: #{tpu_custom_call.1} parent=1 // pred_region
      %4366 = dma.done [#allocation4], 2048
    $region25: #{tpu_custom_call.1} parent=1 // pred_fallthru
      _
    %4367 = vsyncpa [#allocation3], 1
    %4368 = vsyncpa [#allocation4], 1

</llo_original>
